<compile_context>
chip_gen: v7x
topology: tpu7x:2x2x1
jax: 0.10.0
libtpu: 0.0.40
codegen_flags: <defaults>
</compile_context>

<pallas_src>
import functools

import jax
import jax.numpy as jnp
from jax import lax
from jax.experimental import pallas as pl
from jax.experimental.pallas import tpu as pltpu


def att_kernel(x_ref, w_ctx_ref, w_rec_ref, b_att_ref, w_l1_ref, b_l1_ref,
               out_ref):
    """One batch block of the whole time recurrence.

    x_ref     : (B, T)     raw input rows for this batch block
    w_ctx_ref : (L, L)     W_ctx^T  (context half of Linear(2L -> L))
    w_rec_ref : (L, L)     W_o1^T   (recurrent half of Linear(2L -> L))
    b_att_ref : (1, L)
    w_l1_ref  : (1, L)     readout Linear(L -> 1) weight as a row
    b_l1_ref  : (1, 1)
    out_ref   : (B, T_pad) lane-dense output row block; columns [0, L) and
                [T, T_pad) stay zero; column L+s holds step s's readout.
    """
    B, T = x_ref.shape
    L = w_ctx_ref.shape[0]
    S = T - L
    T_pad = out_ref.shape[1]

    x = x_ref[...]                                   # (B, T)  ~1 vreg
    w_ct = w_ctx_ref[...]                            # (L, L)
    w_rc = w_rec_ref[...]                            # (L, L)

    # Hoist every weight broadcast out of the recurrence (JAX does not CSE
    # broadcast_in_dim; doing these per step would emit S*L of them).
    w_ct_rows = [jnp.broadcast_to(w_ct[j:j + 1, :], (B, L)) for j in range(L)]
    w_rc_rows = [jnp.broadcast_to(w_rc[k:k + 1, :], (B, L)) for k in range(L)]
    bias = jnp.broadcast_to(b_att_ref[...], (B, L))
    w_l1 = jnp.broadcast_to(w_l1_ref[...], (B, L))
    b_l1 = jnp.broadcast_to(b_l1_ref[...], (B, 1))

    col = lax.broadcasted_iota(jnp.int32, (B, T_pad), 1)

    o1 = jnp.zeros((B, L), jnp.float32)
    out = jnp.zeros((B, T_pad), jnp.float32)         # vreg-resident output row

    # Fully unrolled serial recurrence (S is small and static).  Only the
    # 8-FMA recurrent sum + tanh + relu is on the serial dependency chain; the
    # context FMAs, the readout reduce and the output select depend only on
    # x / h and get scheduled under the chain's latency.
    for s in range(S):
        # Context projection for step s (off the serial chain, VPU FMAs).
        pre = bias
        for j in range(L):
            pre = pre + x[:, s + j:s + j + 1] * w_ct_rows[j]
        # Recurrent part: 8 VPU broadcast multiply-adds, no 8x8 MXU dot.
        rec = o1[:, 0:1] * w_rc_rows[0]
        for k in range(1, L):
            rec = rec + o1[:, k:k + 1] * w_rc_rows[k]
        h = jnp.maximum(jnp.tanh(pre + rec), 0.0)                 # (B, L)
        # Fused readout: h never leaves vregs, no per-step VMEM store.
        y = jnp.sum(h * w_l1, axis=-1, keepdims=True) + b_l1      # (B, 1)
        out = jnp.where(col == (L + s), y, out)                   # lane L+s
        o1 = h

    out_ref[...] = out                               # single unmasked store


@functools.partial(jax.jit, static_argnames=("L",))
def att_forward(x, w_att, b_att, w_l1, b_l1, *, L=8):
    """x: (B, T) float32. Returns (B, T) float32 matching Att.forward (future=0)."""
    B, T = x.shape
    if T <= L:
        raise ValueError(f"Att.forward needs T > L (got T={T}, L={L})")

    x = x.astype(jnp.float32)
    # Parameter plumbing (torch Linear: y = x @ W^T + b; combined = [mix, o1]).
    w_ctx_t = jnp.transpose(w_att[:, :L]).astype(jnp.float32)    # (L, L)
    w_rec_t = jnp.transpose(w_att[:, L:]).astype(jnp.float32)    # (L, L)
    b_att2 = b_att.reshape(1, L).astype(jnp.float32)
    w_l1_row = w_l1.reshape(1, L).astype(jnp.float32)
    b_l1_2 = b_l1.reshape(1, 1).astype(jnp.float32)

    T_pad = max(128, ((T + 127) // 128) * 128)   # lane-dense output row
    bb = 8 if B % 8 == 0 else B                  # batch block (sublane granule)

    y_pad = pl.pallas_call(
        att_kernel,
        out_shape=jax.ShapeDtypeStruct((B, T_pad), jnp.float32),
        grid=(B // bb,),
        in_specs=[
            pl.BlockSpec((bb, T), lambda i: (i, 0)),
            pl.BlockSpec((L, L), lambda i: (0, 0)),
            pl.BlockSpec((L, L), lambda i: (0, 0)),
            pl.BlockSpec((1, L), lambda i: (0, 0)),
            pl.BlockSpec((1, L), lambda i: (0, 0)),
            pl.BlockSpec((1, 1), lambda i: (0, 0)),
        ],
        out_specs=pl.BlockSpec((bb, T_pad), lambda i: (i, 0)),
        compiler_params=pltpu.CompilerParams(
            dimension_semantics=("parallel",)),   # batch blocks are independent
    )(x, w_ctx_t, w_rec_t, b_att2, w_l1_row, b_l1_2)

    # First L columns (torch seeds them with zeros) and the lane padding are
    # already zero inside the kernel; just drop the padding.
    return y_pad[:, :T]


def att_forward_ref(x, w_att, b_att, w_l1, b_l1, L=8):
    """Pure-JAX reference of the same forward pass (correctness check)."""
    B, T = x.shape
    o1 = jnp.zeros((B, L), jnp.float32)
    cols = [jnp.zeros((B,), jnp.float32) for _ in range(L)]
    for i in range(T - L):
        ctx = x[:, i:i + L]
        combined = jnp.concatenate([ctx, o1], axis=-1)      # [mix, o1]
        o1 = jnp.maximum(jnp.tanh(combined @ w_att.T + b_att), 0.0)
        y = o1 @ w_l1.T + b_l1                               # (B, 1)
        cols.append(y[:, 0])
    return jnp.stack(cols, axis=1)


if __name__ == "__main__":
    key = jax.random.PRNGKey(0)
    k0, k1, k2, k3, k4 = jax.random.split(key, 5)

    B, T, L = 8, 32, 8   # small shapes consistent with the module (L = 8 fixed)

    # Synthetic sine-wave input mimicking gen_data(T=20,...) at small size.
    phase = jax.random.randint(k0, (B, 1), -80, 80).astype(jnp.float32)
    x = jnp.sin((jnp.arange(T, dtype=jnp.float32)[None, :] + phase) / 20.0)

    # Shapes follow Attention(L).linear_out = Linear(2L, L) and nn.Linear(L, 1).
    w_att = 0.2 * jax.random.normal(k1, (L, 2 * L), dtype=jnp.float32)
    b_att = 0.2 * jax.random.normal(k2, (L,), dtype=jnp.float32)
    w_l1 = 0.2 * jax.random.normal(k3, (1, L), dtype=jnp.float32)
    b_l1 = 0.2 * jax.random.normal(k4, (1,), dtype=jnp.float32)

    out = att_forward(x, w_att, b_att, w_l1, b_l1, L=L)
    out = jax.block_until_ready(out)

    ref = att_forward_ref(x, w_att, b_att, w_l1, b_l1, L=L)
    assert out.shape == (B, T)
    assert bool(jnp.allclose(out, ref, atol=1e-4, rtol=1e-4)), "mismatch vs reference"

    print("KERNEL_OK")
</pallas_src>

<mosaic_0001>
module attributes {stable_mosaic.version = 11 : i64} {
  func.func @att_kernel(%arg0: i32, %arg1: memref<8x32xf32, #tpu.memory_space<vmem>>, %arg2: memref<8x8xf32, #tpu.memory_space<vmem>>, %arg3: memref<8x8xf32, #tpu.memory_space<vmem>>, %arg4: memref<1x8xf32, #tpu.memory_space<vmem>>, %arg5: memref<1x8xf32, #tpu.memory_space<vmem>>, %arg6: memref<1x1xf32, #tpu.memory_space<vmem>>, %arg7: memref<8x128xf32, #tpu.memory_space<vmem>>) attributes {dimension_semantics = [#tpu.dimension_semantics<parallel>], iteration_bounds = array<i64: 1>, scalar_prefetch = 0 : i64, scratch_operands = 0 : i64, tpu.core_type = #tpu.core_type<tc>, window_params = [{transform_indices = @transform_0, window_bounds = array<i64: 8, 32>}, {pipeline_mode = #tpu.pipeline_mode<synchronous>, transform_indices = @transform_1, window_bounds = array<i64: 8, 8>}, {pipeline_mode = #tpu.pipeline_mode<synchronous>, transform_indices = @transform_2, window_bounds = array<i64: 8, 8>}, {pipeline_mode = #tpu.pipeline_mode<synchronous>, transform_indices = @transform_3, window_bounds = array<i64: 1, 8>}, {pipeline_mode = #tpu.pipeline_mode<synchronous>, transform_indices = @transform_4, window_bounds = array<i64: 1, 8>}, {pipeline_mode = #tpu.pipeline_mode<synchronous>, transform_indices = @transform_5, window_bounds = array<i64: 1, 1>}, {transform_indices = @transform_6, window_bounds = array<i64: 8, 128>}]} {
    %c0 = arith.constant 0 : index
    %c0_0 = arith.constant 0 : index
    %0 = vector.load %arg1[%c0, %c0_0] : memref<8x32xf32, #tpu.memory_space<vmem>>, vector<8x32xf32>
    %c0_1 = arith.constant 0 : index
    %c0_2 = arith.constant 0 : index
    %1 = vector.load %arg2[%c0_1, %c0_2] : memref<8x8xf32, #tpu.memory_space<vmem>>, vector<8x8xf32>
    %c0_3 = arith.constant 0 : index
    %c0_4 = arith.constant 0 : index
    %2 = vector.load %arg3[%c0_3, %c0_4] : memref<8x8xf32, #tpu.memory_space<vmem>>, vector<8x8xf32>
    %3 = vector.extract_strided_slice %1 {offsets = [0, 0], sizes = [1, 8], strides = [1, 1]} : vector<8x8xf32> to vector<1x8xf32>
    %4 = vector.shape_cast %3 : vector<1x8xf32> to vector<1x8xf32>
    %5 = vector.broadcast %4 : vector<1x8xf32> to vector<8x8xf32>
    %6 = vector.extract_strided_slice %1 {offsets = [1, 0], sizes = [1, 8], strides = [1, 1]} : vector<8x8xf32> to vector<1x8xf32>
    %7 = vector.shape_cast %6 : vector<1x8xf32> to vector<1x8xf32>
    %8 = vector.broadcast %7 : vector<1x8xf32> to vector<8x8xf32>
    %9 = vector.extract_strided_slice %1 {offsets = [2, 0], sizes = [1, 8], strides = [1, 1]} : vector<8x8xf32> to vector<1x8xf32>
    %10 = vector.shape_cast %9 : vector<1x8xf32> to vector<1x8xf32>
    %11 = vector.broadcast %10 : vector<1x8xf32> to vector<8x8xf32>
    %12 = vector.extract_strided_slice %1 {offsets = [3, 0], sizes = [1, 8], strides = [1, 1]} : vector<8x8xf32> to vector<1x8xf32>
    %13 = vector.shape_cast %12 : vector<1x8xf32> to vector<1x8xf32>
    %14 = vector.broadcast %13 : vector<1x8xf32> to vector<8x8xf32>
    %15 = vector.extract_strided_slice %1 {offsets = [4, 0], sizes = [1, 8], strides = [1, 1]} : vector<8x8xf32> to vector<1x8xf32>
    %16 = vector.shape_cast %15 : vector<1x8xf32> to vector<1x8xf32>
    %17 = vector.broadcast %16 : vector<1x8xf32> to vector<8x8xf32>
    %18 = vector.extract_strided_slice %1 {offsets = [5, 0], sizes = [1, 8], strides = [1, 1]} : vector<8x8xf32> to vector<1x8xf32>
    %19 = vector.shape_cast %18 : vector<1x8xf32> to vector<1x8xf32>
    %20 = vector.broadcast %19 : vector<1x8xf32> to vector<8x8xf32>
    %21 = vector.extract_strided_slice %1 {offsets = [6, 0], sizes = [1, 8], strides = [1, 1]} : vector<8x8xf32> to vector<1x8xf32>
    %22 = vector.shape_cast %21 : vector<1x8xf32> to vector<1x8xf32>
    %23 = vector.broadcast %22 : vector<1x8xf32> to vector<8x8xf32>
    %24 = vector.extract_strided_slice %1 {offsets = [7, 0], sizes = [1, 8], strides = [1, 1]} : vector<8x8xf32> to vector<1x8xf32>
    %25 = vector.shape_cast %24 : vector<1x8xf32> to vector<1x8xf32>
    %26 = vector.broadcast %25 : vector<1x8xf32> to vector<8x8xf32>
    %27 = vector.extract_strided_slice %2 {offsets = [0, 0], sizes = [1, 8], strides = [1, 1]} : vector<8x8xf32> to vector<1x8xf32>
    %28 = vector.shape_cast %27 : vector<1x8xf32> to vector<1x8xf32>
    %29 = vector.broadcast %28 : vector<1x8xf32> to vector<8x8xf32>
    %30 = vector.extract_strided_slice %2 {offsets = [1, 0], sizes = [1, 8], strides = [1, 1]} : vector<8x8xf32> to vector<1x8xf32>
    %31 = vector.shape_cast %30 : vector<1x8xf32> to vector<1x8xf32>
    %32 = vector.broadcast %31 : vector<1x8xf32> to vector<8x8xf32>
    %33 = vector.extract_strided_slice %2 {offsets = [2, 0], sizes = [1, 8], strides = [1, 1]} : vector<8x8xf32> to vector<1x8xf32>
    %34 = vector.shape_cast %33 : vector<1x8xf32> to vector<1x8xf32>
    %35 = vector.broadcast %34 : vector<1x8xf32> to vector<8x8xf32>
    %36 = vector.extract_strided_slice %2 {offsets = [3, 0], sizes = [1, 8], strides = [1, 1]} : vector<8x8xf32> to vector<1x8xf32>
    %37 = vector.shape_cast %36 : vector<1x8xf32> to vector<1x8xf32>
    %38 = vector.broadcast %37 : vector<1x8xf32> to vector<8x8xf32>
    %39 = vector.extract_strided_slice %2 {offsets = [4, 0], sizes = [1, 8], strides = [1, 1]} : vector<8x8xf32> to vector<1x8xf32>
    %40 = vector.shape_cast %39 : vector<1x8xf32> to vector<1x8xf32>
    %41 = vector.broadcast %40 : vector<1x8xf32> to vector<8x8xf32>
    %42 = vector.extract_strided_slice %2 {offsets = [5, 0], sizes = [1, 8], strides = [1, 1]} : vector<8x8xf32> to vector<1x8xf32>
    %43 = vector.shape_cast %42 : vector<1x8xf32> to vector<1x8xf32>
    %44 = vector.broadcast %43 : vector<1x8xf32> to vector<8x8xf32>
    %45 = vector.extract_strided_slice %2 {offsets = [6, 0], sizes = [1, 8], strides = [1, 1]} : vector<8x8xf32> to vector<1x8xf32>
    %46 = vector.shape_cast %45 : vector<1x8xf32> to vector<1x8xf32>
    %47 = vector.broadcast %46 : vector<1x8xf32> to vector<8x8xf32>
    %48 = vector.extract_strided_slice %2 {offsets = [7, 0], sizes = [1, 8], strides = [1, 1]} : vector<8x8xf32> to vector<1x8xf32>
    %49 = vector.shape_cast %48 : vector<1x8xf32> to vector<1x8xf32>
    %50 = vector.broadcast %49 : vector<1x8xf32> to vector<8x8xf32>
    %c0_5 = arith.constant 0 : index
    %c0_6 = arith.constant 0 : index
    %51 = vector.load %arg4[%c0_5, %c0_6] : memref<1x8xf32, #tpu.memory_space<vmem>>, vector<1x8xf32>
    %52 = vector.shape_cast %51 : vector<1x8xf32> to vector<1x8xf32>
    %53 = vector.broadcast %52 : vector<1x8xf32> to vector<8x8xf32>
    %c0_7 = arith.constant 0 : index
    %c0_8 = arith.constant 0 : index
    %54 = vector.load %arg5[%c0_7, %c0_8] : memref<1x8xf32, #tpu.memory_space<vmem>>, vector<1x8xf32>
    %55 = vector.shape_cast %54 : vector<1x8xf32> to vector<1x8xf32>
    %56 = vector.broadcast %55 : vector<1x8xf32> to vector<8x8xf32>
    %c0_9 = arith.constant 0 : index
    %c0_10 = arith.constant 0 : index
    %57 = vector.load %arg6[%c0_9, %c0_10] : memref<1x1xf32, #tpu.memory_space<vmem>>, vector<1x1xf32>
    %58 = vector.shape_cast %57 : vector<1x1xf32> to vector<1x1xf32>
    %59 = vector.broadcast %58 : vector<1x1xf32> to vector<8x1xf32>
    %60 = tpu.iota {dimensions = array<i32: 1>} : vector<8x128xi32>
    %cst = arith.constant 0.000000e+00 : f32
    %61 = vector.broadcast %cst : f32 to vector<8x8xf32>
    %cst_11 = arith.constant 0.000000e+00 : f32
    %62 = vector.broadcast %cst_11 : f32 to vector<8x128xf32>
    %63 = vector.extract_strided_slice %0 {offsets = [0, 0], sizes = [8, 1], strides = [1, 1]} : vector<8x32xf32> to vector<8x1xf32>
    %64 = vector.broadcast %63 : vector<8x1xf32> to vector<8x8xf32>
    %65 = arith.mulf %64, %5 : vector<8x8xf32>
    %66 = arith.addf %53, %65 : vector<8x8xf32>
    %67 = vector.extract_strided_slice %0 {offsets = [0, 1], sizes = [8, 1], strides = [1, 1]} : vector<8x32xf32> to vector<8x1xf32>
    %68 = vector.broadcast %67 : vector<8x1xf32> to vector<8x8xf32>
    %69 = arith.mulf %68, %8 : vector<8x8xf32>
    %70 = arith.addf %66, %69 : vector<8x8xf32>
    %71 = vector.extract_strided_slice %0 {offsets = [0, 2], sizes = [8, 1], strides = [1, 1]} : vector<8x32xf32> to vector<8x1xf32>
    %72 = vector.broadcast %71 : vector<8x1xf32> to vector<8x8xf32>
    %73 = arith.mulf %72, %11 : vector<8x8xf32>
    %74 = arith.addf %70, %73 : vector<8x8xf32>
    %75 = vector.extract_strided_slice %0 {offsets = [0, 3], sizes = [8, 1], strides = [1, 1]} : vector<8x32xf32> to vector<8x1xf32>
    %76 = vector.broadcast %75 : vector<8x1xf32> to vector<8x8xf32>
    %77 = arith.mulf %76, %14 : vector<8x8xf32>
    %78 = arith.addf %74, %77 : vector<8x8xf32>
    %79 = vector.extract_strided_slice %0 {offsets = [0, 4], sizes = [8, 1], strides = [1, 1]} : vector<8x32xf32> to vector<8x1xf32>
    %80 = vector.broadcast %79 : vector<8x1xf32> to vector<8x8xf32>
    %81 = arith.mulf %80, %17 : vector<8x8xf32>
    %82 = arith.addf %78, %81 : vector<8x8xf32>
    %83 = vector.extract_strided_slice %0 {offsets = [0, 5], sizes = [8, 1], strides = [1, 1]} : vector<8x32xf32> to vector<8x1xf32>
    %84 = vector.broadcast %83 : vector<8x1xf32> to vector<8x8xf32>
    %85 = arith.mulf %84, %20 : vector<8x8xf32>
    %86 = arith.addf %82, %85 : vector<8x8xf32>
    %87 = vector.extract_strided_slice %0 {offsets = [0, 6], sizes = [8, 1], strides = [1, 1]} : vector<8x32xf32> to vector<8x1xf32>
    %88 = vector.broadcast %87 : vector<8x1xf32> to vector<8x8xf32>
    %89 = arith.mulf %88, %23 : vector<8x8xf32>
    %90 = arith.addf %86, %89 : vector<8x8xf32>
    %91 = vector.extract_strided_slice %0 {offsets = [0, 7], sizes = [8, 1], strides = [1, 1]} : vector<8x32xf32> to vector<8x1xf32>
    %92 = vector.broadcast %91 : vector<8x1xf32> to vector<8x8xf32>
    %93 = arith.mulf %92, %26 : vector<8x8xf32>
    %94 = arith.addf %90, %93 : vector<8x8xf32>
    %95 = vector.extract_strided_slice %61 {offsets = [0, 0], sizes = [8, 1], strides = [1, 1]} : vector<8x8xf32> to vector<8x1xf32>
    %96 = vector.broadcast %95 : vector<8x1xf32> to vector<8x8xf32>
    %97 = arith.mulf %96, %29 : vector<8x8xf32>
    %98 = vector.extract_strided_slice %61 {offsets = [0, 1], sizes = [8, 1], strides = [1, 1]} : vector<8x8xf32> to vector<8x1xf32>
    %99 = vector.broadcast %98 : vector<8x1xf32> to vector<8x8xf32>
    %100 = arith.mulf %99, %32 : vector<8x8xf32>
    %101 = arith.addf %97, %100 : vector<8x8xf32>
    %102 = vector.extract_strided_slice %61 {offsets = [0, 2], sizes = [8, 1], strides = [1, 1]} : vector<8x8xf32> to vector<8x1xf32>
    %103 = vector.broadcast %102 : vector<8x1xf32> to vector<8x8xf32>
    %104 = arith.mulf %103, %35 : vector<8x8xf32>
    %105 = arith.addf %101, %104 : vector<8x8xf32>
    %106 = vector.extract_strided_slice %61 {offsets = [0, 3], sizes = [8, 1], strides = [1, 1]} : vector<8x8xf32> to vector<8x1xf32>
    %107 = vector.broadcast %106 : vector<8x1xf32> to vector<8x8xf32>
    %108 = arith.mulf %107, %38 : vector<8x8xf32>
    %109 = arith.addf %105, %108 : vector<8x8xf32>
    %110 = vector.extract_strided_slice %61 {offsets = [0, 4], sizes = [8, 1], strides = [1, 1]} : vector<8x8xf32> to vector<8x1xf32>
    %111 = vector.broadcast %110 : vector<8x1xf32> to vector<8x8xf32>
    %112 = arith.mulf %111, %41 : vector<8x8xf32>
    %113 = arith.addf %109, %112 : vector<8x8xf32>
    %114 = vector.extract_strided_slice %61 {offsets = [0, 5], sizes = [8, 1], strides = [1, 1]} : vector<8x8xf32> to vector<8x1xf32>
    %115 = vector.broadcast %114 : vector<8x1xf32> to vector<8x8xf32>
    %116 = arith.mulf %115, %44 : vector<8x8xf32>
    %117 = arith.addf %113, %116 : vector<8x8xf32>
    %118 = vector.extract_strided_slice %61 {offsets = [0, 6], sizes = [8, 1], strides = [1, 1]} : vector<8x8xf32> to vector<8x1xf32>
    %119 = vector.broadcast %118 : vector<8x1xf32> to vector<8x8xf32>
    %120 = arith.mulf %119, %47 : vector<8x8xf32>
    %121 = arith.addf %117, %120 : vector<8x8xf32>
    %122 = vector.extract_strided_slice %61 {offsets = [0, 7], sizes = [8, 1], strides = [1, 1]} : vector<8x8xf32> to vector<8x1xf32>
    %123 = vector.broadcast %122 : vector<8x1xf32> to vector<8x8xf32>
    %124 = arith.mulf %123, %50 : vector<8x8xf32>
    %125 = arith.addf %121, %124 : vector<8x8xf32>
    %126 = arith.addf %94, %125 : vector<8x8xf32>
    %127 = math.tanh %126 : vector<8x8xf32>
    %cst_12 = arith.constant 0.000000e+00 : f32
    %128 = vector.broadcast %cst_12 : f32 to vector<8x8xf32>
    %129 = arith.maximumf %127, %128 : vector<8x8xf32>
    %130 = arith.mulf %129, %56 : vector<8x8xf32>
    %cst_13 = arith.constant dense<0.000000e+00> : vector<8xf32>
    %131 = vector.multi_reduction <add>, %130, %cst_13 [1] : vector<8x8xf32> to vector<8xf32>
    %132 = vector.shape_cast %131 : vector<8xf32> to vector<8x1xf32>
    %133 = arith.addf %132, %59 : vector<8x1xf32>
    %c8_i32 = arith.constant 8 : i32
    %134 = vector.broadcast %c8_i32 : i32 to vector<8x128xi32>
    %135 = arith.cmpi eq, %60, %134 : vector<8x128xi32>
    %136 = vector.shape_cast %133 : vector<8x1xf32> to vector<8x1xf32>
    %137 = vector.broadcast %136 : vector<8x1xf32> to vector<8x128xf32>
    %138 = arith.select %135, %137, %62 : vector<8x128xi1>, vector<8x128xf32>
    %139 = vector.extract_strided_slice %0 {offsets = [0, 1], sizes = [8, 1], strides = [1, 1]} : vector<8x32xf32> to vector<8x1xf32>
    %140 = vector.broadcast %139 : vector<8x1xf32> to vector<8x8xf32>
    %141 = arith.mulf %140, %5 : vector<8x8xf32>
    %142 = arith.addf %53, %141 : vector<8x8xf32>
    %143 = vector.extract_strided_slice %0 {offsets = [0, 2], sizes = [8, 1], strides = [1, 1]} : vector<8x32xf32> to vector<8x1xf32>
    %144 = vector.broadcast %143 : vector<8x1xf32> to vector<8x8xf32>
    %145 = arith.mulf %144, %8 : vector<8x8xf32>
    %146 = arith.addf %142, %145 : vector<8x8xf32>
    %147 = vector.extract_strided_slice %0 {offsets = [0, 3], sizes = [8, 1], strides = [1, 1]} : vector<8x32xf32> to vector<8x1xf32>
    %148 = vector.broadcast %147 : vector<8x1xf32> to vector<8x8xf32>
    %149 = arith.mulf %148, %11 : vector<8x8xf32>
    %150 = arith.addf %146, %149 : vector<8x8xf32>
    %151 = vector.extract_strided_slice %0 {offsets = [0, 4], sizes = [8, 1], strides = [1, 1]} : vector<8x32xf32> to vector<8x1xf32>
    %152 = vector.broadcast %151 : vector<8x1xf32> to vector<8x8xf32>
    %153 = arith.mulf %152, %14 : vector<8x8xf32>
    %154 = arith.addf %150, %153 : vector<8x8xf32>
    %155 = vector.extract_strided_slice %0 {offsets = [0, 5], sizes = [8, 1], strides = [1, 1]} : vector<8x32xf32> to vector<8x1xf32>
    %156 = vector.broadcast %155 : vector<8x1xf32> to vector<8x8xf32>
    %157 = arith.mulf %156, %17 : vector<8x8xf32>
    %158 = arith.addf %154, %157 : vector<8x8xf32>
    %159 = vector.extract_strided_slice %0 {offsets = [0, 6], sizes = [8, 1], strides = [1, 1]} : vector<8x32xf32> to vector<8x1xf32>
    %160 = vector.broadcast %159 : vector<8x1xf32> to vector<8x8xf32>
    %161 = arith.mulf %160, %20 : vector<8x8xf32>
    %162 = arith.addf %158, %161 : vector<8x8xf32>
    %163 = vector.extract_strided_slice %0 {offsets = [0, 7], sizes = [8, 1], strides = [1, 1]} : vector<8x32xf32> to vector<8x1xf32>
    %164 = vector.broadcast %163 : vector<8x1xf32> to vector<8x8xf32>
    %165 = arith.mulf %164, %23 : vector<8x8xf32>
    %166 = arith.addf %162, %165 : vector<8x8xf32>
    %167 = vector.extract_strided_slice %0 {offsets = [0, 8], sizes = [8, 1], strides = [1, 1]} : vector<8x32xf32> to vector<8x1xf32>
    %168 = vector.broadcast %167 : vector<8x1xf32> to vector<8x8xf32>
    %169 = arith.mulf %168, %26 : vector<8x8xf32>
    %170 = arith.addf %166, %169 : vector<8x8xf32>
    %171 = vector.extract_strided_slice %129 {offsets = [0, 0], sizes = [8, 1], strides = [1, 1]} : vector<8x8xf32> to vector<8x1xf32>
    %172 = vector.broadcast %171 : vector<8x1xf32> to vector<8x8xf32>
    %173 = arith.mulf %172, %29 : vector<8x8xf32>
    %174 = vector.extract_strided_slice %129 {offsets = [0, 1], sizes = [8, 1], strides = [1, 1]} : vector<8x8xf32> to vector<8x1xf32>
    %175 = vector.broadcast %174 : vector<8x1xf32> to vector<8x8xf32>
    %176 = arith.mulf %175, %32 : vector<8x8xf32>
    %177 = arith.addf %173, %176 : vector<8x8xf32>
    %178 = vector.extract_strided_slice %129 {offsets = [0, 2], sizes = [8, 1], strides = [1, 1]} : vector<8x8xf32> to vector<8x1xf32>
    %179 = vector.broadcast %178 : vector<8x1xf32> to vector<8x8xf32>
    %180 = arith.mulf %179, %35 : vector<8x8xf32>
    %181 = arith.addf %177, %180 : vector<8x8xf32>
    %182 = vector.extract_strided_slice %129 {offsets = [0, 3], sizes = [8, 1], strides = [1, 1]} : vector<8x8xf32> to vector<8x1xf32>
    %183 = vector.broadcast %182 : vector<8x1xf32> to vector<8x8xf32>
    %184 = arith.mulf %183, %38 : vector<8x8xf32>
    %185 = arith.addf %181, %184 : vector<8x8xf32>
    %186 = vector.extract_strided_slice %129 {offsets = [0, 4], sizes = [8, 1], strides = [1, 1]} : vector<8x8xf32> to vector<8x1xf32>
    %187 = vector.broadcast %186 : vector<8x1xf32> to vector<8x8xf32>
    %188 = arith.mulf %187, %41 : vector<8x8xf32>
    %189 = arith.addf %185, %188 : vector<8x8xf32>
    %190 = vector.extract_strided_slice %129 {offsets = [0, 5], sizes = [8, 1], strides = [1, 1]} : vector<8x8xf32> to vector<8x1xf32>
    %191 = vector.broadcast %190 : vector<8x1xf32> to vector<8x8xf32>
    %192 = arith.mulf %191, %44 : vector<8x8xf32>
    %193 = arith.addf %189, %192 : vector<8x8xf32>
    %194 = vector.extract_strided_slice %129 {offsets = [0, 6], sizes = [8, 1], strides = [1, 1]} : vector<8x8xf32> to vector<8x1xf32>
    %195 = vector.broadcast %194 : vector<8x1xf32> to vector<8x8xf32>
    %196 = arith.mulf %195, %47 : vector<8x8xf32>
    %197 = arith.addf %193, %196 : vector<8x8xf32>
    %198 = vector.extract_strided_slice %129 {offsets = [0, 7], sizes = [8, 1], strides = [1, 1]} : vector<8x8xf32> to vector<8x1xf32>
    %199 = vector.broadcast %198 : vector<8x1xf32> to vector<8x8xf32>
    %200 = arith.mulf %199, %50 : vector<8x8xf32>
    %201 = arith.addf %197, %200 : vector<8x8xf32>
    %202 = arith.addf %170, %201 : vector<8x8xf32>
    %203 = math.tanh %202 : vector<8x8xf32>
    %cst_14 = arith.constant 0.000000e+00 : f32
    %204 = vector.broadcast %cst_14 : f32 to vector<8x8xf32>
    %205 = arith.maximumf %203, %204 : vector<8x8xf32>
    %206 = arith.mulf %205, %56 : vector<8x8xf32>
    %cst_15 = arith.constant dense<0.000000e+00> : vector<8xf32>
    %207 = vector.multi_reduction <add>, %206, %cst_15 [1] : vector<8x8xf32> to vector<8xf32>
    %208 = vector.shape_cast %207 : vector<8xf32> to vector<8x1xf32>
    %209 = arith.addf %208, %59 : vector<8x1xf32>
    %c9_i32 = arith.constant 9 : i32
    %210 = vector.broadcast %c9_i32 : i32 to vector<8x128xi32>
    %211 = arith.cmpi eq, %60, %210 : vector<8x128xi32>
    %212 = vector.shape_cast %209 : vector<8x1xf32> to vector<8x1xf32>
    %213 = vector.broadcast %212 : vector<8x1xf32> to vector<8x128xf32>
    %214 = arith.select %211, %213, %138 : vector<8x128xi1>, vector<8x128xf32>
    %215 = vector.extract_strided_slice %0 {offsets = [0, 2], sizes = [8, 1], strides = [1, 1]} : vector<8x32xf32> to vector<8x1xf32>
    %216 = vector.broadcast %215 : vector<8x1xf32> to vector<8x8xf32>
    %217 = arith.mulf %216, %5 : vector<8x8xf32>
    %218 = arith.addf %53, %217 : vector<8x8xf32>
    %219 = vector.extract_strided_slice %0 {offsets = [0, 3], sizes = [8, 1], strides = [1, 1]} : vector<8x32xf32> to vector<8x1xf32>
    %220 = vector.broadcast %219 : vector<8x1xf32> to vector<8x8xf32>
    %221 = arith.mulf %220, %8 : vector<8x8xf32>
    %222 = arith.addf %218, %221 : vector<8x8xf32>
    %223 = vector.extract_strided_slice %0 {offsets = [0, 4], sizes = [8, 1], strides = [1, 1]} : vector<8x32xf32> to vector<8x1xf32>
    %224 = vector.broadcast %223 : vector<8x1xf32> to vector<8x8xf32>
    %225 = arith.mulf %224, %11 : vector<8x8xf32>
    %226 = arith.addf %222, %225 : vector<8x8xf32>
    %227 = vector.extract_strided_slice %0 {offsets = [0, 5], sizes = [8, 1], strides = [1, 1]} : vector<8x32xf32> to vector<8x1xf32>
    %228 = vector.broadcast %227 : vector<8x1xf32> to vector<8x8xf32>
    %229 = arith.mulf %228, %14 : vector<8x8xf32>
    %230 = arith.addf %226, %229 : vector<8x8xf32>
    %231 = vector.extract_strided_slice %0 {offsets = [0, 6], sizes = [8, 1], strides = [1, 1]} : vector<8x32xf32> to vector<8x1xf32>
    %232 = vector.broadcast %231 : vector<8x1xf32> to vector<8x8xf32>
    %233 = arith.mulf %232, %17 : vector<8x8xf32>
    %234 = arith.addf %230, %233 : vector<8x8xf32>
    %235 = vector.extract_strided_slice %0 {offsets = [0, 7], sizes = [8, 1], strides = [1, 1]} : vector<8x32xf32> to vector<8x1xf32>
    %236 = vector.broadcast %235 : vector<8x1xf32> to vector<8x8xf32>
    %237 = arith.mulf %236, %20 : vector<8x8xf32>
    %238 = arith.addf %234, %237 : vector<8x8xf32>
    %239 = vector.extract_strided_slice %0 {offsets = [0, 8], sizes = [8, 1], strides = [1, 1]} : vector<8x32xf32> to vector<8x1xf32>
    %240 = vector.broadcast %239 : vector<8x1xf32> to vector<8x8xf32>
    %241 = arith.mulf %240, %23 : vector<8x8xf32>
    %242 = arith.addf %238, %241 : vector<8x8xf32>
    %243 = vector.extract_strided_slice %0 {offsets = [0, 9], sizes = [8, 1], strides = [1, 1]} : vector<8x32xf32> to vector<8x1xf32>
    %244 = vector.broadcast %243 : vector<8x1xf32> to vector<8x8xf32>
    %245 = arith.mulf %244, %26 : vector<8x8xf32>
    %246 = arith.addf %242, %245 : vector<8x8xf32>
    %247 = vector.extract_strided_slice %205 {offsets = [0, 0], sizes = [8, 1], strides = [1, 1]} : vector<8x8xf32> to vector<8x1xf32>
    %248 = vector.broadcast %247 : vector<8x1xf32> to vector<8x8xf32>
    %249 = arith.mulf %248, %29 : vector<8x8xf32>
    %250 = vector.extract_strided_slice %205 {offsets = [0, 1], sizes = [8, 1], strides = [1, 1]} : vector<8x8xf32> to vector<8x1xf32>
    %251 = vector.broadcast %250 : vector<8x1xf32> to vector<8x8xf32>
    %252 = arith.mulf %251, %32 : vector<8x8xf32>
    %253 = arith.addf %249, %252 : vector<8x8xf32>
    %254 = vector.extract_strided_slice %205 {offsets = [0, 2], sizes = [8, 1], strides = [1, 1]} : vector<8x8xf32> to vector<8x1xf32>
    %255 = vector.broadcast %254 : vector<8x1xf32> to vector<8x8xf32>
    %256 = arith.mulf %255, %35 : vector<8x8xf32>
    %257 = arith.addf %253, %256 : vector<8x8xf32>
    %258 = vector.extract_strided_slice %205 {offsets = [0, 3], sizes = [8, 1], strides = [1, 1]} : vector<8x8xf32> to vector<8x1xf32>
    %259 = vector.broadcast %258 : vector<8x1xf32> to vector<8x8xf32>
    %260 = arith.mulf %259, %38 : vector<8x8xf32>
    %261 = arith.addf %257, %260 : vector<8x8xf32>
    %262 = vector.extract_strided_slice %205 {offsets = [0, 4], sizes = [8, 1], strides = [1, 1]} : vector<8x8xf32> to vector<8x1xf32>
    %263 = vector.broadcast %262 : vector<8x1xf32> to vector<8x8xf32>
    %264 = arith.mulf %263, %41 : vector<8x8xf32>
    %265 = arith.addf %261, %264 : vector<8x8xf32>
    %266 = vector.extract_strided_slice %205 {offsets = [0, 5], sizes = [8, 1], strides = [1, 1]} : vector<8x8xf32> to vector<8x1xf32>
    %267 = vector.broadcast %266 : vector<8x1xf32> to vector<8x8xf32>
    %268 = arith.mulf %267, %44 : vector<8x8xf32>
    %269 = arith.addf %265, %268 : vector<8x8xf32>
    %270 = vector.extract_strided_slice %205 {offsets = [0, 6], sizes = [8, 1], strides = [1, 1]} : vector<8x8xf32> to vector<8x1xf32>
    %271 = vector.broadcast %270 : vector<8x1xf32> to vector<8x8xf32>
    %272 = arith.mulf %271, %47 : vector<8x8xf32>
    %273 = arith.addf %269, %272 : vector<8x8xf32>
    %274 = vector.extract_strided_slice %205 {offsets = [0, 7], sizes = [8, 1], strides = [1, 1]} : vector<8x8xf32> to vector<8x1xf32>
    %275 = vector.broadcast %274 : vector<8x1xf32> to vector<8x8xf32>
    %276 = arith.mulf %275, %50 : vector<8x8xf32>
    %277 = arith.addf %273, %276 : vector<8x8xf32>
    %278 = arith.addf %246, %277 : vector<8x8xf32>
    %279 = math.tanh %278 : vector<8x8xf32>
    %cst_16 = arith.constant 0.000000e+00 : f32
    %280 = vector.broadcast %cst_16 : f32 to vector<8x8xf32>
    %281 = arith.maximumf %279, %280 : vector<8x8xf32>
    %282 = arith.mulf %281, %56 : vector<8x8xf32>
    %cst_17 = arith.constant dense<0.000000e+00> : vector<8xf32>
    %283 = vector.multi_reduction <add>, %282, %cst_17 [1] : vector<8x8xf32> to vector<8xf32>
    %284 = vector.shape_cast %283 : vector<8xf32> to vector<8x1xf32>
    %285 = arith.addf %284, %59 : vector<8x1xf32>
    %c10_i32 = arith.constant 10 : i32
    %286 = vector.broadcast %c10_i32 : i32 to vector<8x128xi32>
    %287 = arith.cmpi eq, %60, %286 : vector<8x128xi32>
    %288 = vector.shape_cast %285 : vector<8x1xf32> to vector<8x1xf32>
    %289 = vector.broadcast %288 : vector<8x1xf32> to vector<8x128xf32>
    %290 = arith.select %287, %289, %214 : vector<8x128xi1>, vector<8x128xf32>
    %291 = vector.extract_strided_slice %0 {offsets = [0, 3], sizes = [8, 1], strides = [1, 1]} : vector<8x32xf32> to vector<8x1xf32>
    %292 = vector.broadcast %291 : vector<8x1xf32> to vector<8x8xf32>
    %293 = arith.mulf %292, %5 : vector<8x8xf32>
    %294 = arith.addf %53, %293 : vector<8x8xf32>
    %295 = vector.extract_strided_slice %0 {offsets = [0, 4], sizes = [8, 1], strides = [1, 1]} : vector<8x32xf32> to vector<8x1xf32>
    %296 = vector.broadcast %295 : vector<8x1xf32> to vector<8x8xf32>
    %297 = arith.mulf %296, %8 : vector<8x8xf32>
    %298 = arith.addf %294, %297 : vector<8x8xf32>
    %299 = vector.extract_strided_slice %0 {offsets = [0, 5], sizes = [8, 1], strides = [1, 1]} : vector<8x32xf32> to vector<8x1xf32>
    %300 = vector.broadcast %299 : vector<8x1xf32> to vector<8x8xf32>
    %301 = arith.mulf %300, %11 : vector<8x8xf32>
    %302 = arith.addf %298, %301 : vector<8x8xf32>
    %303 = vector.extract_strided_slice %0 {offsets = [0, 6], sizes = [8, 1], strides = [1, 1]} : vector<8x32xf32> to vector<8x1xf32>
    %304 = vector.broadcast %303 : vector<8x1xf32> to vector<8x8xf32>
    %305 = arith.mulf %304, %14 : vector<8x8xf32>
    %306 = arith.addf %302, %305 : vector<8x8xf32>
    %307 = vector.extract_strided_slice %0 {offsets = [0, 7], sizes = [8, 1], strides = [1, 1]} : vector<8x32xf32> to vector<8x1xf32>
    %308 = vector.broadcast %307 : vector<8x1xf32> to vector<8x8xf32>
    %309 = arith.mulf %308, %17 : vector<8x8xf32>
    %310 = arith.addf %306, %309 : vector<8x8xf32>
    %311 = vector.extract_strided_slice %0 {offsets = [0, 8], sizes = [8, 1], strides = [1, 1]} : vector<8x32xf32> to vector<8x1xf32>
    %312 = vector.broadcast %311 : vector<8x1xf32> to vector<8x8xf32>
    %313 = arith.mulf %312, %20 : vector<8x8xf32>
    %314 = arith.addf %310, %313 : vector<8x8xf32>
    %315 = vector.extract_strided_slice %0 {offsets = [0, 9], sizes = [8, 1], strides = [1, 1]} : vector<8x32xf32> to vector<8x1xf32>
    %316 = vector.broadcast %315 : vector<8x1xf32> to vector<8x8xf32>
    %317 = arith.mulf %316, %23 : vector<8x8xf32>
    %318 = arith.addf %314, %317 : vector<8x8xf32>
    %319 = vector.extract_strided_slice %0 {offsets = [0, 10], sizes = [8, 1], strides = [1, 1]} : vector<8x32xf32> to vector<8x1xf32>
    %320 = vector.broadcast %319 : vector<8x1xf32> to vector<8x8xf32>
    %321 = arith.mulf %320, %26 : vector<8x8xf32>
    %322 = arith.addf %318, %321 : vector<8x8xf32>
    %323 = vector.extract_strided_slice %281 {offsets = [0, 0], sizes = [8, 1], strides = [1, 1]} : vector<8x8xf32> to vector<8x1xf32>
    %324 = vector.broadcast %323 : vector<8x1xf32> to vector<8x8xf32>
    %325 = arith.mulf %324, %29 : vector<8x8xf32>
    %326 = vector.extract_strided_slice %281 {offsets = [0, 1], sizes = [8, 1], strides = [1, 1]} : vector<8x8xf32> to vector<8x1xf32>
    %327 = vector.broadcast %326 : vector<8x1xf32> to vector<8x8xf32>
    %328 = arith.mulf %327, %32 : vector<8x8xf32>
    %329 = arith.addf %325, %328 : vector<8x8xf32>
    %330 = vector.extract_strided_slice %281 {offsets = [0, 2], sizes = [8, 1], strides = [1, 1]} : vector<8x8xf32> to vector<8x1xf32>
    %331 = vector.broadcast %330 : vector<8x1xf32> to vector<8x8xf32>
    %332 = arith.mulf %331, %35 : vector<8x8xf32>
    %333 = arith.addf %329, %332 : vector<8x8xf32>
    %334 = vector.extract_strided_slice %281 {offsets = [0, 3], sizes = [8, 1], strides = [1, 1]} : vector<8x8xf32> to vector<8x1xf32>
    %335 = vector.broadcast %334 : vector<8x1xf32> to vector<8x8xf32>
    %336 = arith.mulf %335, %38 : vector<8x8xf32>
    %337 = arith.addf %333, %336 : vector<8x8xf32>
    %338 = vector.extract_strided_slice %281 {offsets = [0, 4], sizes = [8, 1], strides = [1, 1]} : vector<8x8xf32> to vector<8x1xf32>
    %339 = vector.broadcast %338 : vector<8x1xf32> to vector<8x8xf32>
    %340 = arith.mulf %339, %41 : vector<8x8xf32>
    %341 = arith.addf %337, %340 : vector<8x8xf32>
    %342 = vector.extract_strided_slice %281 {offsets = [0, 5], sizes = [8, 1], strides = [1, 1]} : vector<8x8xf32> to vector<8x1xf32>
    %343 = vector.broadcast %342 : vector<8x1xf32> to vector<8x8xf32>
    %344 = arith.mulf %343, %44 : vector<8x8xf32>
    %345 = arith.addf %341, %344 : vector<8x8xf32>
    %346 = vector.extract_strided_slice %281 {offsets = [0, 6], sizes = [8, 1], strides = [1, 1]} : vector<8x8xf32> to vector<8x1xf32>
    %347 = vector.broadcast %346 : vector<8x1xf32> to vector<8x8xf32>
    %348 = arith.mulf %347, %47 : vector<8x8xf32>
    %349 = arith.addf %345, %348 : vector<8x8xf32>
    %350 = vector.extract_strided_slice %281 {offsets = [0, 7], sizes = [8, 1], strides = [1, 1]} : vector<8x8xf32> to vector<8x1xf32>
    %351 = vector.broadcast %350 : vector<8x1xf32> to vector<8x8xf32>
    %352 = arith.mulf %351, %50 : vector<8x8xf32>
    %353 = arith.addf %349, %352 : vector<8x8xf32>
    %354 = arith.addf %322, %353 : vector<8x8xf32>
    %355 = math.tanh %354 : vector<8x8xf32>
    %cst_18 = arith.constant 0.000000e+00 : f32
    %356 = vector.broadcast %cst_18 : f32 to vector<8x8xf32>
    %357 = arith.maximumf %355, %356 : vector<8x8xf32>
    %358 = arith.mulf %357, %56 : vector<8x8xf32>
    %cst_19 = arith.constant dense<0.000000e+00> : vector<8xf32>
    %359 = vector.multi_reduction <add>, %358, %cst_19 [1] : vector<8x8xf32> to vector<8xf32>
    %360 = vector.shape_cast %359 : vector<8xf32> to vector<8x1xf32>
    %361 = arith.addf %360, %59 : vector<8x1xf32>
    %c11_i32 = arith.constant 11 : i32
    %362 = vector.broadcast %c11_i32 : i32 to vector<8x128xi32>
    %363 = arith.cmpi eq, %60, %362 : vector<8x128xi32>
    %364 = vector.shape_cast %361 : vector<8x1xf32> to vector<8x1xf32>
    %365 = vector.broadcast %364 : vector<8x1xf32> to vector<8x128xf32>
    %366 = arith.select %363, %365, %290 : vector<8x128xi1>, vector<8x128xf32>
    %367 = vector.extract_strided_slice %0 {offsets = [0, 4], sizes = [8, 1], strides = [1, 1]} : vector<8x32xf32> to vector<8x1xf32>
    %368 = vector.broadcast %367 : vector<8x1xf32> to vector<8x8xf32>
    %369 = arith.mulf %368, %5 : vector<8x8xf32>
    %370 = arith.addf %53, %369 : vector<8x8xf32>
    %371 = vector.extract_strided_slice %0 {offsets = [0, 5], sizes = [8, 1], strides = [1, 1]} : vector<8x32xf32> to vector<8x1xf32>
    %372 = vector.broadcast %371 : vector<8x1xf32> to vector<8x8xf32>
    %373 = arith.mulf %372, %8 : vector<8x8xf32>
    %374 = arith.addf %370, %373 : vector<8x8xf32>
    %375 = vector.extract_strided_slice %0 {offsets = [0, 6], sizes = [8, 1], strides = [1, 1]} : vector<8x32xf32> to vector<8x1xf32>
    %376 = vector.broadcast %375 : vector<8x1xf32> to vector<8x8xf32>
    %377 = arith.mulf %376, %11 : vector<8x8xf32>
    %378 = arith.addf %374, %377 : vector<8x8xf32>
    %379 = vector.extract_strided_slice %0 {offsets = [0, 7], sizes = [8, 1], strides = [1, 1]} : vector<8x32xf32> to vector<8x1xf32>
    %380 = vector.broadcast %379 : vector<8x1xf32> to vector<8x8xf32>
    %381 = arith.mulf %380, %14 : vector<8x8xf32>
    %382 = arith.addf %378, %381 : vector<8x8xf32>
    %383 = vector.extract_strided_slice %0 {offsets = [0, 8], sizes = [8, 1], strides = [1, 1]} : vector<8x32xf32> to vector<8x1xf32>
    %384 = vector.broadcast %383 : vector<8x1xf32> to vector<8x8xf32>
    %385 = arith.mulf %384, %17 : vector<8x8xf32>
    %386 = arith.addf %382, %385 : vector<8x8xf32>
    %387 = vector.extract_strided_slice %0 {offsets = [0, 9], sizes = [8, 1], strides = [1, 1]} : vector<8x32xf32> to vector<8x1xf32>
    %388 = vector.broadcast %387 : vector<8x1xf32> to vector<8x8xf32>
    %389 = arith.mulf %388, %20 : vector<8x8xf32>
    %390 = arith.addf %386, %389 : vector<8x8xf32>
    %391 = vector.extract_strided_slice %0 {offsets = [0, 10], sizes = [8, 1], strides = [1, 1]} : vector<8x32xf32> to vector<8x1xf32>
    %392 = vector.broadcast %391 : vector<8x1xf32> to vector<8x8xf32>
    %393 = arith.mulf %392, %23 : vector<8x8xf32>
    %394 = arith.addf %390, %393 : vector<8x8xf32>
    %395 = vector.extract_strided_slice %0 {offsets = [0, 11], sizes = [8, 1], strides = [1, 1]} : vector<8x32xf32> to vector<8x1xf32>
    %396 = vector.broadcast %395 : vector<8x1xf32> to vector<8x8xf32>
    %397 = arith.mulf %396, %26 : vector<8x8xf32>
    %398 = arith.addf %394, %397 : vector<8x8xf32>
    %399 = vector.extract_strided_slice %357 {offsets = [0, 0], sizes = [8, 1], strides = [1, 1]} : vector<8x8xf32> to vector<8x1xf32>
    %400 = vector.broadcast %399 : vector<8x1xf32> to vector<8x8xf32>
    %401 = arith.mulf %400, %29 : vector<8x8xf32>
    %402 = vector.extract_strided_slice %357 {offsets = [0, 1], sizes = [8, 1], strides = [1, 1]} : vector<8x8xf32> to vector<8x1xf32>
    %403 = vector.broadcast %402 : vector<8x1xf32> to vector<8x8xf32>
    %404 = arith.mulf %403, %32 : vector<8x8xf32>
    %405 = arith.addf %401, %404 : vector<8x8xf32>
    %406 = vector.extract_strided_slice %357 {offsets = [0, 2], sizes = [8, 1], strides = [1, 1]} : vector<8x8xf32> to vector<8x1xf32>
    %407 = vector.broadcast %406 : vector<8x1xf32> to vector<8x8xf32>
    %408 = arith.mulf %407, %35 : vector<8x8xf32>
    %409 = arith.addf %405, %408 : vector<8x8xf32>
    %410 = vector.extract_strided_slice %357 {offsets = [0, 3], sizes = [8, 1], strides = [1, 1]} : vector<8x8xf32> to vector<8x1xf32>
    %411 = vector.broadcast %410 : vector<8x1xf32> to vector<8x8xf32>
    %412 = arith.mulf %411, %38 : vector<8x8xf32>
    %413 = arith.addf %409, %412 : vector<8x8xf32>
    %414 = vector.extract_strided_slice %357 {offsets = [0, 4], sizes = [8, 1], strides = [1, 1]} : vector<8x8xf32> to vector<8x1xf32>
    %415 = vector.broadcast %414 : vector<8x1xf32> to vector<8x8xf32>
    %416 = arith.mulf %415, %41 : vector<8x8xf32>
    %417 = arith.addf %413, %416 : vector<8x8xf32>
    %418 = vector.extract_strided_slice %357 {offsets = [0, 5], sizes = [8, 1], strides = [1, 1]} : vector<8x8xf32> to vector<8x1xf32>
    %419 = vector.broadcast %418 : vector<8x1xf32> to vector<8x8xf32>
    %420 = arith.mulf %419, %44 : vector<8x8xf32>
    %421 = arith.addf %417, %420 : vector<8x8xf32>
    %422 = vector.extract_strided_slice %357 {offsets = [0, 6], sizes = [8, 1], strides = [1, 1]} : vector<8x8xf32> to vector<8x1xf32>
    %423 = vector.broadcast %422 : vector<8x1xf32> to vector<8x8xf32>
    %424 = arith.mulf %423, %47 : vector<8x8xf32>
    %425 = arith.addf %421, %424 : vector<8x8xf32>
    %426 = vector.extract_strided_slice %357 {offsets = [0, 7], sizes = [8, 1], strides = [1, 1]} : vector<8x8xf32> to vector<8x1xf32>
    %427 = vector.broadcast %426 : vector<8x1xf32> to vector<8x8xf32>
    %428 = arith.mulf %427, %50 : vector<8x8xf32>
    %429 = arith.addf %425, %428 : vector<8x8xf32>
    %430 = arith.addf %398, %429 : vector<8x8xf32>
    %431 = math.tanh %430 : vector<8x8xf32>
    %cst_20 = arith.constant 0.000000e+00 : f32
    %432 = vector.broadcast %cst_20 : f32 to vector<8x8xf32>
    %433 = arith.maximumf %431, %432 : vector<8x8xf32>
    %434 = arith.mulf %433, %56 : vector<8x8xf32>
    %cst_21 = arith.constant dense<0.000000e+00> : vector<8xf32>
    %435 = vector.multi_reduction <add>, %434, %cst_21 [1] : vector<8x8xf32> to vector<8xf32>
    %436 = vector.shape_cast %435 : vector<8xf32> to vector<8x1xf32>
    %437 = arith.addf %436, %59 : vector<8x1xf32>
    %c12_i32 = arith.constant 12 : i32
    %438 = vector.broadcast %c12_i32 : i32 to vector<8x128xi32>
    %439 = arith.cmpi eq, %60, %438 : vector<8x128xi32>
    %440 = vector.shape_cast %437 : vector<8x1xf32> to vector<8x1xf32>
    %441 = vector.broadcast %440 : vector<8x1xf32> to vector<8x128xf32>
    %442 = arith.select %439, %441, %366 : vector<8x128xi1>, vector<8x128xf32>
    %443 = vector.extract_strided_slice %0 {offsets = [0, 5], sizes = [8, 1], strides = [1, 1]} : vector<8x32xf32> to vector<8x1xf32>
    %444 = vector.broadcast %443 : vector<8x1xf32> to vector<8x8xf32>
    %445 = arith.mulf %444, %5 : vector<8x8xf32>
    %446 = arith.addf %53, %445 : vector<8x8xf32>
    %447 = vector.extract_strided_slice %0 {offsets = [0, 6], sizes = [8, 1], strides = [1, 1]} : vector<8x32xf32> to vector<8x1xf32>
    %448 = vector.broadcast %447 : vector<8x1xf32> to vector<8x8xf32>
    %449 = arith.mulf %448, %8 : vector<8x8xf32>
    %450 = arith.addf %446, %449 : vector<8x8xf32>
    %451 = vector.extract_strided_slice %0 {offsets = [0, 7], sizes = [8, 1], strides = [1, 1]} : vector<8x32xf32> to vector<8x1xf32>
    %452 = vector.broadcast %451 : vector<8x1xf32> to vector<8x8xf32>
    %453 = arith.mulf %452, %11 : vector<8x8xf32>
    %454 = arith.addf %450, %453 : vector<8x8xf32>
    %455 = vector.extract_strided_slice %0 {offsets = [0, 8], sizes = [8, 1], strides = [1, 1]} : vector<8x32xf32> to vector<8x1xf32>
    %456 = vector.broadcast %455 : vector<8x1xf32> to vector<8x8xf32>
    %457 = arith.mulf %456, %14 : vector<8x8xf32>
    %458 = arith.addf %454, %457 : vector<8x8xf32>
    %459 = vector.extract_strided_slice %0 {offsets = [0, 9], sizes = [8, 1], strides = [1, 1]} : vector<8x32xf32> to vector<8x1xf32>
    %460 = vector.broadcast %459 : vector<8x1xf32> to vector<8x8xf32>
    %461 = arith.mulf %460, %17 : vector<8x8xf32>
    %462 = arith.addf %458, %461 : vector<8x8xf32>
    %463 = vector.extract_strided_slice %0 {offsets = [0, 10], sizes = [8, 1], strides = [1, 1]} : vector<8x32xf32> to vector<8x1xf32>
    %464 = vector.broadcast %463 : vector<8x1xf32> to vector<8x8xf32>
    %465 = arith.mulf %464, %20 : vector<8x8xf32>
    %466 = arith.addf %462, %465 : vector<8x8xf32>
    %467 = vector.extract_strided_slice %0 {offsets = [0, 11], sizes = [8, 1], strides = [1, 1]} : vector<8x32xf32> to vector<8x1xf32>
    %468 = vector.broadcast %467 : vector<8x1xf32> to vector<8x8xf32>
    %469 = arith.mulf %468, %23 : vector<8x8xf32>
    %470 = arith.addf %466, %469 : vector<8x8xf32>
    %471 = vector.extract_strided_slice %0 {offsets = [0, 12], sizes = [8, 1], strides = [1, 1]} : vector<8x32xf32> to vector<8x1xf32>
    %472 = vector.broadcast %471 : vector<8x1xf32> to vector<8x8xf32>
    %473 = arith.mulf %472, %26 : vector<8x8xf32>
    %474 = arith.addf %470, %473 : vector<8x8xf32>
    %475 = vector.extract_strided_slice %433 {offsets = [0, 0], sizes = [8, 1], strides = [1, 1]} : vector<8x8xf32> to vector<8x1xf32>
    %476 = vector.broadcast %475 : vector<8x1xf32> to vector<8x8xf32>
    %477 = arith.mulf %476, %29 : vector<8x8xf32>
    %478 = vector.extract_strided_slice %433 {offsets = [0, 1], sizes = [8, 1], strides = [1, 1]} : vector<8x8xf32> to vector<8x1xf32>
    %479 = vector.broadcast %478 : vector<8x1xf32> to vector<8x8xf32>
    %480 = arith.mulf %479, %32 : vector<8x8xf32>
    %481 = arith.addf %477, %480 : vector<8x8xf32>
    %482 = vector.extract_strided_slice %433 {offsets = [0, 2], sizes = [8, 1], strides = [1, 1]} : vector<8x8xf32> to vector<8x1xf32>
    %483 = vector.broadcast %482 : vector<8x1xf32> to vector<8x8xf32>
    %484 = arith.mulf %483, %35 : vector<8x8xf32>
    %485 = arith.addf %481, %484 : vector<8x8xf32>
    %486 = vector.extract_strided_slice %433 {offsets = [0, 3], sizes = [8, 1], strides = [1, 1]} : vector<8x8xf32> to vector<8x1xf32>
    %487 = vector.broadcast %486 : vector<8x1xf32> to vector<8x8xf32>
    %488 = arith.mulf %487, %38 : vector<8x8xf32>
    %489 = arith.addf %485, %488 : vector<8x8xf32>
    %490 = vector.extract_strided_slice %433 {offsets = [0, 4], sizes = [8, 1], strides = [1, 1]} : vector<8x8xf32> to vector<8x1xf32>
    %491 = vector.broadcast %490 : vector<8x1xf32> to vector<8x8xf32>
    %492 = arith.mulf %491, %41 : vector<8x8xf32>
    %493 = arith.addf %489, %492 : vector<8x8xf32>
    %494 = vector.extract_strided_slice %433 {offsets = [0, 5], sizes = [8, 1], strides = [1, 1]} : vector<8x8xf32> to vector<8x1xf32>
    %495 = vector.broadcast %494 : vector<8x1xf32> to vector<8x8xf32>
    %496 = arith.mulf %495, %44 : vector<8x8xf32>
    %497 = arith.addf %493, %496 : vector<8x8xf32>
    %498 = vector.extract_strided_slice %433 {offsets = [0, 6], sizes = [8, 1], strides = [1, 1]} : vector<8x8xf32> to vector<8x1xf32>
    %499 = vector.broadcast %498 : vector<8x1xf32> to vector<8x8xf32>
    %500 = arith.mulf %499, %47 : vector<8x8xf32>
    %501 = arith.addf %497, %500 : vector<8x8xf32>
    %502 = vector.extract_strided_slice %433 {offsets = [0, 7], sizes = [8, 1], strides = [1, 1]} : vector<8x8xf32> to vector<8x1xf32>
    %503 = vector.broadcast %502 : vector<8x1xf32> to vector<8x8xf32>
    %504 = arith.mulf %503, %50 : vector<8x8xf32>
    %505 = arith.addf %501, %504 : vector<8x8xf32>
    %506 = arith.addf %474, %505 : vector<8x8xf32>
    %507 = math.tanh %506 : vector<8x8xf32>
    %cst_22 = arith.constant 0.000000e+00 : f32
    %508 = vector.broadcast %cst_22 : f32 to vector<8x8xf32>
    %509 = arith.maximumf %507, %508 : vector<8x8xf32>
    %510 = arith.mulf %509, %56 : vector<8x8xf32>
    %cst_23 = arith.constant dense<0.000000e+00> : vector<8xf32>
    %511 = vector.multi_reduction <add>, %510, %cst_23 [1] : vector<8x8xf32> to vector<8xf32>
    %512 = vector.shape_cast %511 : vector<8xf32> to vector<8x1xf32>
    %513 = arith.addf %512, %59 : vector<8x1xf32>
    %c13_i32 = arith.constant 13 : i32
    %514 = vector.broadcast %c13_i32 : i32 to vector<8x128xi32>
    %515 = arith.cmpi eq, %60, %514 : vector<8x128xi32>
    %516 = vector.shape_cast %513 : vector<8x1xf32> to vector<8x1xf32>
    %517 = vector.broadcast %516 : vector<8x1xf32> to vector<8x128xf32>
    %518 = arith.select %515, %517, %442 : vector<8x128xi1>, vector<8x128xf32>
    %519 = vector.extract_strided_slice %0 {offsets = [0, 6], sizes = [8, 1], strides = [1, 1]} : vector<8x32xf32> to vector<8x1xf32>
    %520 = vector.broadcast %519 : vector<8x1xf32> to vector<8x8xf32>
    %521 = arith.mulf %520, %5 : vector<8x8xf32>
    %522 = arith.addf %53, %521 : vector<8x8xf32>
    %523 = vector.extract_strided_slice %0 {offsets = [0, 7], sizes = [8, 1], strides = [1, 1]} : vector<8x32xf32> to vector<8x1xf32>
    %524 = vector.broadcast %523 : vector<8x1xf32> to vector<8x8xf32>
    %525 = arith.mulf %524, %8 : vector<8x8xf32>
    %526 = arith.addf %522, %525 : vector<8x8xf32>
    %527 = vector.extract_strided_slice %0 {offsets = [0, 8], sizes = [8, 1], strides = [1, 1]} : vector<8x32xf32> to vector<8x1xf32>
    %528 = vector.broadcast %527 : vector<8x1xf32> to vector<8x8xf32>
    %529 = arith.mulf %528, %11 : vector<8x8xf32>
    %530 = arith.addf %526, %529 : vector<8x8xf32>
    %531 = vector.extract_strided_slice %0 {offsets = [0, 9], sizes = [8, 1], strides = [1, 1]} : vector<8x32xf32> to vector<8x1xf32>
    %532 = vector.broadcast %531 : vector<8x1xf32> to vector<8x8xf32>
    %533 = arith.mulf %532, %14 : vector<8x8xf32>
    %534 = arith.addf %530, %533 : vector<8x8xf32>
    %535 = vector.extract_strided_slice %0 {offsets = [0, 10], sizes = [8, 1], strides = [1, 1]} : vector<8x32xf32> to vector<8x1xf32>
    %536 = vector.broadcast %535 : vector<8x1xf32> to vector<8x8xf32>
    %537 = arith.mulf %536, %17 : vector<8x8xf32>
    %538 = arith.addf %534, %537 : vector<8x8xf32>
    %539 = vector.extract_strided_slice %0 {offsets = [0, 11], sizes = [8, 1], strides = [1, 1]} : vector<8x32xf32> to vector<8x1xf32>
    %540 = vector.broadcast %539 : vector<8x1xf32> to vector<8x8xf32>
    %541 = arith.mulf %540, %20 : vector<8x8xf32>
    %542 = arith.addf %538, %541 : vector<8x8xf32>
    %543 = vector.extract_strided_slice %0 {offsets = [0, 12], sizes = [8, 1], strides = [1, 1]} : vector<8x32xf32> to vector<8x1xf32>
    %544 = vector.broadcast %543 : vector<8x1xf32> to vector<8x8xf32>
    %545 = arith.mulf %544, %23 : vector<8x8xf32>
    %546 = arith.addf %542, %545 : vector<8x8xf32>
    %547 = vector.extract_strided_slice %0 {offsets = [0, 13], sizes = [8, 1], strides = [1, 1]} : vector<8x32xf32> to vector<8x1xf32>
    %548 = vector.broadcast %547 : vector<8x1xf32> to vector<8x8xf32>
    %549 = arith.mulf %548, %26 : vector<8x8xf32>
    %550 = arith.addf %546, %549 : vector<8x8xf32>
    %551 = vector.extract_strided_slice %509 {offsets = [0, 0], sizes = [8, 1], strides = [1, 1]} : vector<8x8xf32> to vector<8x1xf32>
    %552 = vector.broadcast %551 : vector<8x1xf32> to vector<8x8xf32>
    %553 = arith.mulf %552, %29 : vector<8x8xf32>
    %554 = vector.extract_strided_slice %509 {offsets = [0, 1], sizes = [8, 1], strides = [1, 1]} : vector<8x8xf32> to vector<8x1xf32>
    %555 = vector.broadcast %554 : vector<8x1xf32> to vector<8x8xf32>
    %556 = arith.mulf %555, %32 : vector<8x8xf32>
    %557 = arith.addf %553, %556 : vector<8x8xf32>
    %558 = vector.extract_strided_slice %509 {offsets = [0, 2], sizes = [8, 1], strides = [1, 1]} : vector<8x8xf32> to vector<8x1xf32>
    %559 = vector.broadcast %558 : vector<8x1xf32> to vector<8x8xf32>
    %560 = arith.mulf %559, %35 : vector<8x8xf32>
    %561 = arith.addf %557, %560 : vector<8x8xf32>
    %562 = vector.extract_strided_slice %509 {offsets = [0, 3], sizes = [8, 1], strides = [1, 1]} : vector<8x8xf32> to vector<8x1xf32>
    %563 = vector.broadcast %562 : vector<8x1xf32> to vector<8x8xf32>
    %564 = arith.mulf %563, %38 : vector<8x8xf32>
    %565 = arith.addf %561, %564 : vector<8x8xf32>
    %566 = vector.extract_strided_slice %509 {offsets = [0, 4], sizes = [8, 1], strides = [1, 1]} : vector<8x8xf32> to vector<8x1xf32>
    %567 = vector.broadcast %566 : vector<8x1xf32> to vector<8x8xf32>
    %568 = arith.mulf %567, %41 : vector<8x8xf32>
    %569 = arith.addf %565, %568 : vector<8x8xf32>
    %570 = vector.extract_strided_slice %509 {offsets = [0, 5], sizes = [8, 1], strides = [1, 1]} : vector<8x8xf32> to vector<8x1xf32>
    %571 = vector.broadcast %570 : vector<8x1xf32> to vector<8x8xf32>
    %572 = arith.mulf %571, %44 : vector<8x8xf32>
    %573 = arith.addf %569, %572 : vector<8x8xf32>
    %574 = vector.extract_strided_slice %509 {offsets = [0, 6], sizes = [8, 1], strides = [1, 1]} : vector<8x8xf32> to vector<8x1xf32>
    %575 = vector.broadcast %574 : vector<8x1xf32> to vector<8x8xf32>
    %576 = arith.mulf %575, %47 : vector<8x8xf32>
    %577 = arith.addf %573, %576 : vector<8x8xf32>
    %578 = vector.extract_strided_slice %509 {offsets = [0, 7], sizes = [8, 1], strides = [1, 1]} : vector<8x8xf32> to vector<8x1xf32>
    %579 = vector.broadcast %578 : vector<8x1xf32> to vector<8x8xf32>
    %580 = arith.mulf %579, %50 : vector<8x8xf32>
    %581 = arith.addf %577, %580 : vector<8x8xf32>
    %582 = arith.addf %550, %581 : vector<8x8xf32>
    %583 = math.tanh %582 : vector<8x8xf32>
    %cst_24 = arith.constant 0.000000e+00 : f32
    %584 = vector.broadcast %cst_24 : f32 to vector<8x8xf32>
    %585 = arith.maximumf %583, %584 : vector<8x8xf32>
    %586 = arith.mulf %585, %56 : vector<8x8xf32>
    %cst_25 = arith.constant dense<0.000000e+00> : vector<8xf32>
    %587 = vector.multi_reduction <add>, %586, %cst_25 [1] : vector<8x8xf32> to vector<8xf32>
    %588 = vector.shape_cast %587 : vector<8xf32> to vector<8x1xf32>
    %589 = arith.addf %588, %59 : vector<8x1xf32>
    %c14_i32 = arith.constant 14 : i32
    %590 = vector.broadcast %c14_i32 : i32 to vector<8x128xi32>
    %591 = arith.cmpi eq, %60, %590 : vector<8x128xi32>
    %592 = vector.shape_cast %589 : vector<8x1xf32> to vector<8x1xf32>
    %593 = vector.broadcast %592 : vector<8x1xf32> to vector<8x128xf32>
    %594 = arith.select %591, %593, %518 : vector<8x128xi1>, vector<8x128xf32>
    %595 = vector.extract_strided_slice %0 {offsets = [0, 7], sizes = [8, 1], strides = [1, 1]} : vector<8x32xf32> to vector<8x1xf32>
    %596 = vector.broadcast %595 : vector<8x1xf32> to vector<8x8xf32>
    %597 = arith.mulf %596, %5 : vector<8x8xf32>
    %598 = arith.addf %53, %597 : vector<8x8xf32>
    %599 = vector.extract_strided_slice %0 {offsets = [0, 8], sizes = [8, 1], strides = [1, 1]} : vector<8x32xf32> to vector<8x1xf32>
    %600 = vector.broadcast %599 : vector<8x1xf32> to vector<8x8xf32>
    %601 = arith.mulf %600, %8 : vector<8x8xf32>
    %602 = arith.addf %598, %601 : vector<8x8xf32>
    %603 = vector.extract_strided_slice %0 {offsets = [0, 9], sizes = [8, 1], strides = [1, 1]} : vector<8x32xf32> to vector<8x1xf32>
    %604 = vector.broadcast %603 : vector<8x1xf32> to vector<8x8xf32>
    %605 = arith.mulf %604, %11 : vector<8x8xf32>
    %606 = arith.addf %602, %605 : vector<8x8xf32>
    %607 = vector.extract_strided_slice %0 {offsets = [0, 10], sizes = [8, 1], strides = [1, 1]} : vector<8x32xf32> to vector<8x1xf32>
    %608 = vector.broadcast %607 : vector<8x1xf32> to vector<8x8xf32>
    %609 = arith.mulf %608, %14 : vector<8x8xf32>
    %610 = arith.addf %606, %609 : vector<8x8xf32>
    %611 = vector.extract_strided_slice %0 {offsets = [0, 11], sizes = [8, 1], strides = [1, 1]} : vector<8x32xf32> to vector<8x1xf32>
    %612 = vector.broadcast %611 : vector<8x1xf32> to vector<8x8xf32>
    %613 = arith.mulf %612, %17 : vector<8x8xf32>
    %614 = arith.addf %610, %613 : vector<8x8xf32>
    %615 = vector.extract_strided_slice %0 {offsets = [0, 12], sizes = [8, 1], strides = [1, 1]} : vector<8x32xf32> to vector<8x1xf32>
    %616 = vector.broadcast %615 : vector<8x1xf32> to vector<8x8xf32>
    %617 = arith.mulf %616, %20 : vector<8x8xf32>
    %618 = arith.addf %614, %617 : vector<8x8xf32>
    %619 = vector.extract_strided_slice %0 {offsets = [0, 13], sizes = [8, 1], strides = [1, 1]} : vector<8x32xf32> to vector<8x1xf32>
    %620 = vector.broadcast %619 : vector<8x1xf32> to vector<8x8xf32>
    %621 = arith.mulf %620, %23 : vector<8x8xf32>
    %622 = arith.addf %618, %621 : vector<8x8xf32>
    %623 = vector.extract_strided_slice %0 {offsets = [0, 14], sizes = [8, 1], strides = [1, 1]} : vector<8x32xf32> to vector<8x1xf32>
    %624 = vector.broadcast %623 : vector<8x1xf32> to vector<8x8xf32>
    %625 = arith.mulf %624, %26 : vector<8x8xf32>
    %626 = arith.addf %622, %625 : vector<8x8xf32>
    %627 = vector.extract_strided_slice %585 {offsets = [0, 0], sizes = [8, 1], strides = [1, 1]} : vector<8x8xf32> to vector<8x1xf32>
    %628 = vector.broadcast %627 : vector<8x1xf32> to vector<8x8xf32>
    %629 = arith.mulf %628, %29 : vector<8x8xf32>
    %630 = vector.extract_strided_slice %585 {offsets = [0, 1], sizes = [8, 1], strides = [1, 1]} : vector<8x8xf32> to vector<8x1xf32>
    %631 = vector.broadcast %630 : vector<8x1xf32> to vector<8x8xf32>
    %632 = arith.mulf %631, %32 : vector<8x8xf32>
    %633 = arith.addf %629, %632 : vector<8x8xf32>
    %634 = vector.extract_strided_slice %585 {offsets = [0, 2], sizes = [8, 1], strides = [1, 1]} : vector<8x8xf32> to vector<8x1xf32>
    %635 = vector.broadcast %634 : vector<8x1xf32> to vector<8x8xf32>
    %636 = arith.mulf %635, %35 : vector<8x8xf32>
    %637 = arith.addf %633, %636 : vector<8x8xf32>
    %638 = vector.extract_strided_slice %585 {offsets = [0, 3], sizes = [8, 1], strides = [1, 1]} : vector<8x8xf32> to vector<8x1xf32>
    %639 = vector.broadcast %638 : vector<8x1xf32> to vector<8x8xf32>
    %640 = arith.mulf %639, %38 : vector<8x8xf32>
    %641 = arith.addf %637, %640 : vector<8x8xf32>
    %642 = vector.extract_strided_slice %585 {offsets = [0, 4], sizes = [8, 1], strides = [1, 1]} : vector<8x8xf32> to vector<8x1xf32>
    %643 = vector.broadcast %642 : vector<8x1xf32> to vector<8x8xf32>
    %644 = arith.mulf %643, %41 : vector<8x8xf32>
    %645 = arith.addf %641, %644 : vector<8x8xf32>
    %646 = vector.extract_strided_slice %585 {offsets = [0, 5], sizes = [8, 1], strides = [1, 1]} : vector<8x8xf32> to vector<8x1xf32>
    %647 = vector.broadcast %646 : vector<8x1xf32> to vector<8x8xf32>
    %648 = arith.mulf %647, %44 : vector<8x8xf32>
    %649 = arith.addf %645, %648 : vector<8x8xf32>
    %650 = vector.extract_strided_slice %585 {offsets = [0, 6], sizes = [8, 1], strides = [1, 1]} : vector<8x8xf32> to vector<8x1xf32>
    %651 = vector.broadcast %650 : vector<8x1xf32> to vector<8x8xf32>
    %652 = arith.mulf %651, %47 : vector<8x8xf32>
    %653 = arith.addf %649, %652 : vector<8x8xf32>
    %654 = vector.extract_strided_slice %585 {offsets = [0, 7], sizes = [8, 1], strides = [1, 1]} : vector<8x8xf32> to vector<8x1xf32>
    %655 = vector.broadcast %654 : vector<8x1xf32> to vector<8x8xf32>
    %656 = arith.mulf %655, %50 : vector<8x8xf32>
    %657 = arith.addf %653, %656 : vector<8x8xf32>
    %658 = arith.addf %626, %657 : vector<8x8xf32>
    %659 = math.tanh %658 : vector<8x8xf32>
    %cst_26 = arith.constant 0.000000e+00 : f32
    %660 = vector.broadcast %cst_26 : f32 to vector<8x8xf32>
    %661 = arith.maximumf %659, %660 : vector<8x8xf32>
    %662 = arith.mulf %661, %56 : vector<8x8xf32>
    %cst_27 = arith.constant dense<0.000000e+00> : vector<8xf32>
    %663 = vector.multi_reduction <add>, %662, %cst_27 [1] : vector<8x8xf32> to vector<8xf32>
    %664 = vector.shape_cast %663 : vector<8xf32> to vector<8x1xf32>
    %665 = arith.addf %664, %59 : vector<8x1xf32>
    %c15_i32 = arith.constant 15 : i32
    %666 = vector.broadcast %c15_i32 : i32 to vector<8x128xi32>
    %667 = arith.cmpi eq, %60, %666 : vector<8x128xi32>
    %668 = vector.shape_cast %665 : vector<8x1xf32> to vector<8x1xf32>
    %669 = vector.broadcast %668 : vector<8x1xf32> to vector<8x128xf32>
    %670 = arith.select %667, %669, %594 : vector<8x128xi1>, vector<8x128xf32>
    %671 = vector.extract_strided_slice %0 {offsets = [0, 8], sizes = [8, 1], strides = [1, 1]} : vector<8x32xf32> to vector<8x1xf32>
    %672 = vector.broadcast %671 : vector<8x1xf32> to vector<8x8xf32>
    %673 = arith.mulf %672, %5 : vector<8x8xf32>
    %674 = arith.addf %53, %673 : vector<8x8xf32>
    %675 = vector.extract_strided_slice %0 {offsets = [0, 9], sizes = [8, 1], strides = [1, 1]} : vector<8x32xf32> to vector<8x1xf32>
    %676 = vector.broadcast %675 : vector<8x1xf32> to vector<8x8xf32>
    %677 = arith.mulf %676, %8 : vector<8x8xf32>
    %678 = arith.addf %674, %677 : vector<8x8xf32>
    %679 = vector.extract_strided_slice %0 {offsets = [0, 10], sizes = [8, 1], strides = [1, 1]} : vector<8x32xf32> to vector<8x1xf32>
    %680 = vector.broadcast %679 : vector<8x1xf32> to vector<8x8xf32>
    %681 = arith.mulf %680, %11 : vector<8x8xf32>
    %682 = arith.addf %678, %681 : vector<8x8xf32>
    %683 = vector.extract_strided_slice %0 {offsets = [0, 11], sizes = [8, 1], strides = [1, 1]} : vector<8x32xf32> to vector<8x1xf32>
    %684 = vector.broadcast %683 : vector<8x1xf32> to vector<8x8xf32>
    %685 = arith.mulf %684, %14 : vector<8x8xf32>
    %686 = arith.addf %682, %685 : vector<8x8xf32>
    %687 = vector.extract_strided_slice %0 {offsets = [0, 12], sizes = [8, 1], strides = [1, 1]} : vector<8x32xf32> to vector<8x1xf32>
    %688 = vector.broadcast %687 : vector<8x1xf32> to vector<8x8xf32>
    %689 = arith.mulf %688, %17 : vector<8x8xf32>
    %690 = arith.addf %686, %689 : vector<8x8xf32>
    %691 = vector.extract_strided_slice %0 {offsets = [0, 13], sizes = [8, 1], strides = [1, 1]} : vector<8x32xf32> to vector<8x1xf32>
    %692 = vector.broadcast %691 : vector<8x1xf32> to vector<8x8xf32>
    %693 = arith.mulf %692, %20 : vector<8x8xf32>
    %694 = arith.addf %690, %693 : vector<8x8xf32>
    %695 = vector.extract_strided_slice %0 {offsets = [0, 14], sizes = [8, 1], strides = [1, 1]} : vector<8x32xf32> to vector<8x1xf32>
    %696 = vector.broadcast %695 : vector<8x1xf32> to vector<8x8xf32>
    %697 = arith.mulf %696, %23 : vector<8x8xf32>
    %698 = arith.addf %694, %697 : vector<8x8xf32>
    %699 = vector.extract_strided_slice %0 {offsets = [0, 15], sizes = [8, 1], strides = [1, 1]} : vector<8x32xf32> to vector<8x1xf32>
    %700 = vector.broadcast %699 : vector<8x1xf32> to vector<8x8xf32>
    %701 = arith.mulf %700, %26 : vector<8x8xf32>
    %702 = arith.addf %698, %701 : vector<8x8xf32>
    %703 = vector.extract_strided_slice %661 {offsets = [0, 0], sizes = [8, 1], strides = [1, 1]} : vector<8x8xf32> to vector<8x1xf32>
    %704 = vector.broadcast %703 : vector<8x1xf32> to vector<8x8xf32>
    %705 = arith.mulf %704, %29 : vector<8x8xf32>
    %706 = vector.extract_strided_slice %661 {offsets = [0, 1], sizes = [8, 1], strides = [1, 1]} : vector<8x8xf32> to vector<8x1xf32>
    %707 = vector.broadcast %706 : vector<8x1xf32> to vector<8x8xf32>
    %708 = arith.mulf %707, %32 : vector<8x8xf32>
    %709 = arith.addf %705, %708 : vector<8x8xf32>
    %710 = vector.extract_strided_slice %661 {offsets = [0, 2], sizes = [8, 1], strides = [1, 1]} : vector<8x8xf32> to vector<8x1xf32>
    %711 = vector.broadcast %710 : vector<8x1xf32> to vector<8x8xf32>
    %712 = arith.mulf %711, %35 : vector<8x8xf32>
    %713 = arith.addf %709, %712 : vector<8x8xf32>
    %714 = vector.extract_strided_slice %661 {offsets = [0, 3], sizes = [8, 1], strides = [1, 1]} : vector<8x8xf32> to vector<8x1xf32>
    %715 = vector.broadcast %714 : vector<8x1xf32> to vector<8x8xf32>
    %716 = arith.mulf %715, %38 : vector<8x8xf32>
    %717 = arith.addf %713, %716 : vector<8x8xf32>
    %718 = vector.extract_strided_slice %661 {offsets = [0, 4], sizes = [8, 1], strides = [1, 1]} : vector<8x8xf32> to vector<8x1xf32>
    %719 = vector.broadcast %718 : vector<8x1xf32> to vector<8x8xf32>
    %720 = arith.mulf %719, %41 : vector<8x8xf32>
    %721 = arith.addf %717, %720 : vector<8x8xf32>
    %722 = vector.extract_strided_slice %661 {offsets = [0, 5], sizes = [8, 1], strides = [1, 1]} : vector<8x8xf32> to vector<8x1xf32>
    %723 = vector.broadcast %722 : vector<8x1xf32> to vector<8x8xf32>
    %724 = arith.mulf %723, %44 : vector<8x8xf32>
    %725 = arith.addf %721, %724 : vector<8x8xf32>
    %726 = vector.extract_strided_slice %661 {offsets = [0, 6], sizes = [8, 1], strides = [1, 1]} : vector<8x8xf32> to vector<8x1xf32>
    %727 = vector.broadcast %726 : vector<8x1xf32> to vector<8x8xf32>
    %728 = arith.mulf %727, %47 : vector<8x8xf32>
    %729 = arith.addf %725, %728 : vector<8x8xf32>
    %730 = vector.extract_strided_slice %661 {offsets = [0, 7], sizes = [8, 1], strides = [1, 1]} : vector<8x8xf32> to vector<8x1xf32>
    %731 = vector.broadcast %730 : vector<8x1xf32> to vector<8x8xf32>
    %732 = arith.mulf %731, %50 : vector<8x8xf32>
    %733 = arith.addf %729, %732 : vector<8x8xf32>
    %734 = arith.addf %702, %733 : vector<8x8xf32>
    %735 = math.tanh %734 : vector<8x8xf32>
    %cst_28 = arith.constant 0.000000e+00 : f32
    %736 = vector.broadcast %cst_28 : f32 to vector<8x8xf32>
    %737 = arith.maximumf %735, %736 : vector<8x8xf32>
    %738 = arith.mulf %737, %56 : vector<8x8xf32>
    %cst_29 = arith.constant dense<0.000000e+00> : vector<8xf32>
    %739 = vector.multi_reduction <add>, %738, %cst_29 [1] : vector<8x8xf32> to vector<8xf32>
    %740 = vector.shape_cast %739 : vector<8xf32> to vector<8x1xf32>
    %741 = arith.addf %740, %59 : vector<8x1xf32>
    %c16_i32 = arith.constant 16 : i32
    %742 = vector.broadcast %c16_i32 : i32 to vector<8x128xi32>
    %743 = arith.cmpi eq, %60, %742 : vector<8x128xi32>
    %744 = vector.shape_cast %741 : vector<8x1xf32> to vector<8x1xf32>
    %745 = vector.broadcast %744 : vector<8x1xf32> to vector<8x128xf32>
    %746 = arith.select %743, %745, %670 : vector<8x128xi1>, vector<8x128xf32>
    %747 = vector.extract_strided_slice %0 {offsets = [0, 9], sizes = [8, 1], strides = [1, 1]} : vector<8x32xf32> to vector<8x1xf32>
    %748 = vector.broadcast %747 : vector<8x1xf32> to vector<8x8xf32>
    %749 = arith.mulf %748, %5 : vector<8x8xf32>
    %750 = arith.addf %53, %749 : vector<8x8xf32>
    %751 = vector.extract_strided_slice %0 {offsets = [0, 10], sizes = [8, 1], strides = [1, 1]} : vector<8x32xf32> to vector<8x1xf32>
    %752 = vector.broadcast %751 : vector<8x1xf32> to vector<8x8xf32>
    %753 = arith.mulf %752, %8 : vector<8x8xf32>
    %754 = arith.addf %750, %753 : vector<8x8xf32>
    %755 = vector.extract_strided_slice %0 {offsets = [0, 11], sizes = [8, 1], strides = [1, 1]} : vector<8x32xf32> to vector<8x1xf32>
    %756 = vector.broadcast %755 : vector<8x1xf32> to vector<8x8xf32>
    %757 = arith.mulf %756, %11 : vector<8x8xf32>
    %758 = arith.addf %754, %757 : vector<8x8xf32>
    %759 = vector.extract_strided_slice %0 {offsets = [0, 12], sizes = [8, 1], strides = [1, 1]} : vector<8x32xf32> to vector<8x1xf32>
    %760 = vector.broadcast %759 : vector<8x1xf32> to vector<8x8xf32>
    %761 = arith.mulf %760, %14 : vector<8x8xf32>
    %762 = arith.addf %758, %761 : vector<8x8xf32>
    %763 = vector.extract_strided_slice %0 {offsets = [0, 13], sizes = [8, 1], strides = [1, 1]} : vector<8x32xf32> to vector<8x1xf32>
    %764 = vector.broadcast %763 : vector<8x1xf32> to vector<8x8xf32>
    %765 = arith.mulf %764, %17 : vector<8x8xf32>
    %766 = arith.addf %762, %765 : vector<8x8xf32>
    %767 = vector.extract_strided_slice %0 {offsets = [0, 14], sizes = [8, 1], strides = [1, 1]} : vector<8x32xf32> to vector<8x1xf32>
    %768 = vector.broadcast %767 : vector<8x1xf32> to vector<8x8xf32>
    %769 = arith.mulf %768, %20 : vector<8x8xf32>
    %770 = arith.addf %766, %769 : vector<8x8xf32>
    %771 = vector.extract_strided_slice %0 {offsets = [0, 15], sizes = [8, 1], strides = [1, 1]} : vector<8x32xf32> to vector<8x1xf32>
    %772 = vector.broadcast %771 : vector<8x1xf32> to vector<8x8xf32>
    %773 = arith.mulf %772, %23 : vector<8x8xf32>
    %774 = arith.addf %770, %773 : vector<8x8xf32>
    %775 = vector.extract_strided_slice %0 {offsets = [0, 16], sizes = [8, 1], strides = [1, 1]} : vector<8x32xf32> to vector<8x1xf32>
    %776 = vector.broadcast %775 : vector<8x1xf32> to vector<8x8xf32>
    %777 = arith.mulf %776, %26 : vector<8x8xf32>
    %778 = arith.addf %774, %777 : vector<8x8xf32>
    %779 = vector.extract_strided_slice %737 {offsets = [0, 0], sizes = [8, 1], strides = [1, 1]} : vector<8x8xf32> to vector<8x1xf32>
    %780 = vector.broadcast %779 : vector<8x1xf32> to vector<8x8xf32>
    %781 = arith.mulf %780, %29 : vector<8x8xf32>
    %782 = vector.extract_strided_slice %737 {offsets = [0, 1], sizes = [8, 1], strides = [1, 1]} : vector<8x8xf32> to vector<8x1xf32>
    %783 = vector.broadcast %782 : vector<8x1xf32> to vector<8x8xf32>
    %784 = arith.mulf %783, %32 : vector<8x8xf32>
    %785 = arith.addf %781, %784 : vector<8x8xf32>
    %786 = vector.extract_strided_slice %737 {offsets = [0, 2], sizes = [8, 1], strides = [1, 1]} : vector<8x8xf32> to vector<8x1xf32>
    %787 = vector.broadcast %786 : vector<8x1xf32> to vector<8x8xf32>
    %788 = arith.mulf %787, %35 : vector<8x8xf32>
    %789 = arith.addf %785, %788 : vector<8x8xf32>
    %790 = vector.extract_strided_slice %737 {offsets = [0, 3], sizes = [8, 1], strides = [1, 1]} : vector<8x8xf32> to vector<8x1xf32>
    %791 = vector.broadcast %790 : vector<8x1xf32> to vector<8x8xf32>
    %792 = arith.mulf %791, %38 : vector<8x8xf32>
    %793 = arith.addf %789, %792 : vector<8x8xf32>
    %794 = vector.extract_strided_slice %737 {offsets = [0, 4], sizes = [8, 1], strides = [1, 1]} : vector<8x8xf32> to vector<8x1xf32>
    %795 = vector.broadcast %794 : vector<8x1xf32> to vector<8x8xf32>
    %796 = arith.mulf %795, %41 : vector<8x8xf32>
    %797 = arith.addf %793, %796 : vector<8x8xf32>
    %798 = vector.extract_strided_slice %737 {offsets = [0, 5], sizes = [8, 1], strides = [1, 1]} : vector<8x8xf32> to vector<8x1xf32>
    %799 = vector.broadcast %798 : vector<8x1xf32> to vector<8x8xf32>
    %800 = arith.mulf %799, %44 : vector<8x8xf32>
    %801 = arith.addf %797, %800 : vector<8x8xf32>
    %802 = vector.extract_strided_slice %737 {offsets = [0, 6], sizes = [8, 1], strides = [1, 1]} : vector<8x8xf32> to vector<8x1xf32>
    %803 = vector.broadcast %802 : vector<8x1xf32> to vector<8x8xf32>
    %804 = arith.mulf %803, %47 : vector<8x8xf32>
    %805 = arith.addf %801, %804 : vector<8x8xf32>
    %806 = vector.extract_strided_slice %737 {offsets = [0, 7], sizes = [8, 1], strides = [1, 1]} : vector<8x8xf32> to vector<8x1xf32>
    %807 = vector.broadcast %806 : vector<8x1xf32> to vector<8x8xf32>
    %808 = arith.mulf %807, %50 : vector<8x8xf32>
    %809 = arith.addf %805, %808 : vector<8x8xf32>
    %810 = arith.addf %778, %809 : vector<8x8xf32>
    %811 = math.tanh %810 : vector<8x8xf32>
    %cst_30 = arith.constant 0.000000e+00 : f32
    %812 = vector.broadcast %cst_30 : f32 to vector<8x8xf32>
    %813 = arith.maximumf %811, %812 : vector<8x8xf32>
    %814 = arith.mulf %813, %56 : vector<8x8xf32>
    %cst_31 = arith.constant dense<0.000000e+00> : vector<8xf32>
    %815 = vector.multi_reduction <add>, %814, %cst_31 [1] : vector<8x8xf32> to vector<8xf32>
    %816 = vector.shape_cast %815 : vector<8xf32> to vector<8x1xf32>
    %817 = arith.addf %816, %59 : vector<8x1xf32>
    %c17_i32 = arith.constant 17 : i32
    %818 = vector.broadcast %c17_i32 : i32 to vector<8x128xi32>
    %819 = arith.cmpi eq, %60, %818 : vector<8x128xi32>
    %820 = vector.shape_cast %817 : vector<8x1xf32> to vector<8x1xf32>
    %821 = vector.broadcast %820 : vector<8x1xf32> to vector<8x128xf32>
    %822 = arith.select %819, %821, %746 : vector<8x128xi1>, vector<8x128xf32>
    %823 = vector.extract_strided_slice %0 {offsets = [0, 10], sizes = [8, 1], strides = [1, 1]} : vector<8x32xf32> to vector<8x1xf32>
    %824 = vector.broadcast %823 : vector<8x1xf32> to vector<8x8xf32>
    %825 = arith.mulf %824, %5 : vector<8x8xf32>
    %826 = arith.addf %53, %825 : vector<8x8xf32>
    %827 = vector.extract_strided_slice %0 {offsets = [0, 11], sizes = [8, 1], strides = [1, 1]} : vector<8x32xf32> to vector<8x1xf32>
    %828 = vector.broadcast %827 : vector<8x1xf32> to vector<8x8xf32>
    %829 = arith.mulf %828, %8 : vector<8x8xf32>
    %830 = arith.addf %826, %829 : vector<8x8xf32>
    %831 = vector.extract_strided_slice %0 {offsets = [0, 12], sizes = [8, 1], strides = [1, 1]} : vector<8x32xf32> to vector<8x1xf32>
    %832 = vector.broadcast %831 : vector<8x1xf32> to vector<8x8xf32>
    %833 = arith.mulf %832, %11 : vector<8x8xf32>
    %834 = arith.addf %830, %833 : vector<8x8xf32>
    %835 = vector.extract_strided_slice %0 {offsets = [0, 13], sizes = [8, 1], strides = [1, 1]} : vector<8x32xf32> to vector<8x1xf32>
    %836 = vector.broadcast %835 : vector<8x1xf32> to vector<8x8xf32>
    %837 = arith.mulf %836, %14 : vector<8x8xf32>
    %838 = arith.addf %834, %837 : vector<8x8xf32>
    %839 = vector.extract_strided_slice %0 {offsets = [0, 14], sizes = [8, 1], strides = [1, 1]} : vector<8x32xf32> to vector<8x1xf32>
    %840 = vector.broadcast %839 : vector<8x1xf32> to vector<8x8xf32>
    %841 = arith.mulf %840, %17 : vector<8x8xf32>
    %842 = arith.addf %838, %841 : vector<8x8xf32>
    %843 = vector.extract_strided_slice %0 {offsets = [0, 15], sizes = [8, 1], strides = [1, 1]} : vector<8x32xf32> to vector<8x1xf32>
    %844 = vector.broadcast %843 : vector<8x1xf32> to vector<8x8xf32>
    %845 = arith.mulf %844, %20 : vector<8x8xf32>
    %846 = arith.addf %842, %845 : vector<8x8xf32>
    %847 = vector.extract_strided_slice %0 {offsets = [0, 16], sizes = [8, 1], strides = [1, 1]} : vector<8x32xf32> to vector<8x1xf32>
    %848 = vector.broadcast %847 : vector<8x1xf32> to vector<8x8xf32>
    %849 = arith.mulf %848, %23 : vector<8x8xf32>
    %850 = arith.addf %846, %849 : vector<8x8xf32>
    %851 = vector.extract_strided_slice %0 {offsets = [0, 17], sizes = [8, 1], strides = [1, 1]} : vector<8x32xf32> to vector<8x1xf32>
    %852 = vector.broadcast %851 : vector<8x1xf32> to vector<8x8xf32>
    %853 = arith.mulf %852, %26 : vector<8x8xf32>
    %854 = arith.addf %850, %853 : vector<8x8xf32>
    %855 = vector.extract_strided_slice %813 {offsets = [0, 0], sizes = [8, 1], strides = [1, 1]} : vector<8x8xf32> to vector<8x1xf32>
    %856 = vector.broadcast %855 : vector<8x1xf32> to vector<8x8xf32>
    %857 = arith.mulf %856, %29 : vector<8x8xf32>
    %858 = vector.extract_strided_slice %813 {offsets = [0, 1], sizes = [8, 1], strides = [1, 1]} : vector<8x8xf32> to vector<8x1xf32>
    %859 = vector.broadcast %858 : vector<8x1xf32> to vector<8x8xf32>
    %860 = arith.mulf %859, %32 : vector<8x8xf32>
    %861 = arith.addf %857, %860 : vector<8x8xf32>
    %862 = vector.extract_strided_slice %813 {offsets = [0, 2], sizes = [8, 1], strides = [1, 1]} : vector<8x8xf32> to vector<8x1xf32>
    %863 = vector.broadcast %862 : vector<8x1xf32> to vector<8x8xf32>
    %864 = arith.mulf %863, %35 : vector<8x8xf32>
    %865 = arith.addf %861, %864 : vector<8x8xf32>
    %866 = vector.extract_strided_slice %813 {offsets = [0, 3], sizes = [8, 1], strides = [1, 1]} : vector<8x8xf32> to vector<8x1xf32>
    %867 = vector.broadcast %866 : vector<8x1xf32> to vector<8x8xf32>
    %868 = arith.mulf %867, %38 : vector<8x8xf32>
    %869 = arith.addf %865, %868 : vector<8x8xf32>
    %870 = vector.extract_strided_slice %813 {offsets = [0, 4], sizes = [8, 1], strides = [1, 1]} : vector<8x8xf32> to vector<8x1xf32>
    %871 = vector.broadcast %870 : vector<8x1xf32> to vector<8x8xf32>
    %872 = arith.mulf %871, %41 : vector<8x8xf32>
    %873 = arith.addf %869, %872 : vector<8x8xf32>
    %874 = vector.extract_strided_slice %813 {offsets = [0, 5], sizes = [8, 1], strides = [1, 1]} : vector<8x8xf32> to vector<8x1xf32>
    %875 = vector.broadcast %874 : vector<8x1xf32> to vector<8x8xf32>
    %876 = arith.mulf %875, %44 : vector<8x8xf32>
    %877 = arith.addf %873, %876 : vector<8x8xf32>
    %878 = vector.extract_strided_slice %813 {offsets = [0, 6], sizes = [8, 1], strides = [1, 1]} : vector<8x8xf32> to vector<8x1xf32>
    %879 = vector.broadcast %878 : vector<8x1xf32> to vector<8x8xf32>
    %880 = arith.mulf %879, %47 : vector<8x8xf32>
    %881 = arith.addf %877, %880 : vector<8x8xf32>
    %882 = vector.extract_strided_slice %813 {offsets = [0, 7], sizes = [8, 1], strides = [1, 1]} : vector<8x8xf32> to vector<8x1xf32>
    %883 = vector.broadcast %882 : vector<8x1xf32> to vector<8x8xf32>
    %884 = arith.mulf %883, %50 : vector<8x8xf32>
    %885 = arith.addf %881, %884 : vector<8x8xf32>
    %886 = arith.addf %854, %885 : vector<8x8xf32>
    %887 = math.tanh %886 : vector<8x8xf32>
    %cst_32 = arith.constant 0.000000e+00 : f32
    %888 = vector.broadcast %cst_32 : f32 to vector<8x8xf32>
    %889 = arith.maximumf %887, %888 : vector<8x8xf32>
    %890 = arith.mulf %889, %56 : vector<8x8xf32>
    %cst_33 = arith.constant dense<0.000000e+00> : vector<8xf32>
    %891 = vector.multi_reduction <add>, %890, %cst_33 [1] : vector<8x8xf32> to vector<8xf32>
    %892 = vector.shape_cast %891 : vector<8xf32> to vector<8x1xf32>
    %893 = arith.addf %892, %59 : vector<8x1xf32>
    %c18_i32 = arith.constant 18 : i32
    %894 = vector.broadcast %c18_i32 : i32 to vector<8x128xi32>
    %895 = arith.cmpi eq, %60, %894 : vector<8x128xi32>
    %896 = vector.shape_cast %893 : vector<8x1xf32> to vector<8x1xf32>
    %897 = vector.broadcast %896 : vector<8x1xf32> to vector<8x128xf32>
    %898 = arith.select %895, %897, %822 : vector<8x128xi1>, vector<8x128xf32>
    %899 = vector.extract_strided_slice %0 {offsets = [0, 11], sizes = [8, 1], strides = [1, 1]} : vector<8x32xf32> to vector<8x1xf32>
    %900 = vector.broadcast %899 : vector<8x1xf32> to vector<8x8xf32>
    %901 = arith.mulf %900, %5 : vector<8x8xf32>
    %902 = arith.addf %53, %901 : vector<8x8xf32>
    %903 = vector.extract_strided_slice %0 {offsets = [0, 12], sizes = [8, 1], strides = [1, 1]} : vector<8x32xf32> to vector<8x1xf32>
    %904 = vector.broadcast %903 : vector<8x1xf32> to vector<8x8xf32>
    %905 = arith.mulf %904, %8 : vector<8x8xf32>
    %906 = arith.addf %902, %905 : vector<8x8xf32>
    %907 = vector.extract_strided_slice %0 {offsets = [0, 13], sizes = [8, 1], strides = [1, 1]} : vector<8x32xf32> to vector<8x1xf32>
    %908 = vector.broadcast %907 : vector<8x1xf32> to vector<8x8xf32>
    %909 = arith.mulf %908, %11 : vector<8x8xf32>
    %910 = arith.addf %906, %909 : vector<8x8xf32>
    %911 = vector.extract_strided_slice %0 {offsets = [0, 14], sizes = [8, 1], strides = [1, 1]} : vector<8x32xf32> to vector<8x1xf32>
    %912 = vector.broadcast %911 : vector<8x1xf32> to vector<8x8xf32>
    %913 = arith.mulf %912, %14 : vector<8x8xf32>
    %914 = arith.addf %910, %913 : vector<8x8xf32>
    %915 = vector.extract_strided_slice %0 {offsets = [0, 15], sizes = [8, 1], strides = [1, 1]} : vector<8x32xf32> to vector<8x1xf32>
    %916 = vector.broadcast %915 : vector<8x1xf32> to vector<8x8xf32>
    %917 = arith.mulf %916, %17 : vector<8x8xf32>
    %918 = arith.addf %914, %917 : vector<8x8xf32>
    %919 = vector.extract_strided_slice %0 {offsets = [0, 16], sizes = [8, 1], strides = [1, 1]} : vector<8x32xf32> to vector<8x1xf32>
    %920 = vector.broadcast %919 : vector<8x1xf32> to vector<8x8xf32>
    %921 = arith.mulf %920, %20 : vector<8x8xf32>
    %922 = arith.addf %918, %921 : vector<8x8xf32>
    %923 = vector.extract_strided_slice %0 {offsets = [0, 17], sizes = [8, 1], strides = [1, 1]} : vector<8x32xf32> to vector<8x1xf32>
    %924 = vector.broadcast %923 : vector<8x1xf32> to vector<8x8xf32>
    %925 = arith.mulf %924, %23 : vector<8x8xf32>
    %926 = arith.addf %922, %925 : vector<8x8xf32>
    %927 = vector.extract_strided_slice %0 {offsets = [0, 18], sizes = [8, 1], strides = [1, 1]} : vector<8x32xf32> to vector<8x1xf32>
    %928 = vector.broadcast %927 : vector<8x1xf32> to vector<8x8xf32>
    %929 = arith.mulf %928, %26 : vector<8x8xf32>
    %930 = arith.addf %926, %929 : vector<8x8xf32>
    %931 = vector.extract_strided_slice %889 {offsets = [0, 0], sizes = [8, 1], strides = [1, 1]} : vector<8x8xf32> to vector<8x1xf32>
    %932 = vector.broadcast %931 : vector<8x1xf32> to vector<8x8xf32>
    %933 = arith.mulf %932, %29 : vector<8x8xf32>
    %934 = vector.extract_strided_slice %889 {offsets = [0, 1], sizes = [8, 1], strides = [1, 1]} : vector<8x8xf32> to vector<8x1xf32>
    %935 = vector.broadcast %934 : vector<8x1xf32> to vector<8x8xf32>
    %936 = arith.mulf %935, %32 : vector<8x8xf32>
    %937 = arith.addf %933, %936 : vector<8x8xf32>
    %938 = vector.extract_strided_slice %889 {offsets = [0, 2], sizes = [8, 1], strides = [1, 1]} : vector<8x8xf32> to vector<8x1xf32>
    %939 = vector.broadcast %938 : vector<8x1xf32> to vector<8x8xf32>
    %940 = arith.mulf %939, %35 : vector<8x8xf32>
    %941 = arith.addf %937, %940 : vector<8x8xf32>
    %942 = vector.extract_strided_slice %889 {offsets = [0, 3], sizes = [8, 1], strides = [1, 1]} : vector<8x8xf32> to vector<8x1xf32>
    %943 = vector.broadcast %942 : vector<8x1xf32> to vector<8x8xf32>
    %944 = arith.mulf %943, %38 : vector<8x8xf32>
    %945 = arith.addf %941, %944 : vector<8x8xf32>
    %946 = vector.extract_strided_slice %889 {offsets = [0, 4], sizes = [8, 1], strides = [1, 1]} : vector<8x8xf32> to vector<8x1xf32>
    %947 = vector.broadcast %946 : vector<8x1xf32> to vector<8x8xf32>
    %948 = arith.mulf %947, %41 : vector<8x8xf32>
    %949 = arith.addf %945, %948 : vector<8x8xf32>
    %950 = vector.extract_strided_slice %889 {offsets = [0, 5], sizes = [8, 1], strides = [1, 1]} : vector<8x8xf32> to vector<8x1xf32>
    %951 = vector.broadcast %950 : vector<8x1xf32> to vector<8x8xf32>
    %952 = arith.mulf %951, %44 : vector<8x8xf32>
    %953 = arith.addf %949, %952 : vector<8x8xf32>
    %954 = vector.extract_strided_slice %889 {offsets = [0, 6], sizes = [8, 1], strides = [1, 1]} : vector<8x8xf32> to vector<8x1xf32>
    %955 = vector.broadcast %954 : vector<8x1xf32> to vector<8x8xf32>
    %956 = arith.mulf %955, %47 : vector<8x8xf32>
    %957 = arith.addf %953, %956 : vector<8x8xf32>
    %958 = vector.extract_strided_slice %889 {offsets = [0, 7], sizes = [8, 1], strides = [1, 1]} : vector<8x8xf32> to vector<8x1xf32>
    %959 = vector.broadcast %958 : vector<8x1xf32> to vector<8x8xf32>
    %960 = arith.mulf %959, %50 : vector<8x8xf32>
    %961 = arith.addf %957, %960 : vector<8x8xf32>
    %962 = arith.addf %930, %961 : vector<8x8xf32>
    %963 = math.tanh %962 : vector<8x8xf32>
    %cst_34 = arith.constant 0.000000e+00 : f32
    %964 = vector.broadcast %cst_34 : f32 to vector<8x8xf32>
    %965 = arith.maximumf %963, %964 : vector<8x8xf32>
    %966 = arith.mulf %965, %56 : vector<8x8xf32>
    %cst_35 = arith.constant dense<0.000000e+00> : vector<8xf32>
    %967 = vector.multi_reduction <add>, %966, %cst_35 [1] : vector<8x8xf32> to vector<8xf32>
    %968 = vector.shape_cast %967 : vector<8xf32> to vector<8x1xf32>
    %969 = arith.addf %968, %59 : vector<8x1xf32>
    %c19_i32 = arith.constant 19 : i32
    %970 = vector.broadcast %c19_i32 : i32 to vector<8x128xi32>
    %971 = arith.cmpi eq, %60, %970 : vector<8x128xi32>
    %972 = vector.shape_cast %969 : vector<8x1xf32> to vector<8x1xf32>
    %973 = vector.broadcast %972 : vector<8x1xf32> to vector<8x128xf32>
    %974 = arith.select %971, %973, %898 : vector<8x128xi1>, vector<8x128xf32>
    %975 = vector.extract_strided_slice %0 {offsets = [0, 12], sizes = [8, 1], strides = [1, 1]} : vector<8x32xf32> to vector<8x1xf32>
    %976 = vector.broadcast %975 : vector<8x1xf32> to vector<8x8xf32>
    %977 = arith.mulf %976, %5 : vector<8x8xf32>
    %978 = arith.addf %53, %977 : vector<8x8xf32>
    %979 = vector.extract_strided_slice %0 {offsets = [0, 13], sizes = [8, 1], strides = [1, 1]} : vector<8x32xf32> to vector<8x1xf32>
    %980 = vector.broadcast %979 : vector<8x1xf32> to vector<8x8xf32>
    %981 = arith.mulf %980, %8 : vector<8x8xf32>
    %982 = arith.addf %978, %981 : vector<8x8xf32>
    %983 = vector.extract_strided_slice %0 {offsets = [0, 14], sizes = [8, 1], strides = [1, 1]} : vector<8x32xf32> to vector<8x1xf32>
    %984 = vector.broadcast %983 : vector<8x1xf32> to vector<8x8xf32>
    %985 = arith.mulf %984, %11 : vector<8x8xf32>
    %986 = arith.addf %982, %985 : vector<8x8xf32>
    %987 = vector.extract_strided_slice %0 {offsets = [0, 15], sizes = [8, 1], strides = [1, 1]} : vector<8x32xf32> to vector<8x1xf32>
    %988 = vector.broadcast %987 : vector<8x1xf32> to vector<8x8xf32>
    %989 = arith.mulf %988, %14 : vector<8x8xf32>
    %990 = arith.addf %986, %989 : vector<8x8xf32>
    %991 = vector.extract_strided_slice %0 {offsets = [0, 16], sizes = [8, 1], strides = [1, 1]} : vector<8x32xf32> to vector<8x1xf32>
    %992 = vector.broadcast %991 : vector<8x1xf32> to vector<8x8xf32>
    %993 = arith.mulf %992, %17 : vector<8x8xf32>
    %994 = arith.addf %990, %993 : vector<8x8xf32>
    %995 = vector.extract_strided_slice %0 {offsets = [0, 17], sizes = [8, 1], strides = [1, 1]} : vector<8x32xf32> to vector<8x1xf32>
    %996 = vector.broadcast %995 : vector<8x1xf32> to vector<8x8xf32>
    %997 = arith.mulf %996, %20 : vector<8x8xf32>
    %998 = arith.addf %994, %997 : vector<8x8xf32>
    %999 = vector.extract_strided_slice %0 {offsets = [0, 18], sizes = [8, 1], strides = [1, 1]} : vector<8x32xf32> to vector<8x1xf32>
    %1000 = vector.broadcast %999 : vector<8x1xf32> to vector<8x8xf32>
    %1001 = arith.mulf %1000, %23 : vector<8x8xf32>
    %1002 = arith.addf %998, %1001 : vector<8x8xf32>
    %1003 = vector.extract_strided_slice %0 {offsets = [0, 19], sizes = [8, 1], strides = [1, 1]} : vector<8x32xf32> to vector<8x1xf32>
    %1004 = vector.broadcast %1003 : vector<8x1xf32> to vector<8x8xf32>
    %1005 = arith.mulf %1004, %26 : vector<8x8xf32>
    %1006 = arith.addf %1002, %1005 : vector<8x8xf32>
    %1007 = vector.extract_strided_slice %965 {offsets = [0, 0], sizes = [8, 1], strides = [1, 1]} : vector<8x8xf32> to vector<8x1xf32>
    %1008 = vector.broadcast %1007 : vector<8x1xf32> to vector<8x8xf32>
    %1009 = arith.mulf %1008, %29 : vector<8x8xf32>
    %1010 = vector.extract_strided_slice %965 {offsets = [0, 1], sizes = [8, 1], strides = [1, 1]} : vector<8x8xf32> to vector<8x1xf32>
    %1011 = vector.broadcast %1010 : vector<8x1xf32> to vector<8x8xf32>
    %1012 = arith.mulf %1011, %32 : vector<8x8xf32>
    %1013 = arith.addf %1009, %1012 : vector<8x8xf32>
    %1014 = vector.extract_strided_slice %965 {offsets = [0, 2], sizes = [8, 1], strides = [1, 1]} : vector<8x8xf32> to vector<8x1xf32>
    %1015 = vector.broadcast %1014 : vector<8x1xf32> to vector<8x8xf32>
    %1016 = arith.mulf %1015, %35 : vector<8x8xf32>
    %1017 = arith.addf %1013, %1016 : vector<8x8xf32>
    %1018 = vector.extract_strided_slice %965 {offsets = [0, 3], sizes = [8, 1], strides = [1, 1]} : vector<8x8xf32> to vector<8x1xf32>
    %1019 = vector.broadcast %1018 : vector<8x1xf32> to vector<8x8xf32>
    %1020 = arith.mulf %1019, %38 : vector<8x8xf32>
    %1021 = arith.addf %1017, %1020 : vector<8x8xf32>
    %1022 = vector.extract_strided_slice %965 {offsets = [0, 4], sizes = [8, 1], strides = [1, 1]} : vector<8x8xf32> to vector<8x1xf32>
    %1023 = vector.broadcast %1022 : vector<8x1xf32> to vector<8x8xf32>
    %1024 = arith.mulf %1023, %41 : vector<8x8xf32>
    %1025 = arith.addf %1021, %1024 : vector<8x8xf32>
    %1026 = vector.extract_strided_slice %965 {offsets = [0, 5], sizes = [8, 1], strides = [1, 1]} : vector<8x8xf32> to vector<8x1xf32>
    %1027 = vector.broadcast %1026 : vector<8x1xf32> to vector<8x8xf32>
    %1028 = arith.mulf %1027, %44 : vector<8x8xf32>
    %1029 = arith.addf %1025, %1028 : vector<8x8xf32>
    %1030 = vector.extract_strided_slice %965 {offsets = [0, 6], sizes = [8, 1], strides = [1, 1]} : vector<8x8xf32> to vector<8x1xf32>
    %1031 = vector.broadcast %1030 : vector<8x1xf32> to vector<8x8xf32>
    %1032 = arith.mulf %1031, %47 : vector<8x8xf32>
    %1033 = arith.addf %1029, %1032 : vector<8x8xf32>
    %1034 = vector.extract_strided_slice %965 {offsets = [0, 7], sizes = [8, 1], strides = [1, 1]} : vector<8x8xf32> to vector<8x1xf32>
    %1035 = vector.broadcast %1034 : vector<8x1xf32> to vector<8x8xf32>
    %1036 = arith.mulf %1035, %50 : vector<8x8xf32>
    %1037 = arith.addf %1033, %1036 : vector<8x8xf32>
    %1038 = arith.addf %1006, %1037 : vector<8x8xf32>
    %1039 = math.tanh %1038 : vector<8x8xf32>
    %cst_36 = arith.constant 0.000000e+00 : f32
    %1040 = vector.broadcast %cst_36 : f32 to vector<8x8xf32>
    %1041 = arith.maximumf %1039, %1040 : vector<8x8xf32>
    %1042 = arith.mulf %1041, %56 : vector<8x8xf32>
    %cst_37 = arith.constant dense<0.000000e+00> : vector<8xf32>
    %1043 = vector.multi_reduction <add>, %1042, %cst_37 [1] : vector<8x8xf32> to vector<8xf32>
    %1044 = vector.shape_cast %1043 : vector<8xf32> to vector<8x1xf32>
    %1045 = arith.addf %1044, %59 : vector<8x1xf32>
    %c20_i32 = arith.constant 20 : i32
    %1046 = vector.broadcast %c20_i32 : i32 to vector<8x128xi32>
    %1047 = arith.cmpi eq, %60, %1046 : vector<8x128xi32>
    %1048 = vector.shape_cast %1045 : vector<8x1xf32> to vector<8x1xf32>
    %1049 = vector.broadcast %1048 : vector<8x1xf32> to vector<8x128xf32>
    %1050 = arith.select %1047, %1049, %974 : vector<8x128xi1>, vector<8x128xf32>
    %1051 = vector.extract_strided_slice %0 {offsets = [0, 13], sizes = [8, 1], strides = [1, 1]} : vector<8x32xf32> to vector<8x1xf32>
    %1052 = vector.broadcast %1051 : vector<8x1xf32> to vector<8x8xf32>
    %1053 = arith.mulf %1052, %5 : vector<8x8xf32>
    %1054 = arith.addf %53, %1053 : vector<8x8xf32>
    %1055 = vector.extract_strided_slice %0 {offsets = [0, 14], sizes = [8, 1], strides = [1, 1]} : vector<8x32xf32> to vector<8x1xf32>
    %1056 = vector.broadcast %1055 : vector<8x1xf32> to vector<8x8xf32>
    %1057 = arith.mulf %1056, %8 : vector<8x8xf32>
    %1058 = arith.addf %1054, %1057 : vector<8x8xf32>
    %1059 = vector.extract_strided_slice %0 {offsets = [0, 15], sizes = [8, 1], strides = [1, 1]} : vector<8x32xf32> to vector<8x1xf32>
    %1060 = vector.broadcast %1059 : vector<8x1xf32> to vector<8x8xf32>
    %1061 = arith.mulf %1060, %11 : vector<8x8xf32>
    %1062 = arith.addf %1058, %1061 : vector<8x8xf32>
    %1063 = vector.extract_strided_slice %0 {offsets = [0, 16], sizes = [8, 1], strides = [1, 1]} : vector<8x32xf32> to vector<8x1xf32>
    %1064 = vector.broadcast %1063 : vector<8x1xf32> to vector<8x8xf32>
    %1065 = arith.mulf %1064, %14 : vector<8x8xf32>
    %1066 = arith.addf %1062, %1065 : vector<8x8xf32>
    %1067 = vector.extract_strided_slice %0 {offsets = [0, 17], sizes = [8, 1], strides = [1, 1]} : vector<8x32xf32> to vector<8x1xf32>
    %1068 = vector.broadcast %1067 : vector<8x1xf32> to vector<8x8xf32>
    %1069 = arith.mulf %1068, %17 : vector<8x8xf32>
    %1070 = arith.addf %1066, %1069 : vector<8x8xf32>
    %1071 = vector.extract_strided_slice %0 {offsets = [0, 18], sizes = [8, 1], strides = [1, 1]} : vector<8x32xf32> to vector<8x1xf32>
    %1072 = vector.broadcast %1071 : vector<8x1xf32> to vector<8x8xf32>
    %1073 = arith.mulf %1072, %20 : vector<8x8xf32>
    %1074 = arith.addf %1070, %1073 : vector<8x8xf32>
    %1075 = vector.extract_strided_slice %0 {offsets = [0, 19], sizes = [8, 1], strides = [1, 1]} : vector<8x32xf32> to vector<8x1xf32>
    %1076 = vector.broadcast %1075 : vector<8x1xf32> to vector<8x8xf32>
    %1077 = arith.mulf %1076, %23 : vector<8x8xf32>
    %1078 = arith.addf %1074, %1077 : vector<8x8xf32>
    %1079 = vector.extract_strided_slice %0 {offsets = [0, 20], sizes = [8, 1], strides = [1, 1]} : vector<8x32xf32> to vector<8x1xf32>
    %1080 = vector.broadcast %1079 : vector<8x1xf32> to vector<8x8xf32>
    %1081 = arith.mulf %1080, %26 : vector<8x8xf32>
    %1082 = arith.addf %1078, %1081 : vector<8x8xf32>
    %1083 = vector.extract_strided_slice %1041 {offsets = [0, 0], sizes = [8, 1], strides = [1, 1]} : vector<8x8xf32> to vector<8x1xf32>
    %1084 = vector.broadcast %1083 : vector<8x1xf32> to vector<8x8xf32>
    %1085 = arith.mulf %1084, %29 : vector<8x8xf32>
    %1086 = vector.extract_strided_slice %1041 {offsets = [0, 1], sizes = [8, 1], strides = [1, 1]} : vector<8x8xf32> to vector<8x1xf32>
    %1087 = vector.broadcast %1086 : vector<8x1xf32> to vector<8x8xf32>
    %1088 = arith.mulf %1087, %32 : vector<8x8xf32>
    %1089 = arith.addf %1085, %1088 : vector<8x8xf32>
    %1090 = vector.extract_strided_slice %1041 {offsets = [0, 2], sizes = [8, 1], strides = [1, 1]} : vector<8x8xf32> to vector<8x1xf32>
    %1091 = vector.broadcast %1090 : vector<8x1xf32> to vector<8x8xf32>
    %1092 = arith.mulf %1091, %35 : vector<8x8xf32>
    %1093 = arith.addf %1089, %1092 : vector<8x8xf32>
    %1094 = vector.extract_strided_slice %1041 {offsets = [0, 3], sizes = [8, 1], strides = [1, 1]} : vector<8x8xf32> to vector<8x1xf32>
    %1095 = vector.broadcast %1094 : vector<8x1xf32> to vector<8x8xf32>
    %1096 = arith.mulf %1095, %38 : vector<8x8xf32>
    %1097 = arith.addf %1093, %1096 : vector<8x8xf32>
    %1098 = vector.extract_strided_slice %1041 {offsets = [0, 4], sizes = [8, 1], strides = [1, 1]} : vector<8x8xf32> to vector<8x1xf32>
    %1099 = vector.broadcast %1098 : vector<8x1xf32> to vector<8x8xf32>
    %1100 = arith.mulf %1099, %41 : vector<8x8xf32>
    %1101 = arith.addf %1097, %1100 : vector<8x8xf32>
    %1102 = vector.extract_strided_slice %1041 {offsets = [0, 5], sizes = [8, 1], strides = [1, 1]} : vector<8x8xf32> to vector<8x1xf32>
    %1103 = vector.broadcast %1102 : vector<8x1xf32> to vector<8x8xf32>
    %1104 = arith.mulf %1103, %44 : vector<8x8xf32>
    %1105 = arith.addf %1101, %1104 : vector<8x8xf32>
    %1106 = vector.extract_strided_slice %1041 {offsets = [0, 6], sizes = [8, 1], strides = [1, 1]} : vector<8x8xf32> to vector<8x1xf32>
    %1107 = vector.broadcast %1106 : vector<8x1xf32> to vector<8x8xf32>
    %1108 = arith.mulf %1107, %47 : vector<8x8xf32>
    %1109 = arith.addf %1105, %1108 : vector<8x8xf32>
    %1110 = vector.extract_strided_slice %1041 {offsets = [0, 7], sizes = [8, 1], strides = [1, 1]} : vector<8x8xf32> to vector<8x1xf32>
    %1111 = vector.broadcast %1110 : vector<8x1xf32> to vector<8x8xf32>
    %1112 = arith.mulf %1111, %50 : vector<8x8xf32>
    %1113 = arith.addf %1109, %1112 : vector<8x8xf32>
    %1114 = arith.addf %1082, %1113 : vector<8x8xf32>
    %1115 = math.tanh %1114 : vector<8x8xf32>
    %cst_38 = arith.constant 0.000000e+00 : f32
    %1116 = vector.broadcast %cst_38 : f32 to vector<8x8xf32>
    %1117 = arith.maximumf %1115, %1116 : vector<8x8xf32>
    %1118 = arith.mulf %1117, %56 : vector<8x8xf32>
    %cst_39 = arith.constant dense<0.000000e+00> : vector<8xf32>
    %1119 = vector.multi_reduction <add>, %1118, %cst_39 [1] : vector<8x8xf32> to vector<8xf32>
    %1120 = vector.shape_cast %1119 : vector<8xf32> to vector<8x1xf32>
    %1121 = arith.addf %1120, %59 : vector<8x1xf32>
    %c21_i32 = arith.constant 21 : i32
    %1122 = vector.broadcast %c21_i32 : i32 to vector<8x128xi32>
    %1123 = arith.cmpi eq, %60, %1122 : vector<8x128xi32>
    %1124 = vector.shape_cast %1121 : vector<8x1xf32> to vector<8x1xf32>
    %1125 = vector.broadcast %1124 : vector<8x1xf32> to vector<8x128xf32>
    %1126 = arith.select %1123, %1125, %1050 : vector<8x128xi1>, vector<8x128xf32>
    %1127 = vector.extract_strided_slice %0 {offsets = [0, 14], sizes = [8, 1], strides = [1, 1]} : vector<8x32xf32> to vector<8x1xf32>
    %1128 = vector.broadcast %1127 : vector<8x1xf32> to vector<8x8xf32>
    %1129 = arith.mulf %1128, %5 : vector<8x8xf32>
    %1130 = arith.addf %53, %1129 : vector<8x8xf32>
    %1131 = vector.extract_strided_slice %0 {offsets = [0, 15], sizes = [8, 1], strides = [1, 1]} : vector<8x32xf32> to vector<8x1xf32>
    %1132 = vector.broadcast %1131 : vector<8x1xf32> to vector<8x8xf32>
    %1133 = arith.mulf %1132, %8 : vector<8x8xf32>
    %1134 = arith.addf %1130, %1133 : vector<8x8xf32>
    %1135 = vector.extract_strided_slice %0 {offsets = [0, 16], sizes = [8, 1], strides = [1, 1]} : vector<8x32xf32> to vector<8x1xf32>
    %1136 = vector.broadcast %1135 : vector<8x1xf32> to vector<8x8xf32>
    %1137 = arith.mulf %1136, %11 : vector<8x8xf32>
    %1138 = arith.addf %1134, %1137 : vector<8x8xf32>
    %1139 = vector.extract_strided_slice %0 {offsets = [0, 17], sizes = [8, 1], strides = [1, 1]} : vector<8x32xf32> to vector<8x1xf32>
    %1140 = vector.broadcast %1139 : vector<8x1xf32> to vector<8x8xf32>
    %1141 = arith.mulf %1140, %14 : vector<8x8xf32>
    %1142 = arith.addf %1138, %1141 : vector<8x8xf32>
    %1143 = vector.extract_strided_slice %0 {offsets = [0, 18], sizes = [8, 1], strides = [1, 1]} : vector<8x32xf32> to vector<8x1xf32>
    %1144 = vector.broadcast %1143 : vector<8x1xf32> to vector<8x8xf32>
    %1145 = arith.mulf %1144, %17 : vector<8x8xf32>
    %1146 = arith.addf %1142, %1145 : vector<8x8xf32>
    %1147 = vector.extract_strided_slice %0 {offsets = [0, 19], sizes = [8, 1], strides = [1, 1]} : vector<8x32xf32> to vector<8x1xf32>
    %1148 = vector.broadcast %1147 : vector<8x1xf32> to vector<8x8xf32>
    %1149 = arith.mulf %1148, %20 : vector<8x8xf32>
    %1150 = arith.addf %1146, %1149 : vector<8x8xf32>
    %1151 = vector.extract_strided_slice %0 {offsets = [0, 20], sizes = [8, 1], strides = [1, 1]} : vector<8x32xf32> to vector<8x1xf32>
    %1152 = vector.broadcast %1151 : vector<8x1xf32> to vector<8x8xf32>
    %1153 = arith.mulf %1152, %23 : vector<8x8xf32>
    %1154 = arith.addf %1150, %1153 : vector<8x8xf32>
    %1155 = vector.extract_strided_slice %0 {offsets = [0, 21], sizes = [8, 1], strides = [1, 1]} : vector<8x32xf32> to vector<8x1xf32>
    %1156 = vector.broadcast %1155 : vector<8x1xf32> to vector<8x8xf32>
    %1157 = arith.mulf %1156, %26 : vector<8x8xf32>
    %1158 = arith.addf %1154, %1157 : vector<8x8xf32>
    %1159 = vector.extract_strided_slice %1117 {offsets = [0, 0], sizes = [8, 1], strides = [1, 1]} : vector<8x8xf32> to vector<8x1xf32>
    %1160 = vector.broadcast %1159 : vector<8x1xf32> to vector<8x8xf32>
    %1161 = arith.mulf %1160, %29 : vector<8x8xf32>
    %1162 = vector.extract_strided_slice %1117 {offsets = [0, 1], sizes = [8, 1], strides = [1, 1]} : vector<8x8xf32> to vector<8x1xf32>
    %1163 = vector.broadcast %1162 : vector<8x1xf32> to vector<8x8xf32>
    %1164 = arith.mulf %1163, %32 : vector<8x8xf32>
    %1165 = arith.addf %1161, %1164 : vector<8x8xf32>
    %1166 = vector.extract_strided_slice %1117 {offsets = [0, 2], sizes = [8, 1], strides = [1, 1]} : vector<8x8xf32> to vector<8x1xf32>
    %1167 = vector.broadcast %1166 : vector<8x1xf32> to vector<8x8xf32>
    %1168 = arith.mulf %1167, %35 : vector<8x8xf32>
    %1169 = arith.addf %1165, %1168 : vector<8x8xf32>
    %1170 = vector.extract_strided_slice %1117 {offsets = [0, 3], sizes = [8, 1], strides = [1, 1]} : vector<8x8xf32> to vector<8x1xf32>
    %1171 = vector.broadcast %1170 : vector<8x1xf32> to vector<8x8xf32>
    %1172 = arith.mulf %1171, %38 : vector<8x8xf32>
    %1173 = arith.addf %1169, %1172 : vector<8x8xf32>
    %1174 = vector.extract_strided_slice %1117 {offsets = [0, 4], sizes = [8, 1], strides = [1, 1]} : vector<8x8xf32> to vector<8x1xf32>
    %1175 = vector.broadcast %1174 : vector<8x1xf32> to vector<8x8xf32>
    %1176 = arith.mulf %1175, %41 : vector<8x8xf32>
    %1177 = arith.addf %1173, %1176 : vector<8x8xf32>
    %1178 = vector.extract_strided_slice %1117 {offsets = [0, 5], sizes = [8, 1], strides = [1, 1]} : vector<8x8xf32> to vector<8x1xf32>
    %1179 = vector.broadcast %1178 : vector<8x1xf32> to vector<8x8xf32>
    %1180 = arith.mulf %1179, %44 : vector<8x8xf32>
    %1181 = arith.addf %1177, %1180 : vector<8x8xf32>
    %1182 = vector.extract_strided_slice %1117 {offsets = [0, 6], sizes = [8, 1], strides = [1, 1]} : vector<8x8xf32> to vector<8x1xf32>
    %1183 = vector.broadcast %1182 : vector<8x1xf32> to vector<8x8xf32>
    %1184 = arith.mulf %1183, %47 : vector<8x8xf32>
    %1185 = arith.addf %1181, %1184 : vector<8x8xf32>
    %1186 = vector.extract_strided_slice %1117 {offsets = [0, 7], sizes = [8, 1], strides = [1, 1]} : vector<8x8xf32> to vector<8x1xf32>
    %1187 = vector.broadcast %1186 : vector<8x1xf32> to vector<8x8xf32>
    %1188 = arith.mulf %1187, %50 : vector<8x8xf32>
    %1189 = arith.addf %1185, %1188 : vector<8x8xf32>
    %1190 = arith.addf %1158, %1189 : vector<8x8xf32>
    %1191 = math.tanh %1190 : vector<8x8xf32>
    %cst_40 = arith.constant 0.000000e+00 : f32
    %1192 = vector.broadcast %cst_40 : f32 to vector<8x8xf32>
    %1193 = arith.maximumf %1191, %1192 : vector<8x8xf32>
    %1194 = arith.mulf %1193, %56 : vector<8x8xf32>
    %cst_41 = arith.constant dense<0.000000e+00> : vector<8xf32>
    %1195 = vector.multi_reduction <add>, %1194, %cst_41 [1] : vector<8x8xf32> to vector<8xf32>
    %1196 = vector.shape_cast %1195 : vector<8xf32> to vector<8x1xf32>
    %1197 = arith.addf %1196, %59 : vector<8x1xf32>
    %c22_i32 = arith.constant 22 : i32
    %1198 = vector.broadcast %c22_i32 : i32 to vector<8x128xi32>
    %1199 = arith.cmpi eq, %60, %1198 : vector<8x128xi32>
    %1200 = vector.shape_cast %1197 : vector<8x1xf32> to vector<8x1xf32>
    %1201 = vector.broadcast %1200 : vector<8x1xf32> to vector<8x128xf32>
    %1202 = arith.select %1199, %1201, %1126 : vector<8x128xi1>, vector<8x128xf32>
    %1203 = vector.extract_strided_slice %0 {offsets = [0, 15], sizes = [8, 1], strides = [1, 1]} : vector<8x32xf32> to vector<8x1xf32>
    %1204 = vector.broadcast %1203 : vector<8x1xf32> to vector<8x8xf32>
    %1205 = arith.mulf %1204, %5 : vector<8x8xf32>
    %1206 = arith.addf %53, %1205 : vector<8x8xf32>
    %1207 = vector.extract_strided_slice %0 {offsets = [0, 16], sizes = [8, 1], strides = [1, 1]} : vector<8x32xf32> to vector<8x1xf32>
    %1208 = vector.broadcast %1207 : vector<8x1xf32> to vector<8x8xf32>
    %1209 = arith.mulf %1208, %8 : vector<8x8xf32>
    %1210 = arith.addf %1206, %1209 : vector<8x8xf32>
    %1211 = vector.extract_strided_slice %0 {offsets = [0, 17], sizes = [8, 1], strides = [1, 1]} : vector<8x32xf32> to vector<8x1xf32>
    %1212 = vector.broadcast %1211 : vector<8x1xf32> to vector<8x8xf32>
    %1213 = arith.mulf %1212, %11 : vector<8x8xf32>
    %1214 = arith.addf %1210, %1213 : vector<8x8xf32>
    %1215 = vector.extract_strided_slice %0 {offsets = [0, 18], sizes = [8, 1], strides = [1, 1]} : vector<8x32xf32> to vector<8x1xf32>
    %1216 = vector.broadcast %1215 : vector<8x1xf32> to vector<8x8xf32>
    %1217 = arith.mulf %1216, %14 : vector<8x8xf32>
    %1218 = arith.addf %1214, %1217 : vector<8x8xf32>
    %1219 = vector.extract_strided_slice %0 {offsets = [0, 19], sizes = [8, 1], strides = [1, 1]} : vector<8x32xf32> to vector<8x1xf32>
    %1220 = vector.broadcast %1219 : vector<8x1xf32> to vector<8x8xf32>
    %1221 = arith.mulf %1220, %17 : vector<8x8xf32>
    %1222 = arith.addf %1218, %1221 : vector<8x8xf32>
    %1223 = vector.extract_strided_slice %0 {offsets = [0, 20], sizes = [8, 1], strides = [1, 1]} : vector<8x32xf32> to vector<8x1xf32>
    %1224 = vector.broadcast %1223 : vector<8x1xf32> to vector<8x8xf32>
    %1225 = arith.mulf %1224, %20 : vector<8x8xf32>
    %1226 = arith.addf %1222, %1225 : vector<8x8xf32>
    %1227 = vector.extract_strided_slice %0 {offsets = [0, 21], sizes = [8, 1], strides = [1, 1]} : vector<8x32xf32> to vector<8x1xf32>
    %1228 = vector.broadcast %1227 : vector<8x1xf32> to vector<8x8xf32>
    %1229 = arith.mulf %1228, %23 : vector<8x8xf32>
    %1230 = arith.addf %1226, %1229 : vector<8x8xf32>
    %1231 = vector.extract_strided_slice %0 {offsets = [0, 22], sizes = [8, 1], strides = [1, 1]} : vector<8x32xf32> to vector<8x1xf32>
    %1232 = vector.broadcast %1231 : vector<8x1xf32> to vector<8x8xf32>
    %1233 = arith.mulf %1232, %26 : vector<8x8xf32>
    %1234 = arith.addf %1230, %1233 : vector<8x8xf32>
    %1235 = vector.extract_strided_slice %1193 {offsets = [0, 0], sizes = [8, 1], strides = [1, 1]} : vector<8x8xf32> to vector<8x1xf32>
    %1236 = vector.broadcast %1235 : vector<8x1xf32> to vector<8x8xf32>
    %1237 = arith.mulf %1236, %29 : vector<8x8xf32>
    %1238 = vector.extract_strided_slice %1193 {offsets = [0, 1], sizes = [8, 1], strides = [1, 1]} : vector<8x8xf32> to vector<8x1xf32>
    %1239 = vector.broadcast %1238 : vector<8x1xf32> to vector<8x8xf32>
    %1240 = arith.mulf %1239, %32 : vector<8x8xf32>
    %1241 = arith.addf %1237, %1240 : vector<8x8xf32>
    %1242 = vector.extract_strided_slice %1193 {offsets = [0, 2], sizes = [8, 1], strides = [1, 1]} : vector<8x8xf32> to vector<8x1xf32>
    %1243 = vector.broadcast %1242 : vector<8x1xf32> to vector<8x8xf32>
    %1244 = arith.mulf %1243, %35 : vector<8x8xf32>
    %1245 = arith.addf %1241, %1244 : vector<8x8xf32>
    %1246 = vector.extract_strided_slice %1193 {offsets = [0, 3], sizes = [8, 1], strides = [1, 1]} : vector<8x8xf32> to vector<8x1xf32>
    %1247 = vector.broadcast %1246 : vector<8x1xf32> to vector<8x8xf32>
    %1248 = arith.mulf %1247, %38 : vector<8x8xf32>
    %1249 = arith.addf %1245, %1248 : vector<8x8xf32>
    %1250 = vector.extract_strided_slice %1193 {offsets = [0, 4], sizes = [8, 1], strides = [1, 1]} : vector<8x8xf32> to vector<8x1xf32>
    %1251 = vector.broadcast %1250 : vector<8x1xf32> to vector<8x8xf32>
    %1252 = arith.mulf %1251, %41 : vector<8x8xf32>
    %1253 = arith.addf %1249, %1252 : vector<8x8xf32>
    %1254 = vector.extract_strided_slice %1193 {offsets = [0, 5], sizes = [8, 1], strides = [1, 1]} : vector<8x8xf32> to vector<8x1xf32>
    %1255 = vector.broadcast %1254 : vector<8x1xf32> to vector<8x8xf32>
    %1256 = arith.mulf %1255, %44 : vector<8x8xf32>
    %1257 = arith.addf %1253, %1256 : vector<8x8xf32>
    %1258 = vector.extract_strided_slice %1193 {offsets = [0, 6], sizes = [8, 1], strides = [1, 1]} : vector<8x8xf32> to vector<8x1xf32>
    %1259 = vector.broadcast %1258 : vector<8x1xf32> to vector<8x8xf32>
    %1260 = arith.mulf %1259, %47 : vector<8x8xf32>
    %1261 = arith.addf %1257, %1260 : vector<8x8xf32>
    %1262 = vector.extract_strided_slice %1193 {offsets = [0, 7], sizes = [8, 1], strides = [1, 1]} : vector<8x8xf32> to vector<8x1xf32>
    %1263 = vector.broadcast %1262 : vector<8x1xf32> to vector<8x8xf32>
    %1264 = arith.mulf %1263, %50 : vector<8x8xf32>
    %1265 = arith.addf %1261, %1264 : vector<8x8xf32>
    %1266 = arith.addf %1234, %1265 : vector<8x8xf32>
    %1267 = math.tanh %1266 : vector<8x8xf32>
    %cst_42 = arith.constant 0.000000e+00 : f32
    %1268 = vector.broadcast %cst_42 : f32 to vector<8x8xf32>
    %1269 = arith.maximumf %1267, %1268 : vector<8x8xf32>
    %1270 = arith.mulf %1269, %56 : vector<8x8xf32>
    %cst_43 = arith.constant dense<0.000000e+00> : vector<8xf32>
    %1271 = vector.multi_reduction <add>, %1270, %cst_43 [1] : vector<8x8xf32> to vector<8xf32>
    %1272 = vector.shape_cast %1271 : vector<8xf32> to vector<8x1xf32>
    %1273 = arith.addf %1272, %59 : vector<8x1xf32>
    %c23_i32 = arith.constant 23 : i32
    %1274 = vector.broadcast %c23_i32 : i32 to vector<8x128xi32>
    %1275 = arith.cmpi eq, %60, %1274 : vector<8x128xi32>
    %1276 = vector.shape_cast %1273 : vector<8x1xf32> to vector<8x1xf32>
    %1277 = vector.broadcast %1276 : vector<8x1xf32> to vector<8x128xf32>
    %1278 = arith.select %1275, %1277, %1202 : vector<8x128xi1>, vector<8x128xf32>
    %1279 = vector.extract_strided_slice %0 {offsets = [0, 16], sizes = [8, 1], strides = [1, 1]} : vector<8x32xf32> to vector<8x1xf32>
    %1280 = vector.broadcast %1279 : vector<8x1xf32> to vector<8x8xf32>
    %1281 = arith.mulf %1280, %5 : vector<8x8xf32>
    %1282 = arith.addf %53, %1281 : vector<8x8xf32>
    %1283 = vector.extract_strided_slice %0 {offsets = [0, 17], sizes = [8, 1], strides = [1, 1]} : vector<8x32xf32> to vector<8x1xf32>
    %1284 = vector.broadcast %1283 : vector<8x1xf32> to vector<8x8xf32>
    %1285 = arith.mulf %1284, %8 : vector<8x8xf32>
    %1286 = arith.addf %1282, %1285 : vector<8x8xf32>
    %1287 = vector.extract_strided_slice %0 {offsets = [0, 18], sizes = [8, 1], strides = [1, 1]} : vector<8x32xf32> to vector<8x1xf32>
    %1288 = vector.broadcast %1287 : vector<8x1xf32> to vector<8x8xf32>
    %1289 = arith.mulf %1288, %11 : vector<8x8xf32>
    %1290 = arith.addf %1286, %1289 : vector<8x8xf32>
    %1291 = vector.extract_strided_slice %0 {offsets = [0, 19], sizes = [8, 1], strides = [1, 1]} : vector<8x32xf32> to vector<8x1xf32>
    %1292 = vector.broadcast %1291 : vector<8x1xf32> to vector<8x8xf32>
    %1293 = arith.mulf %1292, %14 : vector<8x8xf32>
    %1294 = arith.addf %1290, %1293 : vector<8x8xf32>
    %1295 = vector.extract_strided_slice %0 {offsets = [0, 20], sizes = [8, 1], strides = [1, 1]} : vector<8x32xf32> to vector<8x1xf32>
    %1296 = vector.broadcast %1295 : vector<8x1xf32> to vector<8x8xf32>
    %1297 = arith.mulf %1296, %17 : vector<8x8xf32>
    %1298 = arith.addf %1294, %1297 : vector<8x8xf32>
    %1299 = vector.extract_strided_slice %0 {offsets = [0, 21], sizes = [8, 1], strides = [1, 1]} : vector<8x32xf32> to vector<8x1xf32>
    %1300 = vector.broadcast %1299 : vector<8x1xf32> to vector<8x8xf32>
    %1301 = arith.mulf %1300, %20 : vector<8x8xf32>
    %1302 = arith.addf %1298, %1301 : vector<8x8xf32>
    %1303 = vector.extract_strided_slice %0 {offsets = [0, 22], sizes = [8, 1], strides = [1, 1]} : vector<8x32xf32> to vector<8x1xf32>
    %1304 = vector.broadcast %1303 : vector<8x1xf32> to vector<8x8xf32>
    %1305 = arith.mulf %1304, %23 : vector<8x8xf32>
    %1306 = arith.addf %1302, %1305 : vector<8x8xf32>
    %1307 = vector.extract_strided_slice %0 {offsets = [0, 23], sizes = [8, 1], strides = [1, 1]} : vector<8x32xf32> to vector<8x1xf32>
    %1308 = vector.broadcast %1307 : vector<8x1xf32> to vector<8x8xf32>
    %1309 = arith.mulf %1308, %26 : vector<8x8xf32>
    %1310 = arith.addf %1306, %1309 : vector<8x8xf32>
    %1311 = vector.extract_strided_slice %1269 {offsets = [0, 0], sizes = [8, 1], strides = [1, 1]} : vector<8x8xf32> to vector<8x1xf32>
    %1312 = vector.broadcast %1311 : vector<8x1xf32> to vector<8x8xf32>
    %1313 = arith.mulf %1312, %29 : vector<8x8xf32>
    %1314 = vector.extract_strided_slice %1269 {offsets = [0, 1], sizes = [8, 1], strides = [1, 1]} : vector<8x8xf32> to vector<8x1xf32>
    %1315 = vector.broadcast %1314 : vector<8x1xf32> to vector<8x8xf32>
    %1316 = arith.mulf %1315, %32 : vector<8x8xf32>
    %1317 = arith.addf %1313, %1316 : vector<8x8xf32>
    %1318 = vector.extract_strided_slice %1269 {offsets = [0, 2], sizes = [8, 1], strides = [1, 1]} : vector<8x8xf32> to vector<8x1xf32>
    %1319 = vector.broadcast %1318 : vector<8x1xf32> to vector<8x8xf32>
    %1320 = arith.mulf %1319, %35 : vector<8x8xf32>
    %1321 = arith.addf %1317, %1320 : vector<8x8xf32>
    %1322 = vector.extract_strided_slice %1269 {offsets = [0, 3], sizes = [8, 1], strides = [1, 1]} : vector<8x8xf32> to vector<8x1xf32>
    %1323 = vector.broadcast %1322 : vector<8x1xf32> to vector<8x8xf32>
    %1324 = arith.mulf %1323, %38 : vector<8x8xf32>
    %1325 = arith.addf %1321, %1324 : vector<8x8xf32>
    %1326 = vector.extract_strided_slice %1269 {offsets = [0, 4], sizes = [8, 1], strides = [1, 1]} : vector<8x8xf32> to vector<8x1xf32>
    %1327 = vector.broadcast %1326 : vector<8x1xf32> to vector<8x8xf32>
    %1328 = arith.mulf %1327, %41 : vector<8x8xf32>
    %1329 = arith.addf %1325, %1328 : vector<8x8xf32>
    %1330 = vector.extract_strided_slice %1269 {offsets = [0, 5], sizes = [8, 1], strides = [1, 1]} : vector<8x8xf32> to vector<8x1xf32>
    %1331 = vector.broadcast %1330 : vector<8x1xf32> to vector<8x8xf32>
    %1332 = arith.mulf %1331, %44 : vector<8x8xf32>
    %1333 = arith.addf %1329, %1332 : vector<8x8xf32>
    %1334 = vector.extract_strided_slice %1269 {offsets = [0, 6], sizes = [8, 1], strides = [1, 1]} : vector<8x8xf32> to vector<8x1xf32>
    %1335 = vector.broadcast %1334 : vector<8x1xf32> to vector<8x8xf32>
    %1336 = arith.mulf %1335, %47 : vector<8x8xf32>
    %1337 = arith.addf %1333, %1336 : vector<8x8xf32>
    %1338 = vector.extract_strided_slice %1269 {offsets = [0, 7], sizes = [8, 1], strides = [1, 1]} : vector<8x8xf32> to vector<8x1xf32>
    %1339 = vector.broadcast %1338 : vector<8x1xf32> to vector<8x8xf32>
    %1340 = arith.mulf %1339, %50 : vector<8x8xf32>
    %1341 = arith.addf %1337, %1340 : vector<8x8xf32>
    %1342 = arith.addf %1310, %1341 : vector<8x8xf32>
    %1343 = math.tanh %1342 : vector<8x8xf32>
    %cst_44 = arith.constant 0.000000e+00 : f32
    %1344 = vector.broadcast %cst_44 : f32 to vector<8x8xf32>
    %1345 = arith.maximumf %1343, %1344 : vector<8x8xf32>
    %1346 = arith.mulf %1345, %56 : vector<8x8xf32>
    %cst_45 = arith.constant dense<0.000000e+00> : vector<8xf32>
    %1347 = vector.multi_reduction <add>, %1346, %cst_45 [1] : vector<8x8xf32> to vector<8xf32>
    %1348 = vector.shape_cast %1347 : vector<8xf32> to vector<8x1xf32>
    %1349 = arith.addf %1348, %59 : vector<8x1xf32>
    %c24_i32 = arith.constant 24 : i32
    %1350 = vector.broadcast %c24_i32 : i32 to vector<8x128xi32>
    %1351 = arith.cmpi eq, %60, %1350 : vector<8x128xi32>
    %1352 = vector.shape_cast %1349 : vector<8x1xf32> to vector<8x1xf32>
    %1353 = vector.broadcast %1352 : vector<8x1xf32> to vector<8x128xf32>
    %1354 = arith.select %1351, %1353, %1278 : vector<8x128xi1>, vector<8x128xf32>
    %1355 = vector.extract_strided_slice %0 {offsets = [0, 17], sizes = [8, 1], strides = [1, 1]} : vector<8x32xf32> to vector<8x1xf32>
    %1356 = vector.broadcast %1355 : vector<8x1xf32> to vector<8x8xf32>
    %1357 = arith.mulf %1356, %5 : vector<8x8xf32>
    %1358 = arith.addf %53, %1357 : vector<8x8xf32>
    %1359 = vector.extract_strided_slice %0 {offsets = [0, 18], sizes = [8, 1], strides = [1, 1]} : vector<8x32xf32> to vector<8x1xf32>
    %1360 = vector.broadcast %1359 : vector<8x1xf32> to vector<8x8xf32>
    %1361 = arith.mulf %1360, %8 : vector<8x8xf32>
    %1362 = arith.addf %1358, %1361 : vector<8x8xf32>
    %1363 = vector.extract_strided_slice %0 {offsets = [0, 19], sizes = [8, 1], strides = [1, 1]} : vector<8x32xf32> to vector<8x1xf32>
    %1364 = vector.broadcast %1363 : vector<8x1xf32> to vector<8x8xf32>
    %1365 = arith.mulf %1364, %11 : vector<8x8xf32>
    %1366 = arith.addf %1362, %1365 : vector<8x8xf32>
    %1367 = vector.extract_strided_slice %0 {offsets = [0, 20], sizes = [8, 1], strides = [1, 1]} : vector<8x32xf32> to vector<8x1xf32>
    %1368 = vector.broadcast %1367 : vector<8x1xf32> to vector<8x8xf32>
    %1369 = arith.mulf %1368, %14 : vector<8x8xf32>
    %1370 = arith.addf %1366, %1369 : vector<8x8xf32>
    %1371 = vector.extract_strided_slice %0 {offsets = [0, 21], sizes = [8, 1], strides = [1, 1]} : vector<8x32xf32> to vector<8x1xf32>
    %1372 = vector.broadcast %1371 : vector<8x1xf32> to vector<8x8xf32>
    %1373 = arith.mulf %1372, %17 : vector<8x8xf32>
    %1374 = arith.addf %1370, %1373 : vector<8x8xf32>
    %1375 = vector.extract_strided_slice %0 {offsets = [0, 22], sizes = [8, 1], strides = [1, 1]} : vector<8x32xf32> to vector<8x1xf32>
    %1376 = vector.broadcast %1375 : vector<8x1xf32> to vector<8x8xf32>
    %1377 = arith.mulf %1376, %20 : vector<8x8xf32>
    %1378 = arith.addf %1374, %1377 : vector<8x8xf32>
    %1379 = vector.extract_strided_slice %0 {offsets = [0, 23], sizes = [8, 1], strides = [1, 1]} : vector<8x32xf32> to vector<8x1xf32>
    %1380 = vector.broadcast %1379 : vector<8x1xf32> to vector<8x8xf32>
    %1381 = arith.mulf %1380, %23 : vector<8x8xf32>
    %1382 = arith.addf %1378, %1381 : vector<8x8xf32>
    %1383 = vector.extract_strided_slice %0 {offsets = [0, 24], sizes = [8, 1], strides = [1, 1]} : vector<8x32xf32> to vector<8x1xf32>
    %1384 = vector.broadcast %1383 : vector<8x1xf32> to vector<8x8xf32>
    %1385 = arith.mulf %1384, %26 : vector<8x8xf32>
    %1386 = arith.addf %1382, %1385 : vector<8x8xf32>
    %1387 = vector.extract_strided_slice %1345 {offsets = [0, 0], sizes = [8, 1], strides = [1, 1]} : vector<8x8xf32> to vector<8x1xf32>
    %1388 = vector.broadcast %1387 : vector<8x1xf32> to vector<8x8xf32>
    %1389 = arith.mulf %1388, %29 : vector<8x8xf32>
    %1390 = vector.extract_strided_slice %1345 {offsets = [0, 1], sizes = [8, 1], strides = [1, 1]} : vector<8x8xf32> to vector<8x1xf32>
    %1391 = vector.broadcast %1390 : vector<8x1xf32> to vector<8x8xf32>
    %1392 = arith.mulf %1391, %32 : vector<8x8xf32>
    %1393 = arith.addf %1389, %1392 : vector<8x8xf32>
    %1394 = vector.extract_strided_slice %1345 {offsets = [0, 2], sizes = [8, 1], strides = [1, 1]} : vector<8x8xf32> to vector<8x1xf32>
    %1395 = vector.broadcast %1394 : vector<8x1xf32> to vector<8x8xf32>
    %1396 = arith.mulf %1395, %35 : vector<8x8xf32>
    %1397 = arith.addf %1393, %1396 : vector<8x8xf32>
    %1398 = vector.extract_strided_slice %1345 {offsets = [0, 3], sizes = [8, 1], strides = [1, 1]} : vector<8x8xf32> to vector<8x1xf32>
    %1399 = vector.broadcast %1398 : vector<8x1xf32> to vector<8x8xf32>
    %1400 = arith.mulf %1399, %38 : vector<8x8xf32>
    %1401 = arith.addf %1397, %1400 : vector<8x8xf32>
    %1402 = vector.extract_strided_slice %1345 {offsets = [0, 4], sizes = [8, 1], strides = [1, 1]} : vector<8x8xf32> to vector<8x1xf32>
    %1403 = vector.broadcast %1402 : vector<8x1xf32> to vector<8x8xf32>
    %1404 = arith.mulf %1403, %41 : vector<8x8xf32>
    %1405 = arith.addf %1401, %1404 : vector<8x8xf32>
    %1406 = vector.extract_strided_slice %1345 {offsets = [0, 5], sizes = [8, 1], strides = [1, 1]} : vector<8x8xf32> to vector<8x1xf32>
    %1407 = vector.broadcast %1406 : vector<8x1xf32> to vector<8x8xf32>
    %1408 = arith.mulf %1407, %44 : vector<8x8xf32>
    %1409 = arith.addf %1405, %1408 : vector<8x8xf32>
    %1410 = vector.extract_strided_slice %1345 {offsets = [0, 6], sizes = [8, 1], strides = [1, 1]} : vector<8x8xf32> to vector<8x1xf32>
    %1411 = vector.broadcast %1410 : vector<8x1xf32> to vector<8x8xf32>
    %1412 = arith.mulf %1411, %47 : vector<8x8xf32>
    %1413 = arith.addf %1409, %1412 : vector<8x8xf32>
    %1414 = vector.extract_strided_slice %1345 {offsets = [0, 7], sizes = [8, 1], strides = [1, 1]} : vector<8x8xf32> to vector<8x1xf32>
    %1415 = vector.broadcast %1414 : vector<8x1xf32> to vector<8x8xf32>
    %1416 = arith.mulf %1415, %50 : vector<8x8xf32>
    %1417 = arith.addf %1413, %1416 : vector<8x8xf32>
    %1418 = arith.addf %1386, %1417 : vector<8x8xf32>
    %1419 = math.tanh %1418 : vector<8x8xf32>
    %cst_46 = arith.constant 0.000000e+00 : f32
    %1420 = vector.broadcast %cst_46 : f32 to vector<8x8xf32>
    %1421 = arith.maximumf %1419, %1420 : vector<8x8xf32>
    %1422 = arith.mulf %1421, %56 : vector<8x8xf32>
    %cst_47 = arith.constant dense<0.000000e+00> : vector<8xf32>
    %1423 = vector.multi_reduction <add>, %1422, %cst_47 [1] : vector<8x8xf32> to vector<8xf32>
    %1424 = vector.shape_cast %1423 : vector<8xf32> to vector<8x1xf32>
    %1425 = arith.addf %1424, %59 : vector<8x1xf32>
    %c25_i32 = arith.constant 25 : i32
    %1426 = vector.broadcast %c25_i32 : i32 to vector<8x128xi32>
    %1427 = arith.cmpi eq, %60, %1426 : vector<8x128xi32>
    %1428 = vector.shape_cast %1425 : vector<8x1xf32> to vector<8x1xf32>
    %1429 = vector.broadcast %1428 : vector<8x1xf32> to vector<8x128xf32>
    %1430 = arith.select %1427, %1429, %1354 : vector<8x128xi1>, vector<8x128xf32>
    %1431 = vector.extract_strided_slice %0 {offsets = [0, 18], sizes = [8, 1], strides = [1, 1]} : vector<8x32xf32> to vector<8x1xf32>
    %1432 = vector.broadcast %1431 : vector<8x1xf32> to vector<8x8xf32>
    %1433 = arith.mulf %1432, %5 : vector<8x8xf32>
    %1434 = arith.addf %53, %1433 : vector<8x8xf32>
    %1435 = vector.extract_strided_slice %0 {offsets = [0, 19], sizes = [8, 1], strides = [1, 1]} : vector<8x32xf32> to vector<8x1xf32>
    %1436 = vector.broadcast %1435 : vector<8x1xf32> to vector<8x8xf32>
    %1437 = arith.mulf %1436, %8 : vector<8x8xf32>
    %1438 = arith.addf %1434, %1437 : vector<8x8xf32>
    %1439 = vector.extract_strided_slice %0 {offsets = [0, 20], sizes = [8, 1], strides = [1, 1]} : vector<8x32xf32> to vector<8x1xf32>
    %1440 = vector.broadcast %1439 : vector<8x1xf32> to vector<8x8xf32>
    %1441 = arith.mulf %1440, %11 : vector<8x8xf32>
    %1442 = arith.addf %1438, %1441 : vector<8x8xf32>
    %1443 = vector.extract_strided_slice %0 {offsets = [0, 21], sizes = [8, 1], strides = [1, 1]} : vector<8x32xf32> to vector<8x1xf32>
    %1444 = vector.broadcast %1443 : vector<8x1xf32> to vector<8x8xf32>
    %1445 = arith.mulf %1444, %14 : vector<8x8xf32>
    %1446 = arith.addf %1442, %1445 : vector<8x8xf32>
    %1447 = vector.extract_strided_slice %0 {offsets = [0, 22], sizes = [8, 1], strides = [1, 1]} : vector<8x32xf32> to vector<8x1xf32>
    %1448 = vector.broadcast %1447 : vector<8x1xf32> to vector<8x8xf32>
    %1449 = arith.mulf %1448, %17 : vector<8x8xf32>
    %1450 = arith.addf %1446, %1449 : vector<8x8xf32>
    %1451 = vector.extract_strided_slice %0 {offsets = [0, 23], sizes = [8, 1], strides = [1, 1]} : vector<8x32xf32> to vector<8x1xf32>
    %1452 = vector.broadcast %1451 : vector<8x1xf32> to vector<8x8xf32>
    %1453 = arith.mulf %1452, %20 : vector<8x8xf32>
    %1454 = arith.addf %1450, %1453 : vector<8x8xf32>
    %1455 = vector.extract_strided_slice %0 {offsets = [0, 24], sizes = [8, 1], strides = [1, 1]} : vector<8x32xf32> to vector<8x1xf32>
    %1456 = vector.broadcast %1455 : vector<8x1xf32> to vector<8x8xf32>
    %1457 = arith.mulf %1456, %23 : vector<8x8xf32>
    %1458 = arith.addf %1454, %1457 : vector<8x8xf32>
    %1459 = vector.extract_strided_slice %0 {offsets = [0, 25], sizes = [8, 1], strides = [1, 1]} : vector<8x32xf32> to vector<8x1xf32>
    %1460 = vector.broadcast %1459 : vector<8x1xf32> to vector<8x8xf32>
    %1461 = arith.mulf %1460, %26 : vector<8x8xf32>
    %1462 = arith.addf %1458, %1461 : vector<8x8xf32>
    %1463 = vector.extract_strided_slice %1421 {offsets = [0, 0], sizes = [8, 1], strides = [1, 1]} : vector<8x8xf32> to vector<8x1xf32>
    %1464 = vector.broadcast %1463 : vector<8x1xf32> to vector<8x8xf32>
    %1465 = arith.mulf %1464, %29 : vector<8x8xf32>
    %1466 = vector.extract_strided_slice %1421 {offsets = [0, 1], sizes = [8, 1], strides = [1, 1]} : vector<8x8xf32> to vector<8x1xf32>
    %1467 = vector.broadcast %1466 : vector<8x1xf32> to vector<8x8xf32>
    %1468 = arith.mulf %1467, %32 : vector<8x8xf32>
    %1469 = arith.addf %1465, %1468 : vector<8x8xf32>
    %1470 = vector.extract_strided_slice %1421 {offsets = [0, 2], sizes = [8, 1], strides = [1, 1]} : vector<8x8xf32> to vector<8x1xf32>
    %1471 = vector.broadcast %1470 : vector<8x1xf32> to vector<8x8xf32>
    %1472 = arith.mulf %1471, %35 : vector<8x8xf32>
    %1473 = arith.addf %1469, %1472 : vector<8x8xf32>
    %1474 = vector.extract_strided_slice %1421 {offsets = [0, 3], sizes = [8, 1], strides = [1, 1]} : vector<8x8xf32> to vector<8x1xf32>
    %1475 = vector.broadcast %1474 : vector<8x1xf32> to vector<8x8xf32>
    %1476 = arith.mulf %1475, %38 : vector<8x8xf32>
    %1477 = arith.addf %1473, %1476 : vector<8x8xf32>
    %1478 = vector.extract_strided_slice %1421 {offsets = [0, 4], sizes = [8, 1], strides = [1, 1]} : vector<8x8xf32> to vector<8x1xf32>
    %1479 = vector.broadcast %1478 : vector<8x1xf32> to vector<8x8xf32>
    %1480 = arith.mulf %1479, %41 : vector<8x8xf32>
    %1481 = arith.addf %1477, %1480 : vector<8x8xf32>
    %1482 = vector.extract_strided_slice %1421 {offsets = [0, 5], sizes = [8, 1], strides = [1, 1]} : vector<8x8xf32> to vector<8x1xf32>
    %1483 = vector.broadcast %1482 : vector<8x1xf32> to vector<8x8xf32>
    %1484 = arith.mulf %1483, %44 : vector<8x8xf32>
    %1485 = arith.addf %1481, %1484 : vector<8x8xf32>
    %1486 = vector.extract_strided_slice %1421 {offsets = [0, 6], sizes = [8, 1], strides = [1, 1]} : vector<8x8xf32> to vector<8x1xf32>
    %1487 = vector.broadcast %1486 : vector<8x1xf32> to vector<8x8xf32>
    %1488 = arith.mulf %1487, %47 : vector<8x8xf32>
    %1489 = arith.addf %1485, %1488 : vector<8x8xf32>
    %1490 = vector.extract_strided_slice %1421 {offsets = [0, 7], sizes = [8, 1], strides = [1, 1]} : vector<8x8xf32> to vector<8x1xf32>
    %1491 = vector.broadcast %1490 : vector<8x1xf32> to vector<8x8xf32>
    %1492 = arith.mulf %1491, %50 : vector<8x8xf32>
    %1493 = arith.addf %1489, %1492 : vector<8x8xf32>
    %1494 = arith.addf %1462, %1493 : vector<8x8xf32>
    %1495 = math.tanh %1494 : vector<8x8xf32>
    %cst_48 = arith.constant 0.000000e+00 : f32
    %1496 = vector.broadcast %cst_48 : f32 to vector<8x8xf32>
    %1497 = arith.maximumf %1495, %1496 : vector<8x8xf32>
    %1498 = arith.mulf %1497, %56 : vector<8x8xf32>
    %cst_49 = arith.constant dense<0.000000e+00> : vector<8xf32>
    %1499 = vector.multi_reduction <add>, %1498, %cst_49 [1] : vector<8x8xf32> to vector<8xf32>
    %1500 = vector.shape_cast %1499 : vector<8xf32> to vector<8x1xf32>
    %1501 = arith.addf %1500, %59 : vector<8x1xf32>
    %c26_i32 = arith.constant 26 : i32
    %1502 = vector.broadcast %c26_i32 : i32 to vector<8x128xi32>
    %1503 = arith.cmpi eq, %60, %1502 : vector<8x128xi32>
    %1504 = vector.shape_cast %1501 : vector<8x1xf32> to vector<8x1xf32>
    %1505 = vector.broadcast %1504 : vector<8x1xf32> to vector<8x128xf32>
    %1506 = arith.select %1503, %1505, %1430 : vector<8x128xi1>, vector<8x128xf32>
    %1507 = vector.extract_strided_slice %0 {offsets = [0, 19], sizes = [8, 1], strides = [1, 1]} : vector<8x32xf32> to vector<8x1xf32>
    %1508 = vector.broadcast %1507 : vector<8x1xf32> to vector<8x8xf32>
    %1509 = arith.mulf %1508, %5 : vector<8x8xf32>
    %1510 = arith.addf %53, %1509 : vector<8x8xf32>
    %1511 = vector.extract_strided_slice %0 {offsets = [0, 20], sizes = [8, 1], strides = [1, 1]} : vector<8x32xf32> to vector<8x1xf32>
    %1512 = vector.broadcast %1511 : vector<8x1xf32> to vector<8x8xf32>
    %1513 = arith.mulf %1512, %8 : vector<8x8xf32>
    %1514 = arith.addf %1510, %1513 : vector<8x8xf32>
    %1515 = vector.extract_strided_slice %0 {offsets = [0, 21], sizes = [8, 1], strides = [1, 1]} : vector<8x32xf32> to vector<8x1xf32>
    %1516 = vector.broadcast %1515 : vector<8x1xf32> to vector<8x8xf32>
    %1517 = arith.mulf %1516, %11 : vector<8x8xf32>
    %1518 = arith.addf %1514, %1517 : vector<8x8xf32>
    %1519 = vector.extract_strided_slice %0 {offsets = [0, 22], sizes = [8, 1], strides = [1, 1]} : vector<8x32xf32> to vector<8x1xf32>
    %1520 = vector.broadcast %1519 : vector<8x1xf32> to vector<8x8xf32>
    %1521 = arith.mulf %1520, %14 : vector<8x8xf32>
    %1522 = arith.addf %1518, %1521 : vector<8x8xf32>
    %1523 = vector.extract_strided_slice %0 {offsets = [0, 23], sizes = [8, 1], strides = [1, 1]} : vector<8x32xf32> to vector<8x1xf32>
    %1524 = vector.broadcast %1523 : vector<8x1xf32> to vector<8x8xf32>
    %1525 = arith.mulf %1524, %17 : vector<8x8xf32>
    %1526 = arith.addf %1522, %1525 : vector<8x8xf32>
    %1527 = vector.extract_strided_slice %0 {offsets = [0, 24], sizes = [8, 1], strides = [1, 1]} : vector<8x32xf32> to vector<8x1xf32>
    %1528 = vector.broadcast %1527 : vector<8x1xf32> to vector<8x8xf32>
    %1529 = arith.mulf %1528, %20 : vector<8x8xf32>
    %1530 = arith.addf %1526, %1529 : vector<8x8xf32>
    %1531 = vector.extract_strided_slice %0 {offsets = [0, 25], sizes = [8, 1], strides = [1, 1]} : vector<8x32xf32> to vector<8x1xf32>
    %1532 = vector.broadcast %1531 : vector<8x1xf32> to vector<8x8xf32>
    %1533 = arith.mulf %1532, %23 : vector<8x8xf32>
    %1534 = arith.addf %1530, %1533 : vector<8x8xf32>
    %1535 = vector.extract_strided_slice %0 {offsets = [0, 26], sizes = [8, 1], strides = [1, 1]} : vector<8x32xf32> to vector<8x1xf32>
    %1536 = vector.broadcast %1535 : vector<8x1xf32> to vector<8x8xf32>
    %1537 = arith.mulf %1536, %26 : vector<8x8xf32>
    %1538 = arith.addf %1534, %1537 : vector<8x8xf32>
    %1539 = vector.extract_strided_slice %1497 {offsets = [0, 0], sizes = [8, 1], strides = [1, 1]} : vector<8x8xf32> to vector<8x1xf32>
    %1540 = vector.broadcast %1539 : vector<8x1xf32> to vector<8x8xf32>
    %1541 = arith.mulf %1540, %29 : vector<8x8xf32>
    %1542 = vector.extract_strided_slice %1497 {offsets = [0, 1], sizes = [8, 1], strides = [1, 1]} : vector<8x8xf32> to vector<8x1xf32>
    %1543 = vector.broadcast %1542 : vector<8x1xf32> to vector<8x8xf32>
    %1544 = arith.mulf %1543, %32 : vector<8x8xf32>
    %1545 = arith.addf %1541, %1544 : vector<8x8xf32>
    %1546 = vector.extract_strided_slice %1497 {offsets = [0, 2], sizes = [8, 1], strides = [1, 1]} : vector<8x8xf32> to vector<8x1xf32>
    %1547 = vector.broadcast %1546 : vector<8x1xf32> to vector<8x8xf32>
    %1548 = arith.mulf %1547, %35 : vector<8x8xf32>
    %1549 = arith.addf %1545, %1548 : vector<8x8xf32>
    %1550 = vector.extract_strided_slice %1497 {offsets = [0, 3], sizes = [8, 1], strides = [1, 1]} : vector<8x8xf32> to vector<8x1xf32>
    %1551 = vector.broadcast %1550 : vector<8x1xf32> to vector<8x8xf32>
    %1552 = arith.mulf %1551, %38 : vector<8x8xf32>
    %1553 = arith.addf %1549, %1552 : vector<8x8xf32>
    %1554 = vector.extract_strided_slice %1497 {offsets = [0, 4], sizes = [8, 1], strides = [1, 1]} : vector<8x8xf32> to vector<8x1xf32>
    %1555 = vector.broadcast %1554 : vector<8x1xf32> to vector<8x8xf32>
    %1556 = arith.mulf %1555, %41 : vector<8x8xf32>
    %1557 = arith.addf %1553, %1556 : vector<8x8xf32>
    %1558 = vector.extract_strided_slice %1497 {offsets = [0, 5], sizes = [8, 1], strides = [1, 1]} : vector<8x8xf32> to vector<8x1xf32>
    %1559 = vector.broadcast %1558 : vector<8x1xf32> to vector<8x8xf32>
    %1560 = arith.mulf %1559, %44 : vector<8x8xf32>
    %1561 = arith.addf %1557, %1560 : vector<8x8xf32>
    %1562 = vector.extract_strided_slice %1497 {offsets = [0, 6], sizes = [8, 1], strides = [1, 1]} : vector<8x8xf32> to vector<8x1xf32>
    %1563 = vector.broadcast %1562 : vector<8x1xf32> to vector<8x8xf32>
    %1564 = arith.mulf %1563, %47 : vector<8x8xf32>
    %1565 = arith.addf %1561, %1564 : vector<8x8xf32>
    %1566 = vector.extract_strided_slice %1497 {offsets = [0, 7], sizes = [8, 1], strides = [1, 1]} : vector<8x8xf32> to vector<8x1xf32>
    %1567 = vector.broadcast %1566 : vector<8x1xf32> to vector<8x8xf32>
    %1568 = arith.mulf %1567, %50 : vector<8x8xf32>
    %1569 = arith.addf %1565, %1568 : vector<8x8xf32>
    %1570 = arith.addf %1538, %1569 : vector<8x8xf32>
    %1571 = math.tanh %1570 : vector<8x8xf32>
    %cst_50 = arith.constant 0.000000e+00 : f32
    %1572 = vector.broadcast %cst_50 : f32 to vector<8x8xf32>
    %1573 = arith.maximumf %1571, %1572 : vector<8x8xf32>
    %1574 = arith.mulf %1573, %56 : vector<8x8xf32>
    %cst_51 = arith.constant dense<0.000000e+00> : vector<8xf32>
    %1575 = vector.multi_reduction <add>, %1574, %cst_51 [1] : vector<8x8xf32> to vector<8xf32>
    %1576 = vector.shape_cast %1575 : vector<8xf32> to vector<8x1xf32>
    %1577 = arith.addf %1576, %59 : vector<8x1xf32>
    %c27_i32 = arith.constant 27 : i32
    %1578 = vector.broadcast %c27_i32 : i32 to vector<8x128xi32>
    %1579 = arith.cmpi eq, %60, %1578 : vector<8x128xi32>
    %1580 = vector.shape_cast %1577 : vector<8x1xf32> to vector<8x1xf32>
    %1581 = vector.broadcast %1580 : vector<8x1xf32> to vector<8x128xf32>
    %1582 = arith.select %1579, %1581, %1506 : vector<8x128xi1>, vector<8x128xf32>
    %1583 = vector.extract_strided_slice %0 {offsets = [0, 20], sizes = [8, 1], strides = [1, 1]} : vector<8x32xf32> to vector<8x1xf32>
    %1584 = vector.broadcast %1583 : vector<8x1xf32> to vector<8x8xf32>
    %1585 = arith.mulf %1584, %5 : vector<8x8xf32>
    %1586 = arith.addf %53, %1585 : vector<8x8xf32>
    %1587 = vector.extract_strided_slice %0 {offsets = [0, 21], sizes = [8, 1], strides = [1, 1]} : vector<8x32xf32> to vector<8x1xf32>
    %1588 = vector.broadcast %1587 : vector<8x1xf32> to vector<8x8xf32>
    %1589 = arith.mulf %1588, %8 : vector<8x8xf32>
    %1590 = arith.addf %1586, %1589 : vector<8x8xf32>
    %1591 = vector.extract_strided_slice %0 {offsets = [0, 22], sizes = [8, 1], strides = [1, 1]} : vector<8x32xf32> to vector<8x1xf32>
    %1592 = vector.broadcast %1591 : vector<8x1xf32> to vector<8x8xf32>
    %1593 = arith.mulf %1592, %11 : vector<8x8xf32>
    %1594 = arith.addf %1590, %1593 : vector<8x8xf32>
    %1595 = vector.extract_strided_slice %0 {offsets = [0, 23], sizes = [8, 1], strides = [1, 1]} : vector<8x32xf32> to vector<8x1xf32>
    %1596 = vector.broadcast %1595 : vector<8x1xf32> to vector<8x8xf32>
    %1597 = arith.mulf %1596, %14 : vector<8x8xf32>
    %1598 = arith.addf %1594, %1597 : vector<8x8xf32>
    %1599 = vector.extract_strided_slice %0 {offsets = [0, 24], sizes = [8, 1], strides = [1, 1]} : vector<8x32xf32> to vector<8x1xf32>
    %1600 = vector.broadcast %1599 : vector<8x1xf32> to vector<8x8xf32>
    %1601 = arith.mulf %1600, %17 : vector<8x8xf32>
    %1602 = arith.addf %1598, %1601 : vector<8x8xf32>
    %1603 = vector.extract_strided_slice %0 {offsets = [0, 25], sizes = [8, 1], strides = [1, 1]} : vector<8x32xf32> to vector<8x1xf32>
    %1604 = vector.broadcast %1603 : vector<8x1xf32> to vector<8x8xf32>
    %1605 = arith.mulf %1604, %20 : vector<8x8xf32>
    %1606 = arith.addf %1602, %1605 : vector<8x8xf32>
    %1607 = vector.extract_strided_slice %0 {offsets = [0, 26], sizes = [8, 1], strides = [1, 1]} : vector<8x32xf32> to vector<8x1xf32>
    %1608 = vector.broadcast %1607 : vector<8x1xf32> to vector<8x8xf32>
    %1609 = arith.mulf %1608, %23 : vector<8x8xf32>
    %1610 = arith.addf %1606, %1609 : vector<8x8xf32>
    %1611 = vector.extract_strided_slice %0 {offsets = [0, 27], sizes = [8, 1], strides = [1, 1]} : vector<8x32xf32> to vector<8x1xf32>
    %1612 = vector.broadcast %1611 : vector<8x1xf32> to vector<8x8xf32>
    %1613 = arith.mulf %1612, %26 : vector<8x8xf32>
    %1614 = arith.addf %1610, %1613 : vector<8x8xf32>
    %1615 = vector.extract_strided_slice %1573 {offsets = [0, 0], sizes = [8, 1], strides = [1, 1]} : vector<8x8xf32> to vector<8x1xf32>
    %1616 = vector.broadcast %1615 : vector<8x1xf32> to vector<8x8xf32>
    %1617 = arith.mulf %1616, %29 : vector<8x8xf32>
    %1618 = vector.extract_strided_slice %1573 {offsets = [0, 1], sizes = [8, 1], strides = [1, 1]} : vector<8x8xf32> to vector<8x1xf32>
    %1619 = vector.broadcast %1618 : vector<8x1xf32> to vector<8x8xf32>
    %1620 = arith.mulf %1619, %32 : vector<8x8xf32>
    %1621 = arith.addf %1617, %1620 : vector<8x8xf32>
    %1622 = vector.extract_strided_slice %1573 {offsets = [0, 2], sizes = [8, 1], strides = [1, 1]} : vector<8x8xf32> to vector<8x1xf32>
    %1623 = vector.broadcast %1622 : vector<8x1xf32> to vector<8x8xf32>
    %1624 = arith.mulf %1623, %35 : vector<8x8xf32>
    %1625 = arith.addf %1621, %1624 : vector<8x8xf32>
    %1626 = vector.extract_strided_slice %1573 {offsets = [0, 3], sizes = [8, 1], strides = [1, 1]} : vector<8x8xf32> to vector<8x1xf32>
    %1627 = vector.broadcast %1626 : vector<8x1xf32> to vector<8x8xf32>
    %1628 = arith.mulf %1627, %38 : vector<8x8xf32>
    %1629 = arith.addf %1625, %1628 : vector<8x8xf32>
    %1630 = vector.extract_strided_slice %1573 {offsets = [0, 4], sizes = [8, 1], strides = [1, 1]} : vector<8x8xf32> to vector<8x1xf32>
    %1631 = vector.broadcast %1630 : vector<8x1xf32> to vector<8x8xf32>
    %1632 = arith.mulf %1631, %41 : vector<8x8xf32>
    %1633 = arith.addf %1629, %1632 : vector<8x8xf32>
    %1634 = vector.extract_strided_slice %1573 {offsets = [0, 5], sizes = [8, 1], strides = [1, 1]} : vector<8x8xf32> to vector<8x1xf32>
    %1635 = vector.broadcast %1634 : vector<8x1xf32> to vector<8x8xf32>
    %1636 = arith.mulf %1635, %44 : vector<8x8xf32>
    %1637 = arith.addf %1633, %1636 : vector<8x8xf32>
    %1638 = vector.extract_strided_slice %1573 {offsets = [0, 6], sizes = [8, 1], strides = [1, 1]} : vector<8x8xf32> to vector<8x1xf32>
    %1639 = vector.broadcast %1638 : vector<8x1xf32> to vector<8x8xf32>
    %1640 = arith.mulf %1639, %47 : vector<8x8xf32>
    %1641 = arith.addf %1637, %1640 : vector<8x8xf32>
    %1642 = vector.extract_strided_slice %1573 {offsets = [0, 7], sizes = [8, 1], strides = [1, 1]} : vector<8x8xf32> to vector<8x1xf32>
    %1643 = vector.broadcast %1642 : vector<8x1xf32> to vector<8x8xf32>
    %1644 = arith.mulf %1643, %50 : vector<8x8xf32>
    %1645 = arith.addf %1641, %1644 : vector<8x8xf32>
    %1646 = arith.addf %1614, %1645 : vector<8x8xf32>
    %1647 = math.tanh %1646 : vector<8x8xf32>
    %cst_52 = arith.constant 0.000000e+00 : f32
    %1648 = vector.broadcast %cst_52 : f32 to vector<8x8xf32>
    %1649 = arith.maximumf %1647, %1648 : vector<8x8xf32>
    %1650 = arith.mulf %1649, %56 : vector<8x8xf32>
    %cst_53 = arith.constant dense<0.000000e+00> : vector<8xf32>
    %1651 = vector.multi_reduction <add>, %1650, %cst_53 [1] : vector<8x8xf32> to vector<8xf32>
    %1652 = vector.shape_cast %1651 : vector<8xf32> to vector<8x1xf32>
    %1653 = arith.addf %1652, %59 : vector<8x1xf32>
    %c28_i32 = arith.constant 28 : i32
    %1654 = vector.broadcast %c28_i32 : i32 to vector<8x128xi32>
    %1655 = arith.cmpi eq, %60, %1654 : vector<8x128xi32>
    %1656 = vector.shape_cast %1653 : vector<8x1xf32> to vector<8x1xf32>
    %1657 = vector.broadcast %1656 : vector<8x1xf32> to vector<8x128xf32>
    %1658 = arith.select %1655, %1657, %1582 : vector<8x128xi1>, vector<8x128xf32>
    %1659 = vector.extract_strided_slice %0 {offsets = [0, 21], sizes = [8, 1], strides = [1, 1]} : vector<8x32xf32> to vector<8x1xf32>
    %1660 = vector.broadcast %1659 : vector<8x1xf32> to vector<8x8xf32>
    %1661 = arith.mulf %1660, %5 : vector<8x8xf32>
    %1662 = arith.addf %53, %1661 : vector<8x8xf32>
    %1663 = vector.extract_strided_slice %0 {offsets = [0, 22], sizes = [8, 1], strides = [1, 1]} : vector<8x32xf32> to vector<8x1xf32>
    %1664 = vector.broadcast %1663 : vector<8x1xf32> to vector<8x8xf32>
    %1665 = arith.mulf %1664, %8 : vector<8x8xf32>
    %1666 = arith.addf %1662, %1665 : vector<8x8xf32>
    %1667 = vector.extract_strided_slice %0 {offsets = [0, 23], sizes = [8, 1], strides = [1, 1]} : vector<8x32xf32> to vector<8x1xf32>
    %1668 = vector.broadcast %1667 : vector<8x1xf32> to vector<8x8xf32>
    %1669 = arith.mulf %1668, %11 : vector<8x8xf32>
    %1670 = arith.addf %1666, %1669 : vector<8x8xf32>
    %1671 = vector.extract_strided_slice %0 {offsets = [0, 24], sizes = [8, 1], strides = [1, 1]} : vector<8x32xf32> to vector<8x1xf32>
    %1672 = vector.broadcast %1671 : vector<8x1xf32> to vector<8x8xf32>
    %1673 = arith.mulf %1672, %14 : vector<8x8xf32>
    %1674 = arith.addf %1670, %1673 : vector<8x8xf32>
    %1675 = vector.extract_strided_slice %0 {offsets = [0, 25], sizes = [8, 1], strides = [1, 1]} : vector<8x32xf32> to vector<8x1xf32>
    %1676 = vector.broadcast %1675 : vector<8x1xf32> to vector<8x8xf32>
    %1677 = arith.mulf %1676, %17 : vector<8x8xf32>
    %1678 = arith.addf %1674, %1677 : vector<8x8xf32>
    %1679 = vector.extract_strided_slice %0 {offsets = [0, 26], sizes = [8, 1], strides = [1, 1]} : vector<8x32xf32> to vector<8x1xf32>
    %1680 = vector.broadcast %1679 : vector<8x1xf32> to vector<8x8xf32>
    %1681 = arith.mulf %1680, %20 : vector<8x8xf32>
    %1682 = arith.addf %1678, %1681 : vector<8x8xf32>
    %1683 = vector.extract_strided_slice %0 {offsets = [0, 27], sizes = [8, 1], strides = [1, 1]} : vector<8x32xf32> to vector<8x1xf32>
    %1684 = vector.broadcast %1683 : vector<8x1xf32> to vector<8x8xf32>
    %1685 = arith.mulf %1684, %23 : vector<8x8xf32>
    %1686 = arith.addf %1682, %1685 : vector<8x8xf32>
    %1687 = vector.extract_strided_slice %0 {offsets = [0, 28], sizes = [8, 1], strides = [1, 1]} : vector<8x32xf32> to vector<8x1xf32>
    %1688 = vector.broadcast %1687 : vector<8x1xf32> to vector<8x8xf32>
    %1689 = arith.mulf %1688, %26 : vector<8x8xf32>
    %1690 = arith.addf %1686, %1689 : vector<8x8xf32>
    %1691 = vector.extract_strided_slice %1649 {offsets = [0, 0], sizes = [8, 1], strides = [1, 1]} : vector<8x8xf32> to vector<8x1xf32>
    %1692 = vector.broadcast %1691 : vector<8x1xf32> to vector<8x8xf32>
    %1693 = arith.mulf %1692, %29 : vector<8x8xf32>
    %1694 = vector.extract_strided_slice %1649 {offsets = [0, 1], sizes = [8, 1], strides = [1, 1]} : vector<8x8xf32> to vector<8x1xf32>
    %1695 = vector.broadcast %1694 : vector<8x1xf32> to vector<8x8xf32>
    %1696 = arith.mulf %1695, %32 : vector<8x8xf32>
    %1697 = arith.addf %1693, %1696 : vector<8x8xf32>
    %1698 = vector.extract_strided_slice %1649 {offsets = [0, 2], sizes = [8, 1], strides = [1, 1]} : vector<8x8xf32> to vector<8x1xf32>
    %1699 = vector.broadcast %1698 : vector<8x1xf32> to vector<8x8xf32>
    %1700 = arith.mulf %1699, %35 : vector<8x8xf32>
    %1701 = arith.addf %1697, %1700 : vector<8x8xf32>
    %1702 = vector.extract_strided_slice %1649 {offsets = [0, 3], sizes = [8, 1], strides = [1, 1]} : vector<8x8xf32> to vector<8x1xf32>
    %1703 = vector.broadcast %1702 : vector<8x1xf32> to vector<8x8xf32>
    %1704 = arith.mulf %1703, %38 : vector<8x8xf32>
    %1705 = arith.addf %1701, %1704 : vector<8x8xf32>
    %1706 = vector.extract_strided_slice %1649 {offsets = [0, 4], sizes = [8, 1], strides = [1, 1]} : vector<8x8xf32> to vector<8x1xf32>
    %1707 = vector.broadcast %1706 : vector<8x1xf32> to vector<8x8xf32>
    %1708 = arith.mulf %1707, %41 : vector<8x8xf32>
    %1709 = arith.addf %1705, %1708 : vector<8x8xf32>
    %1710 = vector.extract_strided_slice %1649 {offsets = [0, 5], sizes = [8, 1], strides = [1, 1]} : vector<8x8xf32> to vector<8x1xf32>
    %1711 = vector.broadcast %1710 : vector<8x1xf32> to vector<8x8xf32>
    %1712 = arith.mulf %1711, %44 : vector<8x8xf32>
    %1713 = arith.addf %1709, %1712 : vector<8x8xf32>
    %1714 = vector.extract_strided_slice %1649 {offsets = [0, 6], sizes = [8, 1], strides = [1, 1]} : vector<8x8xf32> to vector<8x1xf32>
    %1715 = vector.broadcast %1714 : vector<8x1xf32> to vector<8x8xf32>
    %1716 = arith.mulf %1715, %47 : vector<8x8xf32>
    %1717 = arith.addf %1713, %1716 : vector<8x8xf32>
    %1718 = vector.extract_strided_slice %1649 {offsets = [0, 7], sizes = [8, 1], strides = [1, 1]} : vector<8x8xf32> to vector<8x1xf32>
    %1719 = vector.broadcast %1718 : vector<8x1xf32> to vector<8x8xf32>
    %1720 = arith.mulf %1719, %50 : vector<8x8xf32>
    %1721 = arith.addf %1717, %1720 : vector<8x8xf32>
    %1722 = arith.addf %1690, %1721 : vector<8x8xf32>
    %1723 = math.tanh %1722 : vector<8x8xf32>
    %cst_54 = arith.constant 0.000000e+00 : f32
    %1724 = vector.broadcast %cst_54 : f32 to vector<8x8xf32>
    %1725 = arith.maximumf %1723, %1724 : vector<8x8xf32>
    %1726 = arith.mulf %1725, %56 : vector<8x8xf32>
    %cst_55 = arith.constant dense<0.000000e+00> : vector<8xf32>
    %1727 = vector.multi_reduction <add>, %1726, %cst_55 [1] : vector<8x8xf32> to vector<8xf32>
    %1728 = vector.shape_cast %1727 : vector<8xf32> to vector<8x1xf32>
    %1729 = arith.addf %1728, %59 : vector<8x1xf32>
    %c29_i32 = arith.constant 29 : i32
    %1730 = vector.broadcast %c29_i32 : i32 to vector<8x128xi32>
    %1731 = arith.cmpi eq, %60, %1730 : vector<8x128xi32>
    %1732 = vector.shape_cast %1729 : vector<8x1xf32> to vector<8x1xf32>
    %1733 = vector.broadcast %1732 : vector<8x1xf32> to vector<8x128xf32>
    %1734 = arith.select %1731, %1733, %1658 : vector<8x128xi1>, vector<8x128xf32>
    %1735 = vector.extract_strided_slice %0 {offsets = [0, 22], sizes = [8, 1], strides = [1, 1]} : vector<8x32xf32> to vector<8x1xf32>
    %1736 = vector.broadcast %1735 : vector<8x1xf32> to vector<8x8xf32>
    %1737 = arith.mulf %1736, %5 : vector<8x8xf32>
    %1738 = arith.addf %53, %1737 : vector<8x8xf32>
    %1739 = vector.extract_strided_slice %0 {offsets = [0, 23], sizes = [8, 1], strides = [1, 1]} : vector<8x32xf32> to vector<8x1xf32>
    %1740 = vector.broadcast %1739 : vector<8x1xf32> to vector<8x8xf32>
    %1741 = arith.mulf %1740, %8 : vector<8x8xf32>
    %1742 = arith.addf %1738, %1741 : vector<8x8xf32>
    %1743 = vector.extract_strided_slice %0 {offsets = [0, 24], sizes = [8, 1], strides = [1, 1]} : vector<8x32xf32> to vector<8x1xf32>
    %1744 = vector.broadcast %1743 : vector<8x1xf32> to vector<8x8xf32>
    %1745 = arith.mulf %1744, %11 : vector<8x8xf32>
    %1746 = arith.addf %1742, %1745 : vector<8x8xf32>
    %1747 = vector.extract_strided_slice %0 {offsets = [0, 25], sizes = [8, 1], strides = [1, 1]} : vector<8x32xf32> to vector<8x1xf32>
    %1748 = vector.broadcast %1747 : vector<8x1xf32> to vector<8x8xf32>
    %1749 = arith.mulf %1748, %14 : vector<8x8xf32>
    %1750 = arith.addf %1746, %1749 : vector<8x8xf32>
    %1751 = vector.extract_strided_slice %0 {offsets = [0, 26], sizes = [8, 1], strides = [1, 1]} : vector<8x32xf32> to vector<8x1xf32>
    %1752 = vector.broadcast %1751 : vector<8x1xf32> to vector<8x8xf32>
    %1753 = arith.mulf %1752, %17 : vector<8x8xf32>
    %1754 = arith.addf %1750, %1753 : vector<8x8xf32>
    %1755 = vector.extract_strided_slice %0 {offsets = [0, 27], sizes = [8, 1], strides = [1, 1]} : vector<8x32xf32> to vector<8x1xf32>
    %1756 = vector.broadcast %1755 : vector<8x1xf32> to vector<8x8xf32>
    %1757 = arith.mulf %1756, %20 : vector<8x8xf32>
    %1758 = arith.addf %1754, %1757 : vector<8x8xf32>
    %1759 = vector.extract_strided_slice %0 {offsets = [0, 28], sizes = [8, 1], strides = [1, 1]} : vector<8x32xf32> to vector<8x1xf32>
    %1760 = vector.broadcast %1759 : vector<8x1xf32> to vector<8x8xf32>
    %1761 = arith.mulf %1760, %23 : vector<8x8xf32>
    %1762 = arith.addf %1758, %1761 : vector<8x8xf32>
    %1763 = vector.extract_strided_slice %0 {offsets = [0, 29], sizes = [8, 1], strides = [1, 1]} : vector<8x32xf32> to vector<8x1xf32>
    %1764 = vector.broadcast %1763 : vector<8x1xf32> to vector<8x8xf32>
    %1765 = arith.mulf %1764, %26 : vector<8x8xf32>
    %1766 = arith.addf %1762, %1765 : vector<8x8xf32>
    %1767 = vector.extract_strided_slice %1725 {offsets = [0, 0], sizes = [8, 1], strides = [1, 1]} : vector<8x8xf32> to vector<8x1xf32>
    %1768 = vector.broadcast %1767 : vector<8x1xf32> to vector<8x8xf32>
    %1769 = arith.mulf %1768, %29 : vector<8x8xf32>
    %1770 = vector.extract_strided_slice %1725 {offsets = [0, 1], sizes = [8, 1], strides = [1, 1]} : vector<8x8xf32> to vector<8x1xf32>
    %1771 = vector.broadcast %1770 : vector<8x1xf32> to vector<8x8xf32>
    %1772 = arith.mulf %1771, %32 : vector<8x8xf32>
    %1773 = arith.addf %1769, %1772 : vector<8x8xf32>
    %1774 = vector.extract_strided_slice %1725 {offsets = [0, 2], sizes = [8, 1], strides = [1, 1]} : vector<8x8xf32> to vector<8x1xf32>
    %1775 = vector.broadcast %1774 : vector<8x1xf32> to vector<8x8xf32>
    %1776 = arith.mulf %1775, %35 : vector<8x8xf32>
    %1777 = arith.addf %1773, %1776 : vector<8x8xf32>
    %1778 = vector.extract_strided_slice %1725 {offsets = [0, 3], sizes = [8, 1], strides = [1, 1]} : vector<8x8xf32> to vector<8x1xf32>
    %1779 = vector.broadcast %1778 : vector<8x1xf32> to vector<8x8xf32>
    %1780 = arith.mulf %1779, %38 : vector<8x8xf32>
    %1781 = arith.addf %1777, %1780 : vector<8x8xf32>
    %1782 = vector.extract_strided_slice %1725 {offsets = [0, 4], sizes = [8, 1], strides = [1, 1]} : vector<8x8xf32> to vector<8x1xf32>
    %1783 = vector.broadcast %1782 : vector<8x1xf32> to vector<8x8xf32>
    %1784 = arith.mulf %1783, %41 : vector<8x8xf32>
    %1785 = arith.addf %1781, %1784 : vector<8x8xf32>
    %1786 = vector.extract_strided_slice %1725 {offsets = [0, 5], sizes = [8, 1], strides = [1, 1]} : vector<8x8xf32> to vector<8x1xf32>
    %1787 = vector.broadcast %1786 : vector<8x1xf32> to vector<8x8xf32>
    %1788 = arith.mulf %1787, %44 : vector<8x8xf32>
    %1789 = arith.addf %1785, %1788 : vector<8x8xf32>
    %1790 = vector.extract_strided_slice %1725 {offsets = [0, 6], sizes = [8, 1], strides = [1, 1]} : vector<8x8xf32> to vector<8x1xf32>
    %1791 = vector.broadcast %1790 : vector<8x1xf32> to vector<8x8xf32>
    %1792 = arith.mulf %1791, %47 : vector<8x8xf32>
    %1793 = arith.addf %1789, %1792 : vector<8x8xf32>
    %1794 = vector.extract_strided_slice %1725 {offsets = [0, 7], sizes = [8, 1], strides = [1, 1]} : vector<8x8xf32> to vector<8x1xf32>
    %1795 = vector.broadcast %1794 : vector<8x1xf32> to vector<8x8xf32>
    %1796 = arith.mulf %1795, %50 : vector<8x8xf32>
    %1797 = arith.addf %1793, %1796 : vector<8x8xf32>
    %1798 = arith.addf %1766, %1797 : vector<8x8xf32>
    %1799 = math.tanh %1798 : vector<8x8xf32>
    %cst_56 = arith.constant 0.000000e+00 : f32
    %1800 = vector.broadcast %cst_56 : f32 to vector<8x8xf32>
    %1801 = arith.maximumf %1799, %1800 : vector<8x8xf32>
    %1802 = arith.mulf %1801, %56 : vector<8x8xf32>
    %cst_57 = arith.constant dense<0.000000e+00> : vector<8xf32>
    %1803 = vector.multi_reduction <add>, %1802, %cst_57 [1] : vector<8x8xf32> to vector<8xf32>
    %1804 = vector.shape_cast %1803 : vector<8xf32> to vector<8x1xf32>
    %1805 = arith.addf %1804, %59 : vector<8x1xf32>
    %c30_i32 = arith.constant 30 : i32
    %1806 = vector.broadcast %c30_i32 : i32 to vector<8x128xi32>
    %1807 = arith.cmpi eq, %60, %1806 : vector<8x128xi32>
    %1808 = vector.shape_cast %1805 : vector<8x1xf32> to vector<8x1xf32>
    %1809 = vector.broadcast %1808 : vector<8x1xf32> to vector<8x128xf32>
    %1810 = arith.select %1807, %1809, %1734 : vector<8x128xi1>, vector<8x128xf32>
    %1811 = vector.extract_strided_slice %0 {offsets = [0, 23], sizes = [8, 1], strides = [1, 1]} : vector<8x32xf32> to vector<8x1xf32>
    %1812 = vector.broadcast %1811 : vector<8x1xf32> to vector<8x8xf32>
    %1813 = arith.mulf %1812, %5 : vector<8x8xf32>
    %1814 = arith.addf %53, %1813 : vector<8x8xf32>
    %1815 = vector.extract_strided_slice %0 {offsets = [0, 24], sizes = [8, 1], strides = [1, 1]} : vector<8x32xf32> to vector<8x1xf32>
    %1816 = vector.broadcast %1815 : vector<8x1xf32> to vector<8x8xf32>
    %1817 = arith.mulf %1816, %8 : vector<8x8xf32>
    %1818 = arith.addf %1814, %1817 : vector<8x8xf32>
    %1819 = vector.extract_strided_slice %0 {offsets = [0, 25], sizes = [8, 1], strides = [1, 1]} : vector<8x32xf32> to vector<8x1xf32>
    %1820 = vector.broadcast %1819 : vector<8x1xf32> to vector<8x8xf32>
    %1821 = arith.mulf %1820, %11 : vector<8x8xf32>
    %1822 = arith.addf %1818, %1821 : vector<8x8xf32>
    %1823 = vector.extract_strided_slice %0 {offsets = [0, 26], sizes = [8, 1], strides = [1, 1]} : vector<8x32xf32> to vector<8x1xf32>
    %1824 = vector.broadcast %1823 : vector<8x1xf32> to vector<8x8xf32>
    %1825 = arith.mulf %1824, %14 : vector<8x8xf32>
    %1826 = arith.addf %1822, %1825 : vector<8x8xf32>
    %1827 = vector.extract_strided_slice %0 {offsets = [0, 27], sizes = [8, 1], strides = [1, 1]} : vector<8x32xf32> to vector<8x1xf32>
    %1828 = vector.broadcast %1827 : vector<8x1xf32> to vector<8x8xf32>
    %1829 = arith.mulf %1828, %17 : vector<8x8xf32>
    %1830 = arith.addf %1826, %1829 : vector<8x8xf32>
    %1831 = vector.extract_strided_slice %0 {offsets = [0, 28], sizes = [8, 1], strides = [1, 1]} : vector<8x32xf32> to vector<8x1xf32>
    %1832 = vector.broadcast %1831 : vector<8x1xf32> to vector<8x8xf32>
    %1833 = arith.mulf %1832, %20 : vector<8x8xf32>
    %1834 = arith.addf %1830, %1833 : vector<8x8xf32>
    %1835 = vector.extract_strided_slice %0 {offsets = [0, 29], sizes = [8, 1], strides = [1, 1]} : vector<8x32xf32> to vector<8x1xf32>
    %1836 = vector.broadcast %1835 : vector<8x1xf32> to vector<8x8xf32>
    %1837 = arith.mulf %1836, %23 : vector<8x8xf32>
    %1838 = arith.addf %1834, %1837 : vector<8x8xf32>
    %1839 = vector.extract_strided_slice %0 {offsets = [0, 30], sizes = [8, 1], strides = [1, 1]} : vector<8x32xf32> to vector<8x1xf32>
    %1840 = vector.broadcast %1839 : vector<8x1xf32> to vector<8x8xf32>
    %1841 = arith.mulf %1840, %26 : vector<8x8xf32>
    %1842 = arith.addf %1838, %1841 : vector<8x8xf32>
    %1843 = vector.extract_strided_slice %1801 {offsets = [0, 0], sizes = [8, 1], strides = [1, 1]} : vector<8x8xf32> to vector<8x1xf32>
    %1844 = vector.broadcast %1843 : vector<8x1xf32> to vector<8x8xf32>
    %1845 = arith.mulf %1844, %29 : vector<8x8xf32>
    %1846 = vector.extract_strided_slice %1801 {offsets = [0, 1], sizes = [8, 1], strides = [1, 1]} : vector<8x8xf32> to vector<8x1xf32>
    %1847 = vector.broadcast %1846 : vector<8x1xf32> to vector<8x8xf32>
    %1848 = arith.mulf %1847, %32 : vector<8x8xf32>
    %1849 = arith.addf %1845, %1848 : vector<8x8xf32>
    %1850 = vector.extract_strided_slice %1801 {offsets = [0, 2], sizes = [8, 1], strides = [1, 1]} : vector<8x8xf32> to vector<8x1xf32>
    %1851 = vector.broadcast %1850 : vector<8x1xf32> to vector<8x8xf32>
    %1852 = arith.mulf %1851, %35 : vector<8x8xf32>
    %1853 = arith.addf %1849, %1852 : vector<8x8xf32>
    %1854 = vector.extract_strided_slice %1801 {offsets = [0, 3], sizes = [8, 1], strides = [1, 1]} : vector<8x8xf32> to vector<8x1xf32>
    %1855 = vector.broadcast %1854 : vector<8x1xf32> to vector<8x8xf32>
    %1856 = arith.mulf %1855, %38 : vector<8x8xf32>
    %1857 = arith.addf %1853, %1856 : vector<8x8xf32>
    %1858 = vector.extract_strided_slice %1801 {offsets = [0, 4], sizes = [8, 1], strides = [1, 1]} : vector<8x8xf32> to vector<8x1xf32>
    %1859 = vector.broadcast %1858 : vector<8x1xf32> to vector<8x8xf32>
    %1860 = arith.mulf %1859, %41 : vector<8x8xf32>
    %1861 = arith.addf %1857, %1860 : vector<8x8xf32>
    %1862 = vector.extract_strided_slice %1801 {offsets = [0, 5], sizes = [8, 1], strides = [1, 1]} : vector<8x8xf32> to vector<8x1xf32>
    %1863 = vector.broadcast %1862 : vector<8x1xf32> to vector<8x8xf32>
    %1864 = arith.mulf %1863, %44 : vector<8x8xf32>
    %1865 = arith.addf %1861, %1864 : vector<8x8xf32>
    %1866 = vector.extract_strided_slice %1801 {offsets = [0, 6], sizes = [8, 1], strides = [1, 1]} : vector<8x8xf32> to vector<8x1xf32>
    %1867 = vector.broadcast %1866 : vector<8x1xf32> to vector<8x8xf32>
    %1868 = arith.mulf %1867, %47 : vector<8x8xf32>
    %1869 = arith.addf %1865, %1868 : vector<8x8xf32>
    %1870 = vector.extract_strided_slice %1801 {offsets = [0, 7], sizes = [8, 1], strides = [1, 1]} : vector<8x8xf32> to vector<8x1xf32>
    %1871 = vector.broadcast %1870 : vector<8x1xf32> to vector<8x8xf32>
    %1872 = arith.mulf %1871, %50 : vector<8x8xf32>
    %1873 = arith.addf %1869, %1872 : vector<8x8xf32>
    %1874 = arith.addf %1842, %1873 : vector<8x8xf32>
    %1875 = math.tanh %1874 : vector<8x8xf32>
    %cst_58 = arith.constant 0.000000e+00 : f32
    %1876 = vector.broadcast %cst_58 : f32 to vector<8x8xf32>
    %1877 = arith.maximumf %1875, %1876 : vector<8x8xf32>
    %1878 = arith.mulf %1877, %56 : vector<8x8xf32>
    %cst_59 = arith.constant dense<0.000000e+00> : vector<8xf32>
    %1879 = vector.multi_reduction <add>, %1878, %cst_59 [1] : vector<8x8xf32> to vector<8xf32>
    %1880 = vector.shape_cast %1879 : vector<8xf32> to vector<8x1xf32>
    %1881 = arith.addf %1880, %59 : vector<8x1xf32>
    %c31_i32 = arith.constant 31 : i32
    %1882 = vector.broadcast %c31_i32 : i32 to vector<8x128xi32>
    %1883 = arith.cmpi eq, %60, %1882 : vector<8x128xi32>
    %1884 = vector.shape_cast %1881 : vector<8x1xf32> to vector<8x1xf32>
    %1885 = vector.broadcast %1884 : vector<8x1xf32> to vector<8x128xf32>
    %1886 = arith.select %1883, %1885, %1810 : vector<8x128xi1>, vector<8x128xf32>
    %c0_60 = arith.constant 0 : index
    %c0_61 = arith.constant 0 : index
    %1887 = vector.load %arg7[%c0_60, %c0_61] : memref<8x128xf32, #tpu.memory_space<vmem>>, vector<8x128xf32>
    tpu.vector_store %arg7[%c0_60, %c0_61], %1886 {strides = array<i32>} : memref<8x128xf32, #tpu.memory_space<vmem>>, vector<8x128xf32>,
    return
  }
  func.func @transform_0(%arg0: i32) -> (i32, i32) {
    %c0_i32 = arith.constant 0 : i32
    %c0_i32_0 = arith.constant 0 : i32
    return %arg0, %c0_i32 : i32, i32
  }
  func.func @transform_1(%arg0: i32) -> (i32, i32) {
    %c0_i32 = arith.constant 0 : i32
    %c0_i32_0 = arith.constant 0 : i32
    %c0_i32_1 = arith.constant 0 : i32
    return %c0_i32, %c0_i32_0 : i32, i32
  }
  func.func @transform_2(%arg0: i32) -> (i32, i32) {
    %c0_i32 = arith.constant 0 : i32
    %c0_i32_0 = arith.constant 0 : i32
    %c0_i32_1 = arith.constant 0 : i32
    return %c0_i32, %c0_i32_0 : i32, i32
  }
  func.func @transform_3(%arg0: i32) -> (i32, i32) {
    %c0_i32 = arith.constant 0 : i32
    %c0_i32_0 = arith.constant 0 : i32
    %c0_i32_1 = arith.constant 0 : i32
    return %c0_i32, %c0_i32_0 : i32, i32
  }
  func.func @transform_4(%arg0: i32) -> (i32, i32) {
    %c0_i32 = arith.constant 0 : i32
    %c0_i32_0 = arith.constant 0 : i32
    %c0_i32_1 = arith.constant 0 : i32
    return %c0_i32, %c0_i32_0 : i32, i32
  }
  func.func @transform_5(%arg0: i32) -> (i32, i32) {
    %c0_i32 = arith.constant 0 : i32
    %c0_i32_0 = arith.constant 0 : i32
    %c0_i32_1 = arith.constant 0 : i32
    return %c0_i32, %c0_i32_0 : i32, i32
  }
  func.func @transform_6(%arg0: i32) -> (i32, i32) {
    %c0_i32 = arith.constant 0 : i32
    %c0_i32_0 = arith.constant 0 : i32
    return %arg0, %c0_i32 : i32, i32
  }
}

</mosaic_0001>

<llo_original>
// kernel: att_forward.1
$region0: #{att_forward.1}
  #allocation0 [shape = 'u32[]', space=smem, size = 0x4, offset = 0x4, fixed_abs, tag = 'smem constant byte address 0x4 - core index']
  #allocation1 [shape = 'u32[144,128]{1,0:T(1,128)}', space=vmem, size = 0x12000, scoped, tag = 'internal scratch']
  #allocation2 [shape = 'f32[1,1]{1,0:T(1,128)S(1)}', space=vmem, size = 0x200, scoped, tag = 'scoped memory for att_forward.1']
  %s0 = inlined_call_operand.vmem [shape: f32[8,32], index: 0, kind: input, shape index: {}]
  %s1 = inlined_call_operand.vmem [shape: f32[8,8], index: 1, kind: input, shape index: {}]
  %s2 = inlined_call_operand.vmem [shape: f32[8,8], index: 2, kind: input, shape index: {}]
  %s3 = inlined_call_operand.vmem [shape: f32[1,8], index: 3, kind: input, shape index: {}]
  %s4 = inlined_call_operand.vmem [shape: f32[1,8], index: 4, kind: input, shape index: {}]
  %s5 = inlined_call_operand.<no memory space> [shape: f32[1,1], index: 5, kind: input, shape index: {}]
  %s6 = inlined_call_operand.hbm [shape: f32[8,128], index: 6, kind: output, shape index: {}]
  %s7 = sld [smem:[#allocation0]]
  $region34: #{att_forward.1} parent=0
    _
  %s9 = ssub.s32 1, %s7
  %s10 = scalar_select 0, %s9, %s7
  %v11 = vstv %s5
  %12 = vst [vmem:[#allocation2] sm:$0x1] %v11
  $region1: #{att_forward.1} parent=0
    #allocation3 [shape = 'u8[4096]{0}', space=vmem, size = 0x1000, scoped, tag = 'output window, operand 0, single buffered']
    #allocation4 [shape = 's32[1]{0}', space=sflag, size = 0x4, scoped, tag = 'scoped memory for att_forward.1']
    %13 = vsyncpa [#allocation4], 0
    // Predicated region
    $region2: #{att_forward.1} parent=1 // pred_check
      _
    $region3: #{att_forward.1} parent=1 // pred_check_branch
      %15 = sbr.rel (0) target = $region5
    $region4: #{att_forward.1} parent=1 // pred_region
      _
    $region5: #{att_forward.1} parent=1 // pred_fallthru
      _
    // Predicated region
    $region6: #{att_forward.1} parent=1 // pred_check
      _
    $region7: #{att_forward.1} parent=1 // pred_check_branch
      %17 = sbr.rel (0) target = $region9
    $region8: #{att_forward.1} parent=1 // pred_region
      _
    $region9: #{att_forward.1} parent=1 // pred_fallthru
      _
    // Predicated region
    $region10: #{att_forward.1} parent=1 // pred_check
      _
    $region11: #{att_forward.1} parent=1 // pred_check_branch
      %19 = sbr.rel (0) target = $region13
    $region12: #{att_forward.1} parent=1 // pred_region
      _
    $region13: #{att_forward.1} parent=1 // pred_fallthru
      _
    // Predicated region
    $region14: #{att_forward.1} parent=1 // pred_check
      _
    $region15: #{att_forward.1} parent=1 // pred_check_branch
      %21 = sbr.rel (0) target = $region17
    $region16: #{att_forward.1} parent=1 // pred_region
      _
    $region17: #{att_forward.1} parent=1 // pred_fallthru
      _
    // Predicated region
    $region18: #{att_forward.1} parent=1 // pred_check
      _
    $region19: #{att_forward.1} parent=1 // pred_check_branch
      %23 = sbr.rel (0) target = $region21
    $region20: #{att_forward.1} parent=1 // pred_region
      _
    $region21: #{att_forward.1} parent=1 // pred_fallthru
      _
    // Predicated region
    $region22: #{att_forward.1} parent=1 // pred_check
      _
    $region23: #{att_forward.1} parent=1 // pred_check_branch
      %25 = sbr.rel (0) target = $region25
    $region24: #{att_forward.1} parent=1 // pred_region
      _
    $region25: #{att_forward.1} parent=1 // pred_fallthru
      _
    %v26 = vld [vmem:[%s0] sm:$0xff]
    %v27 = vld [vmem:[%s1] sm:$0xff]
    %v28 = vld [vmem:[%s2] sm:$0xff]
    %v29 = vlaneseq
    %v30 = vshrl.u32 %v29, 7
    %v31 = vsub.s32 0, %v30
    %v32 = vrot.slane %v27, %v31
    %v33 = vlaneseq
    %v34 = vshrl.u32 %v33, 7
    %v35 = vsub.s32 1, %v34
    %v36 = vrot.slane %v27, %v35
    %v37 = vlaneseq
    %v38 = vshrl.u32 %v37, 7
    %v39 = vsub.s32 2, %v38
    %v40 = vrot.slane %v27, %v39
    %v41 = vlaneseq
    %v42 = vshrl.u32 %v41, 7
    %v43 = vsub.s32 3, %v42
    %v44 = vrot.slane %v27, %v43
    %v45 = vlaneseq
    %v46 = vshrl.u32 %v45, 7
    %v47 = vsub.s32 4, %v46
    %v48 = vrot.slane %v27, %v47
    %v49 = vlaneseq
    %v50 = vshrl.u32 %v49, 7
    %v51 = vsub.s32 5, %v50
    %v52 = vrot.slane %v27, %v51
    %v53 = vlaneseq
    %v54 = vshrl.u32 %v53, 7
    %v55 = vsub.s32 6, %v54
    %v56 = vrot.slane %v27, %v55
    %v57 = vlaneseq
    %v58 = vshrl.u32 %v57, 7
    %v59 = vsub.s32 7, %v58
    %v60 = vrot.slane %v27, %v59
    %v61 = vlaneseq
    %v62 = vshrl.u32 %v61, 7
    %v63 = vsub.s32 0, %v62
    %v64 = vrot.slane %v28, %v63
    %v65 = vlaneseq
    %v66 = vshrl.u32 %v65, 7
    %v67 = vsub.s32 1, %v66
    %v68 = vrot.slane %v28, %v67
    %v69 = vlaneseq
    %v70 = vshrl.u32 %v69, 7
    %v71 = vsub.s32 2, %v70
    %v72 = vrot.slane %v28, %v71
    %v73 = vlaneseq
    %v74 = vshrl.u32 %v73, 7
    %v75 = vsub.s32 3, %v74
    %v76 = vrot.slane %v28, %v75
    %v77 = vlaneseq
    %v78 = vshrl.u32 %v77, 7
    %v79 = vsub.s32 4, %v78
    %v80 = vrot.slane %v28, %v79
    %v81 = vlaneseq
    %v82 = vshrl.u32 %v81, 7
    %v83 = vsub.s32 5, %v82
    %v84 = vrot.slane %v28, %v83
    %v85 = vlaneseq
    %v86 = vshrl.u32 %v85, 7
    %v87 = vsub.s32 6, %v86
    %v88 = vrot.slane %v28, %v87
    %v89 = vlaneseq
    %v90 = vshrl.u32 %v89, 7
    %v91 = vsub.s32 7, %v90
    %v92 = vrot.slane %v28, %v91
    %v93 = vld [vmem:[%s3] sm:$0x1]
    %v95 = vlaneseq
    %v96 = vshrl.u32 %v95, 7
    %v97 = vsub.s32 0, %v96
    %v98 = vrot.slane %v93, %v97
    %v100 = vld [vmem:[%s4] sm:$0x1]
    %v102 = vlaneseq
    %v103 = vshrl.u32 %v102, 7
    %v104 = vsub.s32 0, %v103
    %v105 = vrot.slane %v100, %v104
    %v107 = vld [vmem:[#allocation2] sm:$0x1]
    %v109 = vlaneseq
    %v110 = vshrl.u32 %v109, 7
    %v111 = vsub.s32 0, %v110
    %v112 = vrot.slane %v107, %v111
    %v114 = vlaneseq
    %v115 = vand.u32 %v114, 127
    %117 = vset.pattern.permute.xlu0 0
    %118 = vperm.xlu0 %117, %v26
    %v119 = vpop.permute.xlu0 %118
    %v121 = vmul.f32 %v119, %v32
    %v122 = vadd.f32 %v98, %v121
    %123 = vset.pattern.permute.xlu0 1
    %124 = vperm.xlu0 %123, %v26
    %v125 = vpop.permute.xlu0 %124
    %v127 = vmul.f32 %v125, %v36
    %v128 = vadd.f32 %v122, %v127
    %129 = vset.pattern.permute.xlu0 2
    %130 = vperm.xlu0 %129, %v26
    %v131 = vpop.permute.xlu0 %130
    %v133 = vmul.f32 %v131, %v40
    %v134 = vadd.f32 %v128, %v133
    %135 = vset.pattern.permute.xlu0 3
    %136 = vperm.xlu0 %135, %v26
    %v137 = vpop.permute.xlu0 %136
    %v139 = vmul.f32 %v137, %v44
    %v140 = vadd.f32 %v134, %v139
    %141 = vset.pattern.permute.xlu0 4
    %142 = vperm.xlu0 %141, %v26
    %v143 = vpop.permute.xlu0 %142
    %v145 = vmul.f32 %v143, %v48
    %v146 = vadd.f32 %v140, %v145
    %147 = vset.pattern.permute.xlu0 5
    %148 = vperm.xlu0 %147, %v26
    %v149 = vpop.permute.xlu0 %148
    %v151 = vmul.f32 %v149, %v52
    %v152 = vadd.f32 %v146, %v151
    %153 = vset.pattern.permute.xlu0 6
    %154 = vperm.xlu0 %153, %v26
    %v155 = vpop.permute.xlu0 %154
    %v157 = vmul.f32 %v155, %v56
    %v158 = vadd.f32 %v152, %v157
    %159 = vset.pattern.permute.xlu0 7
    %160 = vperm.xlu0 %159, %v26
    %v161 = vpop.permute.xlu0 %160
    %v163 = vmul.f32 %v161, %v60
    %v164 = vadd.f32 %v158, %v163
    %v165 = vmul.f32 %v64, 0.0
    %v166 = vmul.f32 %v68, 0.0
    %v167 = vadd.f32 %v165, %v166
    %v168 = vmul.f32 %v72, 0.0
    %v169 = vadd.f32 %v167, %v168
    %v170 = vmul.f32 %v76, 0.0
    %v171 = vadd.f32 %v169, %v170
    %v172 = vmul.f32 %v80, 0.0
    %v173 = vadd.f32 %v171, %v172
    %v174 = vmul.f32 %v84, 0.0
    %v175 = vadd.f32 %v173, %v174
    %v176 = vmul.f32 %v88, 0.0
    %v177 = vadd.f32 %v175, %v176
    %v178 = vmul.f32 %v92, 0.0
    %v179 = vadd.f32 %v177, %v178
    %v180 = vadd.f32 %v164, %v179
    %v181 = vtanh.pop %v180
    %v182 = vmax.f32 %v181, 0.0
    %v183 = vmul.f32 %v182, %v105
    %vm184 = vcmask 64512
    %v185 = vsel %vm184, %v183, 0.0
    %186 = vadd.xlane.f32.xlu0 %v185
    %v187 = vpop.xlane.xlu0 %186
    %v188 = vadd.f32 %v187, %v112
    %vm189 = vcmp.eq.s32.totalorder %v115, 8
    %191 = vset.pattern.permute.xlu0 0
    %192 = vperm.xlu0 %191, %v188
    %v193 = vpop.permute.xlu0 %192
    %v195 = vsel %vm189, %v193, 0.0
    %v196 = vmul.f32 %v125, %v32
    %v197 = vadd.f32 %v98, %v196
    %v198 = vmul.f32 %v131, %v36
    %v199 = vadd.f32 %v197, %v198
    %v200 = vmul.f32 %v137, %v40
    %v201 = vadd.f32 %v199, %v200
    %v202 = vmul.f32 %v143, %v44
    %v203 = vadd.f32 %v201, %v202
    %v204 = vmul.f32 %v149, %v48
    %v205 = vadd.f32 %v203, %v204
    %v206 = vmul.f32 %v155, %v52
    %v207 = vadd.f32 %v205, %v206
    %v208 = vmul.f32 %v161, %v56
    %v209 = vadd.f32 %v207, %v208
    %210 = vset.pattern.permute.xlu0 8
    %211 = vperm.xlu0 %210, %v26
    %v212 = vpop.permute.xlu0 %211
    %v214 = vmul.f32 %v212, %v60
    %v215 = vadd.f32 %v209, %v214
    %217 = vset.pattern.permute.xlu0 0
    %218 = vperm.xlu0 %217, %v182
    %v219 = vpop.permute.xlu0 %218
    %v221 = vmul.f32 %v219, %v64
    %222 = vset.pattern.permute.xlu0 1
    %223 = vperm.xlu0 %222, %v182
    %v224 = vpop.permute.xlu0 %223
    %v226 = vmul.f32 %v224, %v68
    %v227 = vadd.f32 %v221, %v226
    %228 = vset.pattern.permute.xlu0 2
    %229 = vperm.xlu0 %228, %v182
    %v230 = vpop.permute.xlu0 %229
    %v232 = vmul.f32 %v230, %v72
    %v233 = vadd.f32 %v227, %v232
    %234 = vset.pattern.permute.xlu0 3
    %235 = vperm.xlu0 %234, %v182
    %v236 = vpop.permute.xlu0 %235
    %v238 = vmul.f32 %v236, %v76
    %v239 = vadd.f32 %v233, %v238
    %240 = vset.pattern.permute.xlu0 4
    %241 = vperm.xlu0 %240, %v182
    %v242 = vpop.permute.xlu0 %241
    %v244 = vmul.f32 %v242, %v80
    %v245 = vadd.f32 %v239, %v244
    %246 = vset.pattern.permute.xlu0 5
    %247 = vperm.xlu0 %246, %v182
    %v248 = vpop.permute.xlu0 %247
    %v250 = vmul.f32 %v248, %v84
    %v251 = vadd.f32 %v245, %v250
    %252 = vset.pattern.permute.xlu0 6
    %253 = vperm.xlu0 %252, %v182
    %v254 = vpop.permute.xlu0 %253
    %v256 = vmul.f32 %v254, %v88
    %v257 = vadd.f32 %v251, %v256
    %258 = vset.pattern.permute.xlu0 7
    %259 = vperm.xlu0 %258, %v182
    %v260 = vpop.permute.xlu0 %259
    %v262 = vmul.f32 %v260, %v92
    %v263 = vadd.f32 %v257, %v262
    %v264 = vadd.f32 %v215, %v263
    %v265 = vtanh.pop %v264
    %v266 = vmax.f32 %v265, 0.0
    %v267 = vmul.f32 %v266, %v105
    %v268 = vsel %vm184, %v267, 0.0
    %269 = vadd.xlane.f32.xlu0 %v268
    %v270 = vpop.xlane.xlu0 %269
    %v271 = vadd.f32 %v270, %v112
    %vm272 = vcmp.eq.s32.totalorder %v115, 9
    %274 = vset.pattern.permute.xlu0 0
    %275 = vperm.xlu0 %274, %v271
    %v276 = vpop.permute.xlu0 %275
    %v278 = vsel %vm272, %v276, %v195
    %v279 = vmul.f32 %v131, %v32
    %v280 = vadd.f32 %v98, %v279
    %v281 = vmul.f32 %v137, %v36
    %v282 = vadd.f32 %v280, %v281
    %v283 = vmul.f32 %v143, %v40
    %v284 = vadd.f32 %v282, %v283
    %v285 = vmul.f32 %v149, %v44
    %v286 = vadd.f32 %v284, %v285
    %v287 = vmul.f32 %v155, %v48
    %v288 = vadd.f32 %v286, %v287
    %v289 = vmul.f32 %v161, %v52
    %v290 = vadd.f32 %v288, %v289
    %v291 = vmul.f32 %v212, %v56
    %v292 = vadd.f32 %v290, %v291
    %293 = vset.pattern.permute.xlu0 9
    %294 = vperm.xlu0 %293, %v26
    %v295 = vpop.permute.xlu0 %294
    %v297 = vmul.f32 %v295, %v60
    %v298 = vadd.f32 %v292, %v297
    %300 = vset.pattern.permute.xlu0 0
    %301 = vperm.xlu0 %300, %v266
    %v302 = vpop.permute.xlu0 %301
    %v304 = vmul.f32 %v302, %v64
    %305 = vset.pattern.permute.xlu0 1
    %306 = vperm.xlu0 %305, %v266
    %v307 = vpop.permute.xlu0 %306
    %v309 = vmul.f32 %v307, %v68
    %v310 = vadd.f32 %v304, %v309
    %311 = vset.pattern.permute.xlu0 2
    %312 = vperm.xlu0 %311, %v266
    %v313 = vpop.permute.xlu0 %312
    %v315 = vmul.f32 %v313, %v72
    %v316 = vadd.f32 %v310, %v315
    %317 = vset.pattern.permute.xlu0 3
    %318 = vperm.xlu0 %317, %v266
    %v319 = vpop.permute.xlu0 %318
    %v321 = vmul.f32 %v319, %v76
    %v322 = vadd.f32 %v316, %v321
    %323 = vset.pattern.permute.xlu0 4
    %324 = vperm.xlu0 %323, %v266
    %v325 = vpop.permute.xlu0 %324
    %v327 = vmul.f32 %v325, %v80
    %v328 = vadd.f32 %v322, %v327
    %329 = vset.pattern.permute.xlu0 5
    %330 = vperm.xlu0 %329, %v266
    %v331 = vpop.permute.xlu0 %330
    %v333 = vmul.f32 %v331, %v84
    %v334 = vadd.f32 %v328, %v333
    %335 = vset.pattern.permute.xlu0 6
    %336 = vperm.xlu0 %335, %v266
    %v337 = vpop.permute.xlu0 %336
    %v339 = vmul.f32 %v337, %v88
    %v340 = vadd.f32 %v334, %v339
    %341 = vset.pattern.permute.xlu0 7
    %342 = vperm.xlu0 %341, %v266
    %v343 = vpop.permute.xlu0 %342
    %v345 = vmul.f32 %v343, %v92
    %v346 = vadd.f32 %v340, %v345
    %v347 = vadd.f32 %v298, %v346
    %v348 = vtanh.pop %v347
    %v349 = vmax.f32 %v348, 0.0
    %v350 = vmul.f32 %v349, %v105
    %v351 = vsel %vm184, %v350, 0.0
    %352 = vadd.xlane.f32.xlu0 %v351
    %v353 = vpop.xlane.xlu0 %352
    %v354 = vadd.f32 %v353, %v112
    %vm355 = vcmp.eq.s32.totalorder %v115, 10
    %357 = vset.pattern.permute.xlu0 0
    %358 = vperm.xlu0 %357, %v354
    %v359 = vpop.permute.xlu0 %358
    %v361 = vsel %vm355, %v359, %v278
    %v362 = vmul.f32 %v137, %v32
    %v363 = vadd.f32 %v98, %v362
    %v364 = vmul.f32 %v143, %v36
    %v365 = vadd.f32 %v363, %v364
    %v366 = vmul.f32 %v149, %v40
    %v367 = vadd.f32 %v365, %v366
    %v368 = vmul.f32 %v155, %v44
    %v369 = vadd.f32 %v367, %v368
    %v370 = vmul.f32 %v161, %v48
    %v371 = vadd.f32 %v369, %v370
    %v372 = vmul.f32 %v212, %v52
    %v373 = vadd.f32 %v371, %v372
    %v374 = vmul.f32 %v295, %v56
    %v375 = vadd.f32 %v373, %v374
    %376 = vset.pattern.permute.xlu0 10
    %377 = vperm.xlu0 %376, %v26
    %v378 = vpop.permute.xlu0 %377
    %v380 = vmul.f32 %v378, %v60
    %v381 = vadd.f32 %v375, %v380
    %383 = vset.pattern.permute.xlu0 0
    %384 = vperm.xlu0 %383, %v349
    %v385 = vpop.permute.xlu0 %384
    %v387 = vmul.f32 %v385, %v64
    %388 = vset.pattern.permute.xlu0 1
    %389 = vperm.xlu0 %388, %v349
    %v390 = vpop.permute.xlu0 %389
    %v392 = vmul.f32 %v390, %v68
    %v393 = vadd.f32 %v387, %v392
    %394 = vset.pattern.permute.xlu0 2
    %395 = vperm.xlu0 %394, %v349
    %v396 = vpop.permute.xlu0 %395
    %v398 = vmul.f32 %v396, %v72
    %v399 = vadd.f32 %v393, %v398
    %400 = vset.pattern.permute.xlu0 3
    %401 = vperm.xlu0 %400, %v349
    %v402 = vpop.permute.xlu0 %401
    %v404 = vmul.f32 %v402, %v76
    %v405 = vadd.f32 %v399, %v404
    %406 = vset.pattern.permute.xlu0 4
    %407 = vperm.xlu0 %406, %v349
    %v408 = vpop.permute.xlu0 %407
    %v410 = vmul.f32 %v408, %v80
    %v411 = vadd.f32 %v405, %v410
    %412 = vset.pattern.permute.xlu0 5
    %413 = vperm.xlu0 %412, %v349
    %v414 = vpop.permute.xlu0 %413
    %v416 = vmul.f32 %v414, %v84
    %v417 = vadd.f32 %v411, %v416
    %418 = vset.pattern.permute.xlu0 6
    %419 = vperm.xlu0 %418, %v349
    %v420 = vpop.permute.xlu0 %419
    %v422 = vmul.f32 %v420, %v88
    %v423 = vadd.f32 %v417, %v422
    %424 = vset.pattern.permute.xlu0 7
    %425 = vperm.xlu0 %424, %v349
    %v426 = vpop.permute.xlu0 %425
    %v428 = vmul.f32 %v426, %v92
    %v429 = vadd.f32 %v423, %v428
    %v430 = vadd.f32 %v381, %v429
    %v431 = vtanh.pop %v430
    %v432 = vmax.f32 %v431, 0.0
    %v433 = vmul.f32 %v432, %v105
    %v434 = vsel %vm184, %v433, 0.0
    %435 = vadd.xlane.f32.xlu0 %v434
    %v436 = vpop.xlane.xlu0 %435
    %v437 = vadd.f32 %v436, %v112
    %vm438 = vcmp.eq.s32.totalorder %v115, 11
    %440 = vset.pattern.permute.xlu0 0
    %441 = vperm.xlu0 %440, %v437
    %v442 = vpop.permute.xlu0 %441
    %v444 = vsel %vm438, %v442, %v361
    %v445 = vmul.f32 %v143, %v32
    %v446 = vadd.f32 %v98, %v445
    %v447 = vmul.f32 %v149, %v36
    %v448 = vadd.f32 %v446, %v447
    %v449 = vmul.f32 %v155, %v40
    %v450 = vadd.f32 %v448, %v449
    %v451 = vmul.f32 %v161, %v44
    %v452 = vadd.f32 %v450, %v451
    %v453 = vmul.f32 %v212, %v48
    %v454 = vadd.f32 %v452, %v453
    %v455 = vmul.f32 %v295, %v52
    %v456 = vadd.f32 %v454, %v455
    %v457 = vmul.f32 %v378, %v56
    %v458 = vadd.f32 %v456, %v457
    %459 = vset.pattern.permute.xlu0 11
    %460 = vperm.xlu0 %459, %v26
    %v461 = vpop.permute.xlu0 %460
    %v463 = vmul.f32 %v461, %v60
    %v464 = vadd.f32 %v458, %v463
    %466 = vset.pattern.permute.xlu0 0
    %467 = vperm.xlu0 %466, %v432
    %v468 = vpop.permute.xlu0 %467
    %v470 = vmul.f32 %v468, %v64
    %471 = vset.pattern.permute.xlu0 1
    %472 = vperm.xlu0 %471, %v432
    %v473 = vpop.permute.xlu0 %472
    %v475 = vmul.f32 %v473, %v68
    %v476 = vadd.f32 %v470, %v475
    %477 = vset.pattern.permute.xlu0 2
    %478 = vperm.xlu0 %477, %v432
    %v479 = vpop.permute.xlu0 %478
    %v481 = vmul.f32 %v479, %v72
    %v482 = vadd.f32 %v476, %v481
    %483 = vset.pattern.permute.xlu0 3
    %484 = vperm.xlu0 %483, %v432
    %v485 = vpop.permute.xlu0 %484
    %v487 = vmul.f32 %v485, %v76
    %v488 = vadd.f32 %v482, %v487
    %489 = vset.pattern.permute.xlu0 4
    %490 = vperm.xlu0 %489, %v432
    %v491 = vpop.permute.xlu0 %490
    %v493 = vmul.f32 %v491, %v80
    %v494 = vadd.f32 %v488, %v493
    %495 = vset.pattern.permute.xlu0 5
    %496 = vperm.xlu0 %495, %v432
    %v497 = vpop.permute.xlu0 %496
    %v499 = vmul.f32 %v497, %v84
    %v500 = vadd.f32 %v494, %v499
    %501 = vset.pattern.permute.xlu0 6
    %502 = vperm.xlu0 %501, %v432
    %v503 = vpop.permute.xlu0 %502
    %v505 = vmul.f32 %v503, %v88
    %v506 = vadd.f32 %v500, %v505
    %507 = vset.pattern.permute.xlu0 7
    %508 = vperm.xlu0 %507, %v432
    %v509 = vpop.permute.xlu0 %508
    %v511 = vmul.f32 %v509, %v92
    %v512 = vadd.f32 %v506, %v511
    %v513 = vadd.f32 %v464, %v512
    %v514 = vtanh.pop %v513
    %v515 = vmax.f32 %v514, 0.0
    %v516 = vmul.f32 %v515, %v105
    %v517 = vsel %vm184, %v516, 0.0
    %518 = vadd.xlane.f32.xlu0 %v517
    %v519 = vpop.xlane.xlu0 %518
    %v520 = vadd.f32 %v519, %v112
    %vm521 = vcmp.eq.s32.totalorder %v115, 12
    %523 = vset.pattern.permute.xlu0 0
    %524 = vperm.xlu0 %523, %v520
    %v525 = vpop.permute.xlu0 %524
    %v527 = vsel %vm521, %v525, %v444
    %v528 = vmul.f32 %v149, %v32
    %v529 = vadd.f32 %v98, %v528
    %v530 = vmul.f32 %v155, %v36
    %v531 = vadd.f32 %v529, %v530
    %v532 = vmul.f32 %v161, %v40
    %v533 = vadd.f32 %v531, %v532
    %v534 = vmul.f32 %v212, %v44
    %v535 = vadd.f32 %v533, %v534
    %v536 = vmul.f32 %v295, %v48
    %v537 = vadd.f32 %v535, %v536
    %v538 = vmul.f32 %v378, %v52
    %v539 = vadd.f32 %v537, %v538
    %v540 = vmul.f32 %v461, %v56
    %v541 = vadd.f32 %v539, %v540
    %542 = vset.pattern.permute.xlu0 12
    %543 = vperm.xlu0 %542, %v26
    %v544 = vpop.permute.xlu0 %543
    %v546 = vmul.f32 %v544, %v60
    %v547 = vadd.f32 %v541, %v546
    %549 = vset.pattern.permute.xlu0 0
    %550 = vperm.xlu0 %549, %v515
    %v551 = vpop.permute.xlu0 %550
    %v553 = vmul.f32 %v551, %v64
    %554 = vset.pattern.permute.xlu0 1
    %555 = vperm.xlu0 %554, %v515
    %v556 = vpop.permute.xlu0 %555
    %v558 = vmul.f32 %v556, %v68
    %v559 = vadd.f32 %v553, %v558
    %560 = vset.pattern.permute.xlu0 2
    %561 = vperm.xlu0 %560, %v515
    %v562 = vpop.permute.xlu0 %561
    %v564 = vmul.f32 %v562, %v72
    %v565 = vadd.f32 %v559, %v564
    %566 = vset.pattern.permute.xlu0 3
    %567 = vperm.xlu0 %566, %v515
    %v568 = vpop.permute.xlu0 %567
    %v570 = vmul.f32 %v568, %v76
    %v571 = vadd.f32 %v565, %v570
    %572 = vset.pattern.permute.xlu0 4
    %573 = vperm.xlu0 %572, %v515
    %v574 = vpop.permute.xlu0 %573
    %v576 = vmul.f32 %v574, %v80
    %v577 = vadd.f32 %v571, %v576
    %578 = vset.pattern.permute.xlu0 5
    %579 = vperm.xlu0 %578, %v515
    %v580 = vpop.permute.xlu0 %579
    %v582 = vmul.f32 %v580, %v84
    %v583 = vadd.f32 %v577, %v582
    %584 = vset.pattern.permute.xlu0 6
    %585 = vperm.xlu0 %584, %v515
    %v586 = vpop.permute.xlu0 %585
    %v588 = vmul.f32 %v586, %v88
    %v589 = vadd.f32 %v583, %v588
    %590 = vset.pattern.permute.xlu0 7
    %591 = vperm.xlu0 %590, %v515
    %v592 = vpop.permute.xlu0 %591
    %v594 = vmul.f32 %v592, %v92
    %v595 = vadd.f32 %v589, %v594
    %v596 = vadd.f32 %v547, %v595
    %v597 = vtanh.pop %v596
    %v598 = vmax.f32 %v597, 0.0
    %v599 = vmul.f32 %v598, %v105
    %v600 = vsel %vm184, %v599, 0.0
    %601 = vadd.xlane.f32.xlu0 %v600
    %v602 = vpop.xlane.xlu0 %601
    %v603 = vadd.f32 %v602, %v112
    %vm604 = vcmp.eq.s32.totalorder %v115, 13
    %606 = vset.pattern.permute.xlu0 0
    %607 = vperm.xlu0 %606, %v603
    %v608 = vpop.permute.xlu0 %607
    %v610 = vsel %vm604, %v608, %v527
    %v611 = vmul.f32 %v155, %v32
    %v612 = vadd.f32 %v98, %v611
    %v613 = vmul.f32 %v161, %v36
    %v614 = vadd.f32 %v612, %v613
    %v615 = vmul.f32 %v212, %v40
    %v616 = vadd.f32 %v614, %v615
    %v617 = vmul.f32 %v295, %v44
    %v618 = vadd.f32 %v616, %v617
    %v619 = vmul.f32 %v378, %v48
    %v620 = vadd.f32 %v618, %v619
    %v621 = vmul.f32 %v461, %v52
    %v622 = vadd.f32 %v620, %v621
    %v623 = vmul.f32 %v544, %v56
    %v624 = vadd.f32 %v622, %v623
    %625 = vset.pattern.permute.xlu0 13
    %626 = vperm.xlu0 %625, %v26
    %v627 = vpop.permute.xlu0 %626
    %v629 = vmul.f32 %v627, %v60
    %v630 = vadd.f32 %v624, %v629
    %632 = vset.pattern.permute.xlu0 0
    %633 = vperm.xlu0 %632, %v598
    %v634 = vpop.permute.xlu0 %633
    %v636 = vmul.f32 %v634, %v64
    %637 = vset.pattern.permute.xlu0 1
    %638 = vperm.xlu0 %637, %v598
    %v639 = vpop.permute.xlu0 %638
    %v641 = vmul.f32 %v639, %v68
    %v642 = vadd.f32 %v636, %v641
    %643 = vset.pattern.permute.xlu0 2
    %644 = vperm.xlu0 %643, %v598
    %v645 = vpop.permute.xlu0 %644
    %v647 = vmul.f32 %v645, %v72
    %v648 = vadd.f32 %v642, %v647
    %649 = vset.pattern.permute.xlu0 3
    %650 = vperm.xlu0 %649, %v598
    %v651 = vpop.permute.xlu0 %650
    %v653 = vmul.f32 %v651, %v76
    %v654 = vadd.f32 %v648, %v653
    %655 = vset.pattern.permute.xlu0 4
    %656 = vperm.xlu0 %655, %v598
    %v657 = vpop.permute.xlu0 %656
    %v659 = vmul.f32 %v657, %v80
    %v660 = vadd.f32 %v654, %v659
    %661 = vset.pattern.permute.xlu0 5
    %662 = vperm.xlu0 %661, %v598
    %v663 = vpop.permute.xlu0 %662
    %v665 = vmul.f32 %v663, %v84
    %v666 = vadd.f32 %v660, %v665
    %667 = vset.pattern.permute.xlu0 6
    %668 = vperm.xlu0 %667, %v598
    %v669 = vpop.permute.xlu0 %668
    %v671 = vmul.f32 %v669, %v88
    %v672 = vadd.f32 %v666, %v671
    %673 = vset.pattern.permute.xlu0 7
    %674 = vperm.xlu0 %673, %v598
    %v675 = vpop.permute.xlu0 %674
    %v677 = vmul.f32 %v675, %v92
    %v678 = vadd.f32 %v672, %v677
    %v679 = vadd.f32 %v630, %v678
    %v680 = vtanh.pop %v679
    %v681 = vmax.f32 %v680, 0.0
    %v682 = vmul.f32 %v681, %v105
    %v683 = vsel %vm184, %v682, 0.0
    %684 = vadd.xlane.f32.xlu0 %v683
    %v685 = vpop.xlane.xlu0 %684
    %v686 = vadd.f32 %v685, %v112
    %vm687 = vcmp.eq.s32.totalorder %v115, 14
    %689 = vset.pattern.permute.xlu0 0
    %690 = vperm.xlu0 %689, %v686
    %v691 = vpop.permute.xlu0 %690
    %v693 = vsel %vm687, %v691, %v610
    %v694 = vmul.f32 %v161, %v32
    %v695 = vadd.f32 %v98, %v694
    %v696 = vmul.f32 %v212, %v36
    %v697 = vadd.f32 %v695, %v696
    %v698 = vmul.f32 %v295, %v40
    %v699 = vadd.f32 %v697, %v698
    %v700 = vmul.f32 %v378, %v44
    %v701 = vadd.f32 %v699, %v700
    %v702 = vmul.f32 %v461, %v48
    %v703 = vadd.f32 %v701, %v702
    %v704 = vmul.f32 %v544, %v52
    %v705 = vadd.f32 %v703, %v704
    %v706 = vmul.f32 %v627, %v56
    %v707 = vadd.f32 %v705, %v706
    %708 = vset.pattern.permute.xlu0 14
    %709 = vperm.xlu0 %708, %v26
    %v710 = vpop.permute.xlu0 %709
    %v712 = vmul.f32 %v710, %v60
    %v713 = vadd.f32 %v707, %v712
    %715 = vset.pattern.permute.xlu0 0
    %716 = vperm.xlu0 %715, %v681
    %v717 = vpop.permute.xlu0 %716
    %v719 = vmul.f32 %v717, %v64
    %720 = vset.pattern.permute.xlu0 1
    %721 = vperm.xlu0 %720, %v681
    %v722 = vpop.permute.xlu0 %721
    %v724 = vmul.f32 %v722, %v68
    %v725 = vadd.f32 %v719, %v724
    %726 = vset.pattern.permute.xlu0 2
    %727 = vperm.xlu0 %726, %v681
    %v728 = vpop.permute.xlu0 %727
    %v730 = vmul.f32 %v728, %v72
    %v731 = vadd.f32 %v725, %v730
    %732 = vset.pattern.permute.xlu0 3
    %733 = vperm.xlu0 %732, %v681
    %v734 = vpop.permute.xlu0 %733
    %v736 = vmul.f32 %v734, %v76
    %v737 = vadd.f32 %v731, %v736
    %738 = vset.pattern.permute.xlu0 4
    %739 = vperm.xlu0 %738, %v681
    %v740 = vpop.permute.xlu0 %739
    %v742 = vmul.f32 %v740, %v80
    %v743 = vadd.f32 %v737, %v742
    %744 = vset.pattern.permute.xlu0 5
    %745 = vperm.xlu0 %744, %v681
    %v746 = vpop.permute.xlu0 %745
    %v748 = vmul.f32 %v746, %v84
    %v749 = vadd.f32 %v743, %v748
    %750 = vset.pattern.permute.xlu0 6
    %751 = vperm.xlu0 %750, %v681
    %v752 = vpop.permute.xlu0 %751
    %v754 = vmul.f32 %v752, %v88
    %v755 = vadd.f32 %v749, %v754
    %756 = vset.pattern.permute.xlu0 7
    %757 = vperm.xlu0 %756, %v681
    %v758 = vpop.permute.xlu0 %757
    %v760 = vmul.f32 %v758, %v92
    %v761 = vadd.f32 %v755, %v760
    %v762 = vadd.f32 %v713, %v761
    %v763 = vtanh.pop %v762
    %v764 = vmax.f32 %v763, 0.0
    %v765 = vmul.f32 %v764, %v105
    %v766 = vsel %vm184, %v765, 0.0
    %767 = vadd.xlane.f32.xlu0 %v766
    %v768 = vpop.xlane.xlu0 %767
    %v769 = vadd.f32 %v768, %v112
    %vm770 = vcmp.eq.s32.totalorder %v115, 15
    %772 = vset.pattern.permute.xlu0 0
    %773 = vperm.xlu0 %772, %v769
    %v774 = vpop.permute.xlu0 %773
    %v776 = vsel %vm770, %v774, %v693
    %v777 = vmul.f32 %v212, %v32
    %v778 = vadd.f32 %v98, %v777
    %v779 = vmul.f32 %v295, %v36
    %v780 = vadd.f32 %v778, %v779
    %v781 = vmul.f32 %v378, %v40
    %v782 = vadd.f32 %v780, %v781
    %v783 = vmul.f32 %v461, %v44
    %v784 = vadd.f32 %v782, %v783
    %v785 = vmul.f32 %v544, %v48
    %v786 = vadd.f32 %v784, %v785
    %v787 = vmul.f32 %v627, %v52
    %v788 = vadd.f32 %v786, %v787
    %v789 = vmul.f32 %v710, %v56
    %v790 = vadd.f32 %v788, %v789
    %791 = vset.pattern.permute.xlu0 15
    %792 = vperm.xlu0 %791, %v26
    %v793 = vpop.permute.xlu0 %792
    %v795 = vmul.f32 %v793, %v60
    %v796 = vadd.f32 %v790, %v795
    %798 = vset.pattern.permute.xlu0 0
    %799 = vperm.xlu0 %798, %v764
    %v800 = vpop.permute.xlu0 %799
    %v802 = vmul.f32 %v800, %v64
    %803 = vset.pattern.permute.xlu0 1
    %804 = vperm.xlu0 %803, %v764
    %v805 = vpop.permute.xlu0 %804
    %v807 = vmul.f32 %v805, %v68
    %v808 = vadd.f32 %v802, %v807
    %809 = vset.pattern.permute.xlu0 2
    %810 = vperm.xlu0 %809, %v764
    %v811 = vpop.permute.xlu0 %810
    %v813 = vmul.f32 %v811, %v72
    %v814 = vadd.f32 %v808, %v813
    %815 = vset.pattern.permute.xlu0 3
    %816 = vperm.xlu0 %815, %v764
    %v817 = vpop.permute.xlu0 %816
    %v819 = vmul.f32 %v817, %v76
    %v820 = vadd.f32 %v814, %v819
    %821 = vset.pattern.permute.xlu0 4
    %822 = vperm.xlu0 %821, %v764
    %v823 = vpop.permute.xlu0 %822
    %v825 = vmul.f32 %v823, %v80
    %v826 = vadd.f32 %v820, %v825
    %827 = vset.pattern.permute.xlu0 5
    %828 = vperm.xlu0 %827, %v764
    %v829 = vpop.permute.xlu0 %828
    %v831 = vmul.f32 %v829, %v84
    %v832 = vadd.f32 %v826, %v831
    %833 = vset.pattern.permute.xlu0 6
    %834 = vperm.xlu0 %833, %v764
    %v835 = vpop.permute.xlu0 %834
    %v837 = vmul.f32 %v835, %v88
    %v838 = vadd.f32 %v832, %v837
    %839 = vset.pattern.permute.xlu0 7
    %840 = vperm.xlu0 %839, %v764
    %v841 = vpop.permute.xlu0 %840
    %v843 = vmul.f32 %v841, %v92
    %v844 = vadd.f32 %v838, %v843
    %v845 = vadd.f32 %v796, %v844
    %v846 = vtanh.pop %v845
    %v847 = vmax.f32 %v846, 0.0
    %v848 = vmul.f32 %v847, %v105
    %v849 = vsel %vm184, %v848, 0.0
    %850 = vadd.xlane.f32.xlu0 %v849
    %v851 = vpop.xlane.xlu0 %850
    %v852 = vadd.f32 %v851, %v112
    %vm853 = vcmp.eq.s32.totalorder %v115, 16
    %855 = vset.pattern.permute.xlu0 0
    %856 = vperm.xlu0 %855, %v852
    %v857 = vpop.permute.xlu0 %856
    %v859 = vsel %vm853, %v857, %v776
    %v860 = vmul.f32 %v295, %v32
    %v861 = vadd.f32 %v98, %v860
    %v862 = vmul.f32 %v378, %v36
    %v863 = vadd.f32 %v861, %v862
    %v864 = vmul.f32 %v461, %v40
    %v865 = vadd.f32 %v863, %v864
    %v866 = vmul.f32 %v544, %v44
    %v867 = vadd.f32 %v865, %v866
    %v868 = vmul.f32 %v627, %v48
    %v869 = vadd.f32 %v867, %v868
    %v870 = vmul.f32 %v710, %v52
    %v871 = vadd.f32 %v869, %v870
    %v872 = vmul.f32 %v793, %v56
    %v873 = vadd.f32 %v871, %v872
    %874 = vset.pattern.permute.xlu0 16
    %875 = vperm.xlu0 %874, %v26
    %v876 = vpop.permute.xlu0 %875
    %v878 = vmul.f32 %v876, %v60
    %v879 = vadd.f32 %v873, %v878
    %881 = vset.pattern.permute.xlu0 0
    %882 = vperm.xlu0 %881, %v847
    %v883 = vpop.permute.xlu0 %882
    %v885 = vmul.f32 %v883, %v64
    %886 = vset.pattern.permute.xlu0 1
    %887 = vperm.xlu0 %886, %v847
    %v888 = vpop.permute.xlu0 %887
    %v890 = vmul.f32 %v888, %v68
    %v891 = vadd.f32 %v885, %v890
    %892 = vset.pattern.permute.xlu0 2
    %893 = vperm.xlu0 %892, %v847
    %v894 = vpop.permute.xlu0 %893
    %v896 = vmul.f32 %v894, %v72
    %v897 = vadd.f32 %v891, %v896
    %898 = vset.pattern.permute.xlu0 3
    %899 = vperm.xlu0 %898, %v847
    %v900 = vpop.permute.xlu0 %899
    %v902 = vmul.f32 %v900, %v76
    %v903 = vadd.f32 %v897, %v902
    %904 = vset.pattern.permute.xlu0 4
    %905 = vperm.xlu0 %904, %v847
    %v906 = vpop.permute.xlu0 %905
    %v908 = vmul.f32 %v906, %v80
    %v909 = vadd.f32 %v903, %v908
    %910 = vset.pattern.permute.xlu0 5
    %911 = vperm.xlu0 %910, %v847
    %v912 = vpop.permute.xlu0 %911
    %v914 = vmul.f32 %v912, %v84
    %v915 = vadd.f32 %v909, %v914
    %916 = vset.pattern.permute.xlu0 6
    %917 = vperm.xlu0 %916, %v847
    %v918 = vpop.permute.xlu0 %917
    %v920 = vmul.f32 %v918, %v88
    %v921 = vadd.f32 %v915, %v920
    %922 = vset.pattern.permute.xlu0 7
    %923 = vperm.xlu0 %922, %v847
    %v924 = vpop.permute.xlu0 %923
    %v926 = vmul.f32 %v924, %v92
    %v927 = vadd.f32 %v921, %v926
    %v928 = vadd.f32 %v879, %v927
    %v929 = vtanh.pop %v928
    %v930 = vmax.f32 %v929, 0.0
    %v931 = vmul.f32 %v930, %v105
    %v932 = vsel %vm184, %v931, 0.0
    %933 = vadd.xlane.f32.xlu0 %v932
    %v934 = vpop.xlane.xlu0 %933
    %v935 = vadd.f32 %v934, %v112
    %vm936 = vcmp.eq.s32.totalorder %v115, 17
    %938 = vset.pattern.permute.xlu0 0
    %939 = vperm.xlu0 %938, %v935
    %v940 = vpop.permute.xlu0 %939
    %v942 = vsel %vm936, %v940, %v859
    %v943 = vmul.f32 %v378, %v32
    %v944 = vadd.f32 %v98, %v943
    %v945 = vmul.f32 %v461, %v36
    %v946 = vadd.f32 %v944, %v945
    %v947 = vmul.f32 %v544, %v40
    %v948 = vadd.f32 %v946, %v947
    %v949 = vmul.f32 %v627, %v44
    %v950 = vadd.f32 %v948, %v949
    %v951 = vmul.f32 %v710, %v48
    %v952 = vadd.f32 %v950, %v951
    %v953 = vmul.f32 %v793, %v52
    %v954 = vadd.f32 %v952, %v953
    %v955 = vmul.f32 %v876, %v56
    %v956 = vadd.f32 %v954, %v955
    %957 = vset.pattern.permute.xlu0 17
    %958 = vperm.xlu0 %957, %v26
    %v959 = vpop.permute.xlu0 %958
    %v961 = vmul.f32 %v959, %v60
    %v962 = vadd.f32 %v956, %v961
    %964 = vset.pattern.permute.xlu0 0
    %965 = vperm.xlu0 %964, %v930
    %v966 = vpop.permute.xlu0 %965
    %v968 = vmul.f32 %v966, %v64
    %969 = vset.pattern.permute.xlu0 1
    %970 = vperm.xlu0 %969, %v930
    %v971 = vpop.permute.xlu0 %970
    %v973 = vmul.f32 %v971, %v68
    %v974 = vadd.f32 %v968, %v973
    %975 = vset.pattern.permute.xlu0 2
    %976 = vperm.xlu0 %975, %v930
    %v977 = vpop.permute.xlu0 %976
    %v979 = vmul.f32 %v977, %v72
    %v980 = vadd.f32 %v974, %v979
    %981 = vset.pattern.permute.xlu0 3
    %982 = vperm.xlu0 %981, %v930
    %v983 = vpop.permute.xlu0 %982
    %v985 = vmul.f32 %v983, %v76
    %v986 = vadd.f32 %v980, %v985
    %987 = vset.pattern.permute.xlu0 4
    %988 = vperm.xlu0 %987, %v930
    %v989 = vpop.permute.xlu0 %988
    %v991 = vmul.f32 %v989, %v80
    %v992 = vadd.f32 %v986, %v991
    %993 = vset.pattern.permute.xlu0 5
    %994 = vperm.xlu0 %993, %v930
    %v995 = vpop.permute.xlu0 %994
    %v997 = vmul.f32 %v995, %v84
    %v998 = vadd.f32 %v992, %v997
    %999 = vset.pattern.permute.xlu0 6
    %1000 = vperm.xlu0 %999, %v930
    %v1001 = vpop.permute.xlu0 %1000
    %v1003 = vmul.f32 %v1001, %v88
    %v1004 = vadd.f32 %v998, %v1003
    %1005 = vset.pattern.permute.xlu0 7
    %1006 = vperm.xlu0 %1005, %v930
    %v1007 = vpop.permute.xlu0 %1006
    %v1009 = vmul.f32 %v1007, %v92
    %v1010 = vadd.f32 %v1004, %v1009
    %v1011 = vadd.f32 %v962, %v1010
    %v1012 = vtanh.pop %v1011
    %v1013 = vmax.f32 %v1012, 0.0
    %v1014 = vmul.f32 %v1013, %v105
    %v1015 = vsel %vm184, %v1014, 0.0
    %1016 = vadd.xlane.f32.xlu0 %v1015
    %v1017 = vpop.xlane.xlu0 %1016
    %v1018 = vadd.f32 %v1017, %v112
    %vm1019 = vcmp.eq.s32.totalorder %v115, 18
    %1021 = vset.pattern.permute.xlu0 0
    %1022 = vperm.xlu0 %1021, %v1018
    %v1023 = vpop.permute.xlu0 %1022
    %v1025 = vsel %vm1019, %v1023, %v942
    %v1026 = vmul.f32 %v461, %v32
    %v1027 = vadd.f32 %v98, %v1026
    %v1028 = vmul.f32 %v544, %v36
    %v1029 = vadd.f32 %v1027, %v1028
    %v1030 = vmul.f32 %v627, %v40
    %v1031 = vadd.f32 %v1029, %v1030
    %v1032 = vmul.f32 %v710, %v44
    %v1033 = vadd.f32 %v1031, %v1032
    %v1034 = vmul.f32 %v793, %v48
    %v1035 = vadd.f32 %v1033, %v1034
    %v1036 = vmul.f32 %v876, %v52
    %v1037 = vadd.f32 %v1035, %v1036
    %v1038 = vmul.f32 %v959, %v56
    %v1039 = vadd.f32 %v1037, %v1038
    %1040 = vset.pattern.permute.xlu0 18
    %1041 = vperm.xlu0 %1040, %v26
    %v1042 = vpop.permute.xlu0 %1041
    %v1044 = vmul.f32 %v1042, %v60
    %v1045 = vadd.f32 %v1039, %v1044
    %1047 = vset.pattern.permute.xlu0 0
    %1048 = vperm.xlu0 %1047, %v1013
    %v1049 = vpop.permute.xlu0 %1048
    %v1051 = vmul.f32 %v1049, %v64
    %1052 = vset.pattern.permute.xlu0 1
    %1053 = vperm.xlu0 %1052, %v1013
    %v1054 = vpop.permute.xlu0 %1053
    %v1056 = vmul.f32 %v1054, %v68
    %v1057 = vadd.f32 %v1051, %v1056
    %1058 = vset.pattern.permute.xlu0 2
    %1059 = vperm.xlu0 %1058, %v1013
    %v1060 = vpop.permute.xlu0 %1059
    %v1062 = vmul.f32 %v1060, %v72
    %v1063 = vadd.f32 %v1057, %v1062
    %1064 = vset.pattern.permute.xlu0 3
    %1065 = vperm.xlu0 %1064, %v1013
    %v1066 = vpop.permute.xlu0 %1065
    %v1068 = vmul.f32 %v1066, %v76
    %v1069 = vadd.f32 %v1063, %v1068
    %1070 = vset.pattern.permute.xlu0 4
    %1071 = vperm.xlu0 %1070, %v1013
    %v1072 = vpop.permute.xlu0 %1071
    %v1074 = vmul.f32 %v1072, %v80
    %v1075 = vadd.f32 %v1069, %v1074
    %1076 = vset.pattern.permute.xlu0 5
    %1077 = vperm.xlu0 %1076, %v1013
    %v1078 = vpop.permute.xlu0 %1077
    %v1080 = vmul.f32 %v1078, %v84
    %v1081 = vadd.f32 %v1075, %v1080
    %1082 = vset.pattern.permute.xlu0 6
    %1083 = vperm.xlu0 %1082, %v1013
    %v1084 = vpop.permute.xlu0 %1083
    %v1086 = vmul.f32 %v1084, %v88
    %v1087 = vadd.f32 %v1081, %v1086
    %1088 = vset.pattern.permute.xlu0 7
    %1089 = vperm.xlu0 %1088, %v1013
    %v1090 = vpop.permute.xlu0 %1089
    %v1092 = vmul.f32 %v1090, %v92
    %v1093 = vadd.f32 %v1087, %v1092
    %v1094 = vadd.f32 %v1045, %v1093
    %v1095 = vtanh.pop %v1094
    %v1096 = vmax.f32 %v1095, 0.0
    %v1097 = vmul.f32 %v1096, %v105
    %v1098 = vsel %vm184, %v1097, 0.0
    %1099 = vadd.xlane.f32.xlu0 %v1098
    %v1100 = vpop.xlane.xlu0 %1099
    %v1101 = vadd.f32 %v1100, %v112
    %vm1102 = vcmp.eq.s32.totalorder %v115, 19
    %1104 = vset.pattern.permute.xlu0 0
    %1105 = vperm.xlu0 %1104, %v1101
    %v1106 = vpop.permute.xlu0 %1105
    %v1108 = vsel %vm1102, %v1106, %v1025
    %v1109 = vmul.f32 %v544, %v32
    %v1110 = vadd.f32 %v98, %v1109
    %v1111 = vmul.f32 %v627, %v36
    %v1112 = vadd.f32 %v1110, %v1111
    %v1113 = vmul.f32 %v710, %v40
    %v1114 = vadd.f32 %v1112, %v1113
    %v1115 = vmul.f32 %v793, %v44
    %v1116 = vadd.f32 %v1114, %v1115
    %v1117 = vmul.f32 %v876, %v48
    %v1118 = vadd.f32 %v1116, %v1117
    %v1119 = vmul.f32 %v959, %v52
    %v1120 = vadd.f32 %v1118, %v1119
    %v1121 = vmul.f32 %v1042, %v56
    %v1122 = vadd.f32 %v1120, %v1121
    %1123 = vset.pattern.permute.xlu0 19
    %1124 = vperm.xlu0 %1123, %v26
    %v1125 = vpop.permute.xlu0 %1124
    %v1127 = vmul.f32 %v1125, %v60
    %v1128 = vadd.f32 %v1122, %v1127
    %1130 = vset.pattern.permute.xlu0 0
    %1131 = vperm.xlu0 %1130, %v1096
    %v1132 = vpop.permute.xlu0 %1131
    %v1134 = vmul.f32 %v1132, %v64
    %1135 = vset.pattern.permute.xlu0 1
    %1136 = vperm.xlu0 %1135, %v1096
    %v1137 = vpop.permute.xlu0 %1136
    %v1139 = vmul.f32 %v1137, %v68
    %v1140 = vadd.f32 %v1134, %v1139
    %1141 = vset.pattern.permute.xlu0 2
    %1142 = vperm.xlu0 %1141, %v1096
    %v1143 = vpop.permute.xlu0 %1142
    %v1145 = vmul.f32 %v1143, %v72
    %v1146 = vadd.f32 %v1140, %v1145
    %1147 = vset.pattern.permute.xlu0 3
    %1148 = vperm.xlu0 %1147, %v1096
    %v1149 = vpop.permute.xlu0 %1148
    %v1151 = vmul.f32 %v1149, %v76
    %v1152 = vadd.f32 %v1146, %v1151
    %1153 = vset.pattern.permute.xlu0 4
    %1154 = vperm.xlu0 %1153, %v1096
    %v1155 = vpop.permute.xlu0 %1154
    %v1157 = vmul.f32 %v1155, %v80
    %v1158 = vadd.f32 %v1152, %v1157
    %1159 = vset.pattern.permute.xlu0 5
    %1160 = vperm.xlu0 %1159, %v1096
    %v1161 = vpop.permute.xlu0 %1160
    %v1163 = vmul.f32 %v1161, %v84
    %v1164 = vadd.f32 %v1158, %v1163
    %1165 = vset.pattern.permute.xlu0 6
    %1166 = vperm.xlu0 %1165, %v1096
    %v1167 = vpop.permute.xlu0 %1166
    %v1169 = vmul.f32 %v1167, %v88
    %v1170 = vadd.f32 %v1164, %v1169
    %1171 = vset.pattern.permute.xlu0 7
    %1172 = vperm.xlu0 %1171, %v1096
    %v1173 = vpop.permute.xlu0 %1172
    %v1175 = vmul.f32 %v1173, %v92
    %v1176 = vadd.f32 %v1170, %v1175
    %v1177 = vadd.f32 %v1128, %v1176
    %v1178 = vtanh.pop %v1177
    %v1179 = vmax.f32 %v1178, 0.0
    %v1180 = vmul.f32 %v1179, %v105
    %v1181 = vsel %vm184, %v1180, 0.0
    %1182 = vadd.xlane.f32.xlu0 %v1181
    %v1183 = vpop.xlane.xlu0 %1182
    %v1184 = vadd.f32 %v1183, %v112
    %vm1185 = vcmp.eq.s32.totalorder %v115, 20
    %1187 = vset.pattern.permute.xlu0 0
    %1188 = vperm.xlu0 %1187, %v1184
    %v1189 = vpop.permute.xlu0 %1188
    %v1191 = vsel %vm1185, %v1189, %v1108
    %v1192 = vmul.f32 %v627, %v32
    %v1193 = vadd.f32 %v98, %v1192
    %v1194 = vmul.f32 %v710, %v36
    %v1195 = vadd.f32 %v1193, %v1194
    %v1196 = vmul.f32 %v793, %v40
    %v1197 = vadd.f32 %v1195, %v1196
    %v1198 = vmul.f32 %v876, %v44
    %v1199 = vadd.f32 %v1197, %v1198
    %v1200 = vmul.f32 %v959, %v48
    %v1201 = vadd.f32 %v1199, %v1200
    %v1202 = vmul.f32 %v1042, %v52
    %v1203 = vadd.f32 %v1201, %v1202
    %v1204 = vmul.f32 %v1125, %v56
    %v1205 = vadd.f32 %v1203, %v1204
    %1206 = vset.pattern.permute.xlu0 20
    %1207 = vperm.xlu0 %1206, %v26
    %v1208 = vpop.permute.xlu0 %1207
    %v1210 = vmul.f32 %v1208, %v60
    %v1211 = vadd.f32 %v1205, %v1210
    %1213 = vset.pattern.permute.xlu0 0
    %1214 = vperm.xlu0 %1213, %v1179
    %v1215 = vpop.permute.xlu0 %1214
    %v1217 = vmul.f32 %v1215, %v64
    %1218 = vset.pattern.permute.xlu0 1
    %1219 = vperm.xlu0 %1218, %v1179
    %v1220 = vpop.permute.xlu0 %1219
    %v1222 = vmul.f32 %v1220, %v68
    %v1223 = vadd.f32 %v1217, %v1222
    %1224 = vset.pattern.permute.xlu0 2
    %1225 = vperm.xlu0 %1224, %v1179
    %v1226 = vpop.permute.xlu0 %1225
    %v1228 = vmul.f32 %v1226, %v72
    %v1229 = vadd.f32 %v1223, %v1228
    %1230 = vset.pattern.permute.xlu0 3
    %1231 = vperm.xlu0 %1230, %v1179
    %v1232 = vpop.permute.xlu0 %1231
    %v1234 = vmul.f32 %v1232, %v76
    %v1235 = vadd.f32 %v1229, %v1234
    %1236 = vset.pattern.permute.xlu0 4
    %1237 = vperm.xlu0 %1236, %v1179
    %v1238 = vpop.permute.xlu0 %1237
    %v1240 = vmul.f32 %v1238, %v80
    %v1241 = vadd.f32 %v1235, %v1240
    %1242 = vset.pattern.permute.xlu0 5
    %1243 = vperm.xlu0 %1242, %v1179
    %v1244 = vpop.permute.xlu0 %1243
    %v1246 = vmul.f32 %v1244, %v84
    %v1247 = vadd.f32 %v1241, %v1246
    %1248 = vset.pattern.permute.xlu0 6
    %1249 = vperm.xlu0 %1248, %v1179
    %v1250 = vpop.permute.xlu0 %1249
    %v1252 = vmul.f32 %v1250, %v88
    %v1253 = vadd.f32 %v1247, %v1252
    %1254 = vset.pattern.permute.xlu0 7
    %1255 = vperm.xlu0 %1254, %v1179
    %v1256 = vpop.permute.xlu0 %1255
    %v1258 = vmul.f32 %v1256, %v92
    %v1259 = vadd.f32 %v1253, %v1258
    %v1260 = vadd.f32 %v1211, %v1259
    %v1261 = vtanh.pop %v1260
    %v1262 = vmax.f32 %v1261, 0.0
    %v1263 = vmul.f32 %v1262, %v105
    %v1264 = vsel %vm184, %v1263, 0.0
    %1265 = vadd.xlane.f32.xlu0 %v1264
    %v1266 = vpop.xlane.xlu0 %1265
    %v1267 = vadd.f32 %v1266, %v112
    %vm1268 = vcmp.eq.s32.totalorder %v115, 21
    %1270 = vset.pattern.permute.xlu0 0
    %1271 = vperm.xlu0 %1270, %v1267
    %v1272 = vpop.permute.xlu0 %1271
    %v1274 = vsel %vm1268, %v1272, %v1191
    %v1275 = vmul.f32 %v710, %v32
    %v1276 = vadd.f32 %v98, %v1275
    %v1277 = vmul.f32 %v793, %v36
    %v1278 = vadd.f32 %v1276, %v1277
    %v1279 = vmul.f32 %v876, %v40
    %v1280 = vadd.f32 %v1278, %v1279
    %v1281 = vmul.f32 %v959, %v44
    %v1282 = vadd.f32 %v1280, %v1281
    %v1283 = vmul.f32 %v1042, %v48
    %v1284 = vadd.f32 %v1282, %v1283
    %v1285 = vmul.f32 %v1125, %v52
    %v1286 = vadd.f32 %v1284, %v1285
    %v1287 = vmul.f32 %v1208, %v56
    %v1288 = vadd.f32 %v1286, %v1287
    %1289 = vset.pattern.permute.xlu0 21
    %1290 = vperm.xlu0 %1289, %v26
    %v1291 = vpop.permute.xlu0 %1290
    %v1293 = vmul.f32 %v1291, %v60
    %v1294 = vadd.f32 %v1288, %v1293
    %1296 = vset.pattern.permute.xlu0 0
    %1297 = vperm.xlu0 %1296, %v1262
    %v1298 = vpop.permute.xlu0 %1297
    %v1300 = vmul.f32 %v1298, %v64
    %1301 = vset.pattern.permute.xlu0 1
    %1302 = vperm.xlu0 %1301, %v1262
    %v1303 = vpop.permute.xlu0 %1302
    %v1305 = vmul.f32 %v1303, %v68
    %v1306 = vadd.f32 %v1300, %v1305
    %1307 = vset.pattern.permute.xlu0 2
    %1308 = vperm.xlu0 %1307, %v1262
    %v1309 = vpop.permute.xlu0 %1308
    %v1311 = vmul.f32 %v1309, %v72
    %v1312 = vadd.f32 %v1306, %v1311
    %1313 = vset.pattern.permute.xlu0 3
    %1314 = vperm.xlu0 %1313, %v1262
    %v1315 = vpop.permute.xlu0 %1314
    %v1317 = vmul.f32 %v1315, %v76
    %v1318 = vadd.f32 %v1312, %v1317
    %1319 = vset.pattern.permute.xlu0 4
    %1320 = vperm.xlu0 %1319, %v1262
    %v1321 = vpop.permute.xlu0 %1320
    %v1323 = vmul.f32 %v1321, %v80
    %v1324 = vadd.f32 %v1318, %v1323
    %1325 = vset.pattern.permute.xlu0 5
    %1326 = vperm.xlu0 %1325, %v1262
    %v1327 = vpop.permute.xlu0 %1326
    %v1329 = vmul.f32 %v1327, %v84
    %v1330 = vadd.f32 %v1324, %v1329
    %1331 = vset.pattern.permute.xlu0 6
    %1332 = vperm.xlu0 %1331, %v1262
    %v1333 = vpop.permute.xlu0 %1332
    %v1335 = vmul.f32 %v1333, %v88
    %v1336 = vadd.f32 %v1330, %v1335
    %1337 = vset.pattern.permute.xlu0 7
    %1338 = vperm.xlu0 %1337, %v1262
    %v1339 = vpop.permute.xlu0 %1338
    %v1341 = vmul.f32 %v1339, %v92
    %v1342 = vadd.f32 %v1336, %v1341
    %v1343 = vadd.f32 %v1294, %v1342
    %v1344 = vtanh.pop %v1343
    %v1345 = vmax.f32 %v1344, 0.0
    %v1346 = vmul.f32 %v1345, %v105
    %v1347 = vsel %vm184, %v1346, 0.0
    %1348 = vadd.xlane.f32.xlu0 %v1347
    %v1349 = vpop.xlane.xlu0 %1348
    %v1350 = vadd.f32 %v1349, %v112
    %vm1351 = vcmp.eq.s32.totalorder %v115, 22
    %1353 = vset.pattern.permute.xlu0 0
    %1354 = vperm.xlu0 %1353, %v1350
    %v1355 = vpop.permute.xlu0 %1354
    %v1357 = vsel %vm1351, %v1355, %v1274
    %v1358 = vmul.f32 %v793, %v32
    %v1359 = vadd.f32 %v98, %v1358
    %v1360 = vmul.f32 %v876, %v36
    %v1361 = vadd.f32 %v1359, %v1360
    %v1362 = vmul.f32 %v959, %v40
    %v1363 = vadd.f32 %v1361, %v1362
    %v1364 = vmul.f32 %v1042, %v44
    %v1365 = vadd.f32 %v1363, %v1364
    %v1366 = vmul.f32 %v1125, %v48
    %v1367 = vadd.f32 %v1365, %v1366
    %v1368 = vmul.f32 %v1208, %v52
    %v1369 = vadd.f32 %v1367, %v1368
    %v1370 = vmul.f32 %v1291, %v56
    %v1371 = vadd.f32 %v1369, %v1370
    %1372 = vset.pattern.permute.xlu0 22
    %1373 = vperm.xlu0 %1372, %v26
    %v1374 = vpop.permute.xlu0 %1373
    %v1376 = vmul.f32 %v1374, %v60
    %v1377 = vadd.f32 %v1371, %v1376
    %1379 = vset.pattern.permute.xlu0 0
    %1380 = vperm.xlu0 %1379, %v1345
    %v1381 = vpop.permute.xlu0 %1380
    %v1383 = vmul.f32 %v1381, %v64
    %1384 = vset.pattern.permute.xlu0 1
    %1385 = vperm.xlu0 %1384, %v1345
    %v1386 = vpop.permute.xlu0 %1385
    %v1388 = vmul.f32 %v1386, %v68
    %v1389 = vadd.f32 %v1383, %v1388
    %1390 = vset.pattern.permute.xlu0 2
    %1391 = vperm.xlu0 %1390, %v1345
    %v1392 = vpop.permute.xlu0 %1391
    %v1394 = vmul.f32 %v1392, %v72
    %v1395 = vadd.f32 %v1389, %v1394
    %1396 = vset.pattern.permute.xlu0 3
    %1397 = vperm.xlu0 %1396, %v1345
    %v1398 = vpop.permute.xlu0 %1397
    %v1400 = vmul.f32 %v1398, %v76
    %v1401 = vadd.f32 %v1395, %v1400
    %1402 = vset.pattern.permute.xlu0 4
    %1403 = vperm.xlu0 %1402, %v1345
    %v1404 = vpop.permute.xlu0 %1403
    %v1406 = vmul.f32 %v1404, %v80
    %v1407 = vadd.f32 %v1401, %v1406
    %1408 = vset.pattern.permute.xlu0 5
    %1409 = vperm.xlu0 %1408, %v1345
    %v1410 = vpop.permute.xlu0 %1409
    %v1412 = vmul.f32 %v1410, %v84
    %v1413 = vadd.f32 %v1407, %v1412
    %1414 = vset.pattern.permute.xlu0 6
    %1415 = vperm.xlu0 %1414, %v1345
    %v1416 = vpop.permute.xlu0 %1415
    %v1418 = vmul.f32 %v1416, %v88
    %v1419 = vadd.f32 %v1413, %v1418
    %1420 = vset.pattern.permute.xlu0 7
    %1421 = vperm.xlu0 %1420, %v1345
    %v1422 = vpop.permute.xlu0 %1421
    %v1424 = vmul.f32 %v1422, %v92
    %v1425 = vadd.f32 %v1419, %v1424
    %v1426 = vadd.f32 %v1377, %v1425
    %v1427 = vtanh.pop %v1426
    %v1428 = vmax.f32 %v1427, 0.0
    %v1429 = vmul.f32 %v1428, %v105
    %v1430 = vsel %vm184, %v1429, 0.0
    %1431 = vadd.xlane.f32.xlu0 %v1430
    %v1432 = vpop.xlane.xlu0 %1431
    %v1433 = vadd.f32 %v1432, %v112
    %vm1434 = vcmp.eq.s32.totalorder %v115, 23
    %1436 = vset.pattern.permute.xlu0 0
    %1437 = vperm.xlu0 %1436, %v1433
    %v1438 = vpop.permute.xlu0 %1437
    %v1440 = vsel %vm1434, %v1438, %v1357
    %v1441 = vmul.f32 %v876, %v32
    %v1442 = vadd.f32 %v98, %v1441
    %v1443 = vmul.f32 %v959, %v36
    %v1444 = vadd.f32 %v1442, %v1443
    %v1445 = vmul.f32 %v1042, %v40
    %v1446 = vadd.f32 %v1444, %v1445
    %v1447 = vmul.f32 %v1125, %v44
    %v1448 = vadd.f32 %v1446, %v1447
    %v1449 = vmul.f32 %v1208, %v48
    %v1450 = vadd.f32 %v1448, %v1449
    %v1451 = vmul.f32 %v1291, %v52
    %v1452 = vadd.f32 %v1450, %v1451
    %v1453 = vmul.f32 %v1374, %v56
    %v1454 = vadd.f32 %v1452, %v1453
    %1455 = vset.pattern.permute.xlu0 23
    %1456 = vperm.xlu0 %1455, %v26
    %v1457 = vpop.permute.xlu0 %1456
    %v1459 = vmul.f32 %v1457, %v60
    %v1460 = vadd.f32 %v1454, %v1459
    %1462 = vset.pattern.permute.xlu0 0
    %1463 = vperm.xlu0 %1462, %v1428
    %v1464 = vpop.permute.xlu0 %1463
    %v1466 = vmul.f32 %v1464, %v64
    %1467 = vset.pattern.permute.xlu0 1
    %1468 = vperm.xlu0 %1467, %v1428
    %v1469 = vpop.permute.xlu0 %1468
    %v1471 = vmul.f32 %v1469, %v68
    %v1472 = vadd.f32 %v1466, %v1471
    %1473 = vset.pattern.permute.xlu0 2
    %1474 = vperm.xlu0 %1473, %v1428
    %v1475 = vpop.permute.xlu0 %1474
    %v1477 = vmul.f32 %v1475, %v72
    %v1478 = vadd.f32 %v1472, %v1477
    %1479 = vset.pattern.permute.xlu0 3
    %1480 = vperm.xlu0 %1479, %v1428
    %v1481 = vpop.permute.xlu0 %1480
    %v1483 = vmul.f32 %v1481, %v76
    %v1484 = vadd.f32 %v1478, %v1483
    %1485 = vset.pattern.permute.xlu0 4
    %1486 = vperm.xlu0 %1485, %v1428
    %v1487 = vpop.permute.xlu0 %1486
    %v1489 = vmul.f32 %v1487, %v80
    %v1490 = vadd.f32 %v1484, %v1489
    %1491 = vset.pattern.permute.xlu0 5
    %1492 = vperm.xlu0 %1491, %v1428
    %v1493 = vpop.permute.xlu0 %1492
    %v1495 = vmul.f32 %v1493, %v84
    %v1496 = vadd.f32 %v1490, %v1495
    %1497 = vset.pattern.permute.xlu0 6
    %1498 = vperm.xlu0 %1497, %v1428
    %v1499 = vpop.permute.xlu0 %1498
    %v1501 = vmul.f32 %v1499, %v88
    %v1502 = vadd.f32 %v1496, %v1501
    %1503 = vset.pattern.permute.xlu0 7
    %1504 = vperm.xlu0 %1503, %v1428
    %v1505 = vpop.permute.xlu0 %1504
    %v1507 = vmul.f32 %v1505, %v92
    %v1508 = vadd.f32 %v1502, %v1507
    %v1509 = vadd.f32 %v1460, %v1508
    %v1510 = vtanh.pop %v1509
    %v1511 = vmax.f32 %v1510, 0.0
    %v1512 = vmul.f32 %v1511, %v105
    %v1513 = vsel %vm184, %v1512, 0.0
    %1514 = vadd.xlane.f32.xlu0 %v1513
    %v1515 = vpop.xlane.xlu0 %1514
    %v1516 = vadd.f32 %v1515, %v112
    %vm1517 = vcmp.eq.s32.totalorder %v115, 24
    %1519 = vset.pattern.permute.xlu0 0
    %1520 = vperm.xlu0 %1519, %v1516
    %v1521 = vpop.permute.xlu0 %1520
    %v1523 = vsel %vm1517, %v1521, %v1440
    %v1524 = vmul.f32 %v959, %v32
    %v1525 = vadd.f32 %v98, %v1524
    %v1526 = vmul.f32 %v1042, %v36
    %v1527 = vadd.f32 %v1525, %v1526
    %v1528 = vmul.f32 %v1125, %v40
    %v1529 = vadd.f32 %v1527, %v1528
    %v1530 = vmul.f32 %v1208, %v44
    %v1531 = vadd.f32 %v1529, %v1530
    %v1532 = vmul.f32 %v1291, %v48
    %v1533 = vadd.f32 %v1531, %v1532
    %v1534 = vmul.f32 %v1374, %v52
    %v1535 = vadd.f32 %v1533, %v1534
    %v1536 = vmul.f32 %v1457, %v56
    %v1537 = vadd.f32 %v1535, %v1536
    %1538 = vset.pattern.permute.xlu0 24
    %1539 = vperm.xlu0 %1538, %v26
    %v1540 = vpop.permute.xlu0 %1539
    %v1542 = vmul.f32 %v1540, %v60
    %v1543 = vadd.f32 %v1537, %v1542
    %1545 = vset.pattern.permute.xlu0 0
    %1546 = vperm.xlu0 %1545, %v1511
    %v1547 = vpop.permute.xlu0 %1546
    %v1549 = vmul.f32 %v1547, %v64
    %1550 = vset.pattern.permute.xlu0 1
    %1551 = vperm.xlu0 %1550, %v1511
    %v1552 = vpop.permute.xlu0 %1551
    %v1554 = vmul.f32 %v1552, %v68
    %v1555 = vadd.f32 %v1549, %v1554
    %1556 = vset.pattern.permute.xlu0 2
    %1557 = vperm.xlu0 %1556, %v1511
    %v1558 = vpop.permute.xlu0 %1557
    %v1560 = vmul.f32 %v1558, %v72
    %v1561 = vadd.f32 %v1555, %v1560
    %1562 = vset.pattern.permute.xlu0 3
    %1563 = vperm.xlu0 %1562, %v1511
    %v1564 = vpop.permute.xlu0 %1563
    %v1566 = vmul.f32 %v1564, %v76
    %v1567 = vadd.f32 %v1561, %v1566
    %1568 = vset.pattern.permute.xlu0 4
    %1569 = vperm.xlu0 %1568, %v1511
    %v1570 = vpop.permute.xlu0 %1569
    %v1572 = vmul.f32 %v1570, %v80
    %v1573 = vadd.f32 %v1567, %v1572
    %1574 = vset.pattern.permute.xlu0 5
    %1575 = vperm.xlu0 %1574, %v1511
    %v1576 = vpop.permute.xlu0 %1575
    %v1578 = vmul.f32 %v1576, %v84
    %v1579 = vadd.f32 %v1573, %v1578
    %1580 = vset.pattern.permute.xlu0 6
    %1581 = vperm.xlu0 %1580, %v1511
    %v1582 = vpop.permute.xlu0 %1581
    %v1584 = vmul.f32 %v1582, %v88
    %v1585 = vadd.f32 %v1579, %v1584
    %1586 = vset.pattern.permute.xlu0 7
    %1587 = vperm.xlu0 %1586, %v1511
    %v1588 = vpop.permute.xlu0 %1587
    %v1590 = vmul.f32 %v1588, %v92
    %v1591 = vadd.f32 %v1585, %v1590
    %v1592 = vadd.f32 %v1543, %v1591
    %v1593 = vtanh.pop %v1592
    %v1594 = vmax.f32 %v1593, 0.0
    %v1595 = vmul.f32 %v1594, %v105
    %v1596 = vsel %vm184, %v1595, 0.0
    %1597 = vadd.xlane.f32.xlu0 %v1596
    %v1598 = vpop.xlane.xlu0 %1597
    %v1599 = vadd.f32 %v1598, %v112
    %vm1600 = vcmp.eq.s32.totalorder %v115, 25
    %1602 = vset.pattern.permute.xlu0 0
    %1603 = vperm.xlu0 %1602, %v1599
    %v1604 = vpop.permute.xlu0 %1603
    %v1606 = vsel %vm1600, %v1604, %v1523
    %v1607 = vmul.f32 %v1042, %v32
    %v1608 = vadd.f32 %v98, %v1607
    %v1609 = vmul.f32 %v1125, %v36
    %v1610 = vadd.f32 %v1608, %v1609
    %v1611 = vmul.f32 %v1208, %v40
    %v1612 = vadd.f32 %v1610, %v1611
    %v1613 = vmul.f32 %v1291, %v44
    %v1614 = vadd.f32 %v1612, %v1613
    %v1615 = vmul.f32 %v1374, %v48
    %v1616 = vadd.f32 %v1614, %v1615
    %v1617 = vmul.f32 %v1457, %v52
    %v1618 = vadd.f32 %v1616, %v1617
    %v1619 = vmul.f32 %v1540, %v56
    %v1620 = vadd.f32 %v1618, %v1619
    %1621 = vset.pattern.permute.xlu0 25
    %1622 = vperm.xlu0 %1621, %v26
    %v1623 = vpop.permute.xlu0 %1622
    %v1625 = vmul.f32 %v1623, %v60
    %v1626 = vadd.f32 %v1620, %v1625
    %1628 = vset.pattern.permute.xlu0 0
    %1629 = vperm.xlu0 %1628, %v1594
    %v1630 = vpop.permute.xlu0 %1629
    %v1632 = vmul.f32 %v1630, %v64
    %1633 = vset.pattern.permute.xlu0 1
    %1634 = vperm.xlu0 %1633, %v1594
    %v1635 = vpop.permute.xlu0 %1634
    %v1637 = vmul.f32 %v1635, %v68
    %v1638 = vadd.f32 %v1632, %v1637
    %1639 = vset.pattern.permute.xlu0 2
    %1640 = vperm.xlu0 %1639, %v1594
    %v1641 = vpop.permute.xlu0 %1640
    %v1643 = vmul.f32 %v1641, %v72
    %v1644 = vadd.f32 %v1638, %v1643
    %1645 = vset.pattern.permute.xlu0 3
    %1646 = vperm.xlu0 %1645, %v1594
    %v1647 = vpop.permute.xlu0 %1646
    %v1649 = vmul.f32 %v1647, %v76
    %v1650 = vadd.f32 %v1644, %v1649
    %1651 = vset.pattern.permute.xlu0 4
    %1652 = vperm.xlu0 %1651, %v1594
    %v1653 = vpop.permute.xlu0 %1652
    %v1655 = vmul.f32 %v1653, %v80
    %v1656 = vadd.f32 %v1650, %v1655
    %1657 = vset.pattern.permute.xlu0 5
    %1658 = vperm.xlu0 %1657, %v1594
    %v1659 = vpop.permute.xlu0 %1658
    %v1661 = vmul.f32 %v1659, %v84
    %v1662 = vadd.f32 %v1656, %v1661
    %1663 = vset.pattern.permute.xlu0 6
    %1664 = vperm.xlu0 %1663, %v1594
    %v1665 = vpop.permute.xlu0 %1664
    %v1667 = vmul.f32 %v1665, %v88
    %v1668 = vadd.f32 %v1662, %v1667
    %1669 = vset.pattern.permute.xlu0 7
    %1670 = vperm.xlu0 %1669, %v1594
    %v1671 = vpop.permute.xlu0 %1670
    %v1673 = vmul.f32 %v1671, %v92
    %v1674 = vadd.f32 %v1668, %v1673
    %v1675 = vadd.f32 %v1626, %v1674
    %v1676 = vtanh.pop %v1675
    %v1677 = vmax.f32 %v1676, 0.0
    %v1678 = vmul.f32 %v1677, %v105
    %v1679 = vsel %vm184, %v1678, 0.0
    %1680 = vadd.xlane.f32.xlu0 %v1679
    %v1681 = vpop.xlane.xlu0 %1680
    %v1682 = vadd.f32 %v1681, %v112
    %vm1683 = vcmp.eq.s32.totalorder %v115, 26
    %1685 = vset.pattern.permute.xlu0 0
    %1686 = vperm.xlu0 %1685, %v1682
    %v1687 = vpop.permute.xlu0 %1686
    %v1689 = vsel %vm1683, %v1687, %v1606
    %v1690 = vmul.f32 %v1125, %v32
    %v1691 = vadd.f32 %v98, %v1690
    %v1692 = vmul.f32 %v1208, %v36
    %v1693 = vadd.f32 %v1691, %v1692
    %v1694 = vmul.f32 %v1291, %v40
    %v1695 = vadd.f32 %v1693, %v1694
    %v1696 = vmul.f32 %v1374, %v44
    %v1697 = vadd.f32 %v1695, %v1696
    %v1698 = vmul.f32 %v1457, %v48
    %v1699 = vadd.f32 %v1697, %v1698
    %v1700 = vmul.f32 %v1540, %v52
    %v1701 = vadd.f32 %v1699, %v1700
    %v1702 = vmul.f32 %v1623, %v56
    %v1703 = vadd.f32 %v1701, %v1702
    %1704 = vset.pattern.permute.xlu0 26
    %1705 = vperm.xlu0 %1704, %v26
    %v1706 = vpop.permute.xlu0 %1705
    %v1708 = vmul.f32 %v1706, %v60
    %v1709 = vadd.f32 %v1703, %v1708
    %1711 = vset.pattern.permute.xlu0 0
    %1712 = vperm.xlu0 %1711, %v1677
    %v1713 = vpop.permute.xlu0 %1712
    %v1715 = vmul.f32 %v1713, %v64
    %1716 = vset.pattern.permute.xlu0 1
    %1717 = vperm.xlu0 %1716, %v1677
    %v1718 = vpop.permute.xlu0 %1717
    %v1720 = vmul.f32 %v1718, %v68
    %v1721 = vadd.f32 %v1715, %v1720
    %1722 = vset.pattern.permute.xlu0 2
    %1723 = vperm.xlu0 %1722, %v1677
    %v1724 = vpop.permute.xlu0 %1723
    %v1726 = vmul.f32 %v1724, %v72
    %v1727 = vadd.f32 %v1721, %v1726
    %1728 = vset.pattern.permute.xlu0 3
    %1729 = vperm.xlu0 %1728, %v1677
    %v1730 = vpop.permute.xlu0 %1729
    %v1732 = vmul.f32 %v1730, %v76
    %v1733 = vadd.f32 %v1727, %v1732
    %1734 = vset.pattern.permute.xlu0 4
    %1735 = vperm.xlu0 %1734, %v1677
    %v1736 = vpop.permute.xlu0 %1735
    %v1738 = vmul.f32 %v1736, %v80
    %v1739 = vadd.f32 %v1733, %v1738
    %1740 = vset.pattern.permute.xlu0 5
    %1741 = vperm.xlu0 %1740, %v1677
    %v1742 = vpop.permute.xlu0 %1741
    %v1744 = vmul.f32 %v1742, %v84
    %v1745 = vadd.f32 %v1739, %v1744
    %1746 = vset.pattern.permute.xlu0 6
    %1747 = vperm.xlu0 %1746, %v1677
    %v1748 = vpop.permute.xlu0 %1747
    %v1750 = vmul.f32 %v1748, %v88
    %v1751 = vadd.f32 %v1745, %v1750
    %1752 = vset.pattern.permute.xlu0 7
    %1753 = vperm.xlu0 %1752, %v1677
    %v1754 = vpop.permute.xlu0 %1753
    %v1756 = vmul.f32 %v1754, %v92
    %v1757 = vadd.f32 %v1751, %v1756
    %v1758 = vadd.f32 %v1709, %v1757
    %v1759 = vtanh.pop %v1758
    %v1760 = vmax.f32 %v1759, 0.0
    %v1761 = vmul.f32 %v1760, %v105
    %v1762 = vsel %vm184, %v1761, 0.0
    %1763 = vadd.xlane.f32.xlu0 %v1762
    %v1764 = vpop.xlane.xlu0 %1763
    %v1765 = vadd.f32 %v1764, %v112
    %vm1766 = vcmp.eq.s32.totalorder %v115, 27
    %1768 = vset.pattern.permute.xlu0 0
    %1769 = vperm.xlu0 %1768, %v1765
    %v1770 = vpop.permute.xlu0 %1769
    %v1772 = vsel %vm1766, %v1770, %v1689
    %v1773 = vmul.f32 %v1208, %v32
    %v1774 = vadd.f32 %v98, %v1773
    %v1775 = vmul.f32 %v1291, %v36
    %v1776 = vadd.f32 %v1774, %v1775
    %v1777 = vmul.f32 %v1374, %v40
    %v1778 = vadd.f32 %v1776, %v1777
    %v1779 = vmul.f32 %v1457, %v44
    %v1780 = vadd.f32 %v1778, %v1779
    %v1781 = vmul.f32 %v1540, %v48
    %v1782 = vadd.f32 %v1780, %v1781
    %v1783 = vmul.f32 %v1623, %v52
    %v1784 = vadd.f32 %v1782, %v1783
    %v1785 = vmul.f32 %v1706, %v56
    %v1786 = vadd.f32 %v1784, %v1785
    %1787 = vset.pattern.permute.xlu0 27
    %1788 = vperm.xlu0 %1787, %v26
    %v1789 = vpop.permute.xlu0 %1788
    %v1791 = vmul.f32 %v1789, %v60
    %v1792 = vadd.f32 %v1786, %v1791
    %1794 = vset.pattern.permute.xlu0 0
    %1795 = vperm.xlu0 %1794, %v1760
    %v1796 = vpop.permute.xlu0 %1795
    %v1798 = vmul.f32 %v1796, %v64
    %1799 = vset.pattern.permute.xlu0 1
    %1800 = vperm.xlu0 %1799, %v1760
    %v1801 = vpop.permute.xlu0 %1800
    %v1803 = vmul.f32 %v1801, %v68
    %v1804 = vadd.f32 %v1798, %v1803
    %1805 = vset.pattern.permute.xlu0 2
    %1806 = vperm.xlu0 %1805, %v1760
    %v1807 = vpop.permute.xlu0 %1806
    %v1809 = vmul.f32 %v1807, %v72
    %v1810 = vadd.f32 %v1804, %v1809
    %1811 = vset.pattern.permute.xlu0 3
    %1812 = vperm.xlu0 %1811, %v1760
    %v1813 = vpop.permute.xlu0 %1812
    %v1815 = vmul.f32 %v1813, %v76
    %v1816 = vadd.f32 %v1810, %v1815
    %1817 = vset.pattern.permute.xlu0 4
    %1818 = vperm.xlu0 %1817, %v1760
    %v1819 = vpop.permute.xlu0 %1818
    %v1821 = vmul.f32 %v1819, %v80
    %v1822 = vadd.f32 %v1816, %v1821
    %1823 = vset.pattern.permute.xlu0 5
    %1824 = vperm.xlu0 %1823, %v1760
    %v1825 = vpop.permute.xlu0 %1824
    %v1827 = vmul.f32 %v1825, %v84
    %v1828 = vadd.f32 %v1822, %v1827
    %1829 = vset.pattern.permute.xlu0 6
    %1830 = vperm.xlu0 %1829, %v1760
    %v1831 = vpop.permute.xlu0 %1830
    %v1833 = vmul.f32 %v1831, %v88
    %v1834 = vadd.f32 %v1828, %v1833
    %1835 = vset.pattern.permute.xlu0 7
    %1836 = vperm.xlu0 %1835, %v1760
    %v1837 = vpop.permute.xlu0 %1836
    %v1839 = vmul.f32 %v1837, %v92
    %v1840 = vadd.f32 %v1834, %v1839
    %v1841 = vadd.f32 %v1792, %v1840
    %v1842 = vtanh.pop %v1841
    %v1843 = vmax.f32 %v1842, 0.0
    %v1844 = vmul.f32 %v1843, %v105
    %v1845 = vsel %vm184, %v1844, 0.0
    %1846 = vadd.xlane.f32.xlu0 %v1845
    %v1847 = vpop.xlane.xlu0 %1846
    %v1848 = vadd.f32 %v1847, %v112
    %vm1849 = vcmp.eq.s32.totalorder %v115, 28
    %1851 = vset.pattern.permute.xlu0 0
    %1852 = vperm.xlu0 %1851, %v1848
    %v1853 = vpop.permute.xlu0 %1852
    %v1855 = vsel %vm1849, %v1853, %v1772
    %v1856 = vmul.f32 %v1291, %v32
    %v1857 = vadd.f32 %v98, %v1856
    %v1858 = vmul.f32 %v1374, %v36
    %v1859 = vadd.f32 %v1857, %v1858
    %v1860 = vmul.f32 %v1457, %v40
    %v1861 = vadd.f32 %v1859, %v1860
    %v1862 = vmul.f32 %v1540, %v44
    %v1863 = vadd.f32 %v1861, %v1862
    %v1864 = vmul.f32 %v1623, %v48
    %v1865 = vadd.f32 %v1863, %v1864
    %v1866 = vmul.f32 %v1706, %v52
    %v1867 = vadd.f32 %v1865, %v1866
    %v1868 = vmul.f32 %v1789, %v56
    %v1869 = vadd.f32 %v1867, %v1868
    %1870 = vset.pattern.permute.xlu0 28
    %1871 = vperm.xlu0 %1870, %v26
    %v1872 = vpop.permute.xlu0 %1871
    %v1874 = vmul.f32 %v1872, %v60
    %v1875 = vadd.f32 %v1869, %v1874
    %1877 = vset.pattern.permute.xlu0 0
    %1878 = vperm.xlu0 %1877, %v1843
    %v1879 = vpop.permute.xlu0 %1878
    %v1881 = vmul.f32 %v1879, %v64
    %1882 = vset.pattern.permute.xlu0 1
    %1883 = vperm.xlu0 %1882, %v1843
    %v1884 = vpop.permute.xlu0 %1883
    %v1886 = vmul.f32 %v1884, %v68
    %v1887 = vadd.f32 %v1881, %v1886
    %1888 = vset.pattern.permute.xlu0 2
    %1889 = vperm.xlu0 %1888, %v1843
    %v1890 = vpop.permute.xlu0 %1889
    %v1892 = vmul.f32 %v1890, %v72
    %v1893 = vadd.f32 %v1887, %v1892
    %1894 = vset.pattern.permute.xlu0 3
    %1895 = vperm.xlu0 %1894, %v1843
    %v1896 = vpop.permute.xlu0 %1895
    %v1898 = vmul.f32 %v1896, %v76
    %v1899 = vadd.f32 %v1893, %v1898
    %1900 = vset.pattern.permute.xlu0 4
    %1901 = vperm.xlu0 %1900, %v1843
    %v1902 = vpop.permute.xlu0 %1901
    %v1904 = vmul.f32 %v1902, %v80
    %v1905 = vadd.f32 %v1899, %v1904
    %1906 = vset.pattern.permute.xlu0 5
    %1907 = vperm.xlu0 %1906, %v1843
    %v1908 = vpop.permute.xlu0 %1907
    %v1910 = vmul.f32 %v1908, %v84
    %v1911 = vadd.f32 %v1905, %v1910
    %1912 = vset.pattern.permute.xlu0 6
    %1913 = vperm.xlu0 %1912, %v1843
    %v1914 = vpop.permute.xlu0 %1913
    %v1916 = vmul.f32 %v1914, %v88
    %v1917 = vadd.f32 %v1911, %v1916
    %1918 = vset.pattern.permute.xlu0 7
    %1919 = vperm.xlu0 %1918, %v1843
    %v1920 = vpop.permute.xlu0 %1919
    %v1922 = vmul.f32 %v1920, %v92
    %v1923 = vadd.f32 %v1917, %v1922
    %v1924 = vadd.f32 %v1875, %v1923
    %v1925 = vtanh.pop %v1924
    %v1926 = vmax.f32 %v1925, 0.0
    %v1927 = vmul.f32 %v1926, %v105
    %v1928 = vsel %vm184, %v1927, 0.0
    %1929 = vadd.xlane.f32.xlu0 %v1928
    %v1930 = vpop.xlane.xlu0 %1929
    %v1931 = vadd.f32 %v1930, %v112
    %vm1932 = vcmp.eq.s32.totalorder %v115, 29
    %1934 = vset.pattern.permute.xlu0 0
    %1935 = vperm.xlu0 %1934, %v1931
    %v1936 = vpop.permute.xlu0 %1935
    %v1938 = vsel %vm1932, %v1936, %v1855
    %v1939 = vmul.f32 %v1374, %v32
    %v1940 = vadd.f32 %v98, %v1939
    %v1941 = vmul.f32 %v1457, %v36
    %v1942 = vadd.f32 %v1940, %v1941
    %v1943 = vmul.f32 %v1540, %v40
    %v1944 = vadd.f32 %v1942, %v1943
    %v1945 = vmul.f32 %v1623, %v44
    %v1946 = vadd.f32 %v1944, %v1945
    %v1947 = vmul.f32 %v1706, %v48
    %v1948 = vadd.f32 %v1946, %v1947
    %v1949 = vmul.f32 %v1789, %v52
    %v1950 = vadd.f32 %v1948, %v1949
    %v1951 = vmul.f32 %v1872, %v56
    %v1952 = vadd.f32 %v1950, %v1951
    %1953 = vset.pattern.permute.xlu0 29
    %1954 = vperm.xlu0 %1953, %v26
    %v1955 = vpop.permute.xlu0 %1954
    %v1957 = vmul.f32 %v1955, %v60
    %v1958 = vadd.f32 %v1952, %v1957
    %1960 = vset.pattern.permute.xlu0 0
    %1961 = vperm.xlu0 %1960, %v1926
    %v1962 = vpop.permute.xlu0 %1961
    %v1964 = vmul.f32 %v1962, %v64
    %1965 = vset.pattern.permute.xlu0 1
    %1966 = vperm.xlu0 %1965, %v1926
    %v1967 = vpop.permute.xlu0 %1966
    %v1969 = vmul.f32 %v1967, %v68
    %v1970 = vadd.f32 %v1964, %v1969
    %1971 = vset.pattern.permute.xlu0 2
    %1972 = vperm.xlu0 %1971, %v1926
    %v1973 = vpop.permute.xlu0 %1972
    %v1975 = vmul.f32 %v1973, %v72
    %v1976 = vadd.f32 %v1970, %v1975
    %1977 = vset.pattern.permute.xlu0 3
    %1978 = vperm.xlu0 %1977, %v1926
    %v1979 = vpop.permute.xlu0 %1978
    %v1981 = vmul.f32 %v1979, %v76
    %v1982 = vadd.f32 %v1976, %v1981
    %1983 = vset.pattern.permute.xlu0 4
    %1984 = vperm.xlu0 %1983, %v1926
    %v1985 = vpop.permute.xlu0 %1984
    %v1987 = vmul.f32 %v1985, %v80
    %v1988 = vadd.f32 %v1982, %v1987
    %1989 = vset.pattern.permute.xlu0 5
    %1990 = vperm.xlu0 %1989, %v1926
    %v1991 = vpop.permute.xlu0 %1990
    %v1993 = vmul.f32 %v1991, %v84
    %v1994 = vadd.f32 %v1988, %v1993
    %1995 = vset.pattern.permute.xlu0 6
    %1996 = vperm.xlu0 %1995, %v1926
    %v1997 = vpop.permute.xlu0 %1996
    %v1999 = vmul.f32 %v1997, %v88
    %v2000 = vadd.f32 %v1994, %v1999
    %2001 = vset.pattern.permute.xlu0 7
    %2002 = vperm.xlu0 %2001, %v1926
    %v2003 = vpop.permute.xlu0 %2002
    %v2005 = vmul.f32 %v2003, %v92
    %v2006 = vadd.f32 %v2000, %v2005
    %v2007 = vadd.f32 %v1958, %v2006
    %v2008 = vtanh.pop %v2007
    %v2009 = vmax.f32 %v2008, 0.0
    %v2010 = vmul.f32 %v2009, %v105
    %v2011 = vsel %vm184, %v2010, 0.0
    %2012 = vadd.xlane.f32.xlu0 %v2011
    %v2013 = vpop.xlane.xlu0 %2012
    %v2014 = vadd.f32 %v2013, %v112
    %vm2015 = vcmp.eq.s32.totalorder %v115, 30
    %2017 = vset.pattern.permute.xlu0 0
    %2018 = vperm.xlu0 %2017, %v2014
    %v2019 = vpop.permute.xlu0 %2018
    %v2021 = vsel %vm2015, %v2019, %v1938
    %v2022 = vmul.f32 %v1457, %v32
    %v2023 = vadd.f32 %v98, %v2022
    %v2024 = vmul.f32 %v1540, %v36
    %v2025 = vadd.f32 %v2023, %v2024
    %v2026 = vmul.f32 %v1623, %v40
    %v2027 = vadd.f32 %v2025, %v2026
    %v2028 = vmul.f32 %v1706, %v44
    %v2029 = vadd.f32 %v2027, %v2028
    %v2030 = vmul.f32 %v1789, %v48
    %v2031 = vadd.f32 %v2029, %v2030
    %v2032 = vmul.f32 %v1872, %v52
    %v2033 = vadd.f32 %v2031, %v2032
    %v2034 = vmul.f32 %v1955, %v56
    %v2035 = vadd.f32 %v2033, %v2034
    %2036 = vset.pattern.permute.xlu0 30
    %2037 = vperm.xlu0 %2036, %v26
    %v2038 = vpop.permute.xlu0 %2037
    %v2040 = vmul.f32 %v2038, %v60
    %v2041 = vadd.f32 %v2035, %v2040
    %2043 = vset.pattern.permute.xlu0 0
    %2044 = vperm.xlu0 %2043, %v2009
    %v2045 = vpop.permute.xlu0 %2044
    %v2047 = vmul.f32 %v2045, %v64
    %2048 = vset.pattern.permute.xlu0 1
    %2049 = vperm.xlu0 %2048, %v2009
    %v2050 = vpop.permute.xlu0 %2049
    %v2052 = vmul.f32 %v2050, %v68
    %v2053 = vadd.f32 %v2047, %v2052
    %2054 = vset.pattern.permute.xlu0 2
    %2055 = vperm.xlu0 %2054, %v2009
    %v2056 = vpop.permute.xlu0 %2055
    %v2058 = vmul.f32 %v2056, %v72
    %v2059 = vadd.f32 %v2053, %v2058
    %2060 = vset.pattern.permute.xlu0 3
    %2061 = vperm.xlu0 %2060, %v2009
    %v2062 = vpop.permute.xlu0 %2061
    %v2064 = vmul.f32 %v2062, %v76
    %v2065 = vadd.f32 %v2059, %v2064
    %2066 = vset.pattern.permute.xlu0 4
    %2067 = vperm.xlu0 %2066, %v2009
    %v2068 = vpop.permute.xlu0 %2067
    %v2070 = vmul.f32 %v2068, %v80
    %v2071 = vadd.f32 %v2065, %v2070
    %2072 = vset.pattern.permute.xlu0 5
    %2073 = vperm.xlu0 %2072, %v2009
    %v2074 = vpop.permute.xlu0 %2073
    %v2076 = vmul.f32 %v2074, %v84
    %v2077 = vadd.f32 %v2071, %v2076
    %2078 = vset.pattern.permute.xlu0 6
    %2079 = vperm.xlu0 %2078, %v2009
    %v2080 = vpop.permute.xlu0 %2079
    %v2082 = vmul.f32 %v2080, %v88
    %v2083 = vadd.f32 %v2077, %v2082
    %2084 = vset.pattern.permute.xlu0 7
    %2085 = vperm.xlu0 %2084, %v2009
    %v2086 = vpop.permute.xlu0 %2085
    %v2088 = vmul.f32 %v2086, %v92
    %v2089 = vadd.f32 %v2083, %v2088
    %v2090 = vadd.f32 %v2041, %v2089
    %v2091 = vtanh.pop %v2090
    %v2092 = vmax.f32 %v2091, 0.0
    %v2093 = vmul.f32 %v2092, %v105
    %v2094 = vsel %vm184, %v2093, 0.0
    %2095 = vadd.xlane.f32.xlu0 %v2094
    %v2096 = vpop.xlane.xlu0 %2095
    %v2097 = vadd.f32 %v2096, %v112
    %vm2098 = vcmp.eq.s32.totalorder %v115, 31
    %2100 = vset.pattern.permute.xlu0 0
    %2101 = vperm.xlu0 %2100, %v2097
    %v2102 = vpop.permute.xlu0 %2101
    %v2104 = vsel %vm2098, %v2102, %v2021
    %2105 = vst [vmem:[#allocation3] sm:$0xff] %v2104
    // Predicated region
    $region26: #{att_forward.1} parent=1 // pred_check
      _
    $region27: #{att_forward.1} parent=1 // pred_check_branch
      %2107 = sbr.rel (0) target = $region29
    $region28: #{att_forward.1} parent=1 // pred_region
      %s2109 = ssub.s32 128, 128
      %2110 = vsyncadd [#allocation4], %s2109
      %s2112 = sshll.u32 [#allocation3], 4
      %s2113 = int_to_ptr.vmem [resolvable:$true] %s2112
      %2115 = dma.vmem_to_hbm [thread:$0]  %s2113, 128, %s6, [#allocation4]
    $region29: #{att_forward.1} parent=1 // pred_fallthru
      _
    // Predicated region
    $region30: #{att_forward.1} parent=1 // pred_check
      _
    $region31: #{att_forward.1} parent=1 // pred_check_branch
      %2117 = sbr.rel (0) target = $region33
    $region32: #{att_forward.1} parent=1 // pred_region
      %2118 = dma.done [#allocation4], 128
    $region33: #{att_forward.1} parent=1 // pred_fallthru
      _
    %2119 = vsyncpa [#allocation4], 1

</llo_original>
